<compile_context>
chip_gen: v7x
topology: tpu7x:2x2x1
jax: 0.10.0
libtpu: 0.0.40
codegen_flags: <defaults>
</compile_context>

<pallas_src>
import functools

import jax
import jax.numpy as jnp
from jax.experimental import pallas as pl
from jax.experimental.pallas import tpu as pltpu

LANE = 128                      # feature dims padded to a multiple of this
NODE_TILE = 512                 # target node-axis tile (A rows and reduction K)
VMEM_LIMIT = 32 * 1024 * 1024   # explicit scoped-VMEM budget (ok on all gens)


def _round_up(x, m):
    return (x + m - 1) // m * m


def _pad2(w, rows, cols):
    out = jnp.zeros((rows, cols), w.dtype)
    return out.at[: w.shape[0], : w.shape[1]].set(w)


def _pad1_row(v, cols):
    out = jnp.zeros((1, cols), v.dtype)
    return out.at[0, : v.shape[0]].set(v)


def padded_num_nodes(n, node_tile=NODE_TILE):
    if n <= node_tile:
        return _round_up(n, LANE)
    return _round_up(n, node_tile)


def _pick_tile(n_pad, cap=NODE_TILE):
    """Largest node-axis tile (multiple of 128, <= cap) dividing n_pad."""
    if n_pad <= cap:
        return n_pad
    best = LANE
    for t in range(LANE, cap + 1, LANE):
        if n_pad % t == 0:
            best = t
    return best


# ----------------------- fused MLP (input + hidden) -------------------------

def _mlp_kernel(*refs, n_layers, cdtype):
    # refs = [x_ref, w0, b0, w1, b1, ..., o_ref]; all layers fused, the
    # activation never round-trips HBM between layers.
    x_ref, o_ref = refs[0], refs[-1]
    h = x_ref[...]
    for l in range(n_layers):
        w_ref = refs[1 + 2 * l]
        b_ref = refs[2 + 2 * l]
        y = jnp.dot(h, w_ref[...], preferred_element_type=jnp.float32)
        y = jnp.maximum(y + b_ref[...], 0.0)
        h = y if l == n_layers - 1 else y.astype(cdtype)
    o_ref[...] = h.astype(o_ref.dtype)


def fused_mlp(x_p, weights, biases, *, row_tile):
    n_pad, ip = x_p.shape
    hp = weights[0].shape[1]
    n_layers = len(weights)
    in_specs = [pl.BlockSpec((row_tile, ip), lambda i: (i, 0))]
    args = [x_p]
    for w, b in zip(weights, biases):
        in_specs.append(pl.BlockSpec(w.shape, lambda i: (0, 0)))  # resident
        in_specs.append(pl.BlockSpec(b.shape, lambda i: (0, 0)))
        args += [w, b]
    return pl.pallas_call(
        functools.partial(_mlp_kernel, n_layers=n_layers, cdtype=x_p.dtype),
        out_shape=jax.ShapeDtypeStruct((n_pad, hp), jnp.float32),
        grid=(n_pad // row_tile,),
        in_specs=in_specs,
        out_specs=pl.BlockSpec((row_tile, hp), lambda i: (i, 0)),
        compiler_params=pltpu.CompilerParams(
            dimension_semantics=("parallel",),
            vmem_limit_bytes=VMEM_LIMIT),
    )(*args)


# ------ fused GCN layer: (BN of prev layer) -> XW -> A@XW + b (+ stats) -----

def _gcn_kernel(a_ref, x_ref, w_ref, b_ref, scale_ref, shift_ref,
                o_ref, stats_ref, acc_ref, *, n_real, row_tile, num_k, cdtype):
    # program ids only at the top level (NOT inside pl.when bodies).
    i = pl.program_id(0)
    k = pl.program_id(1)
    rows = i * row_tile + jax.lax.broadcasted_iota(jnp.int32, (row_tile, 1), 0)
    row_mask = (rows < n_real).astype(jnp.float32)

    @pl.when(k == 0)
    def _init():
        acc_ref[...] = jnp.zeros_like(acc_ref)

    # previous layer's BatchNorm fused into this layer's prologue
    # (scale=1, shift=0 for the first layer / when batch_norm is off).
    xn = x_ref[...].astype(jnp.float32) * scale_ref[...] + shift_ref[...]
    xw = jnp.dot(xn.astype(cdtype), w_ref[...],
                 preferred_element_type=jnp.float32)
    acc_ref[...] += jnp.dot(a_ref[...], xw.astype(cdtype),
                            preferred_element_type=jnp.float32)

    @pl.when(k == num_k - 1)
    def _finalize():
        # bias only on real rows so padded rows stay exactly 0 (keeps the
        # fused BN statistics exact sums over the n_real real rows).
        out = acc_ref[...] + b_ref[...] * row_mask
        o_ref[...] = out.astype(o_ref.dtype)
        stats_ref[0, 0:1, :] = jnp.sum(out, axis=0, keepdims=True)
        stats_ref[0, 1:2, :] = jnp.sum(out * out, axis=0, keepdims=True)


def pallas_gcn(a_p, x_p, w_p, b_p, scale, shift, *, n_real, row_tile, k_tile,
               out_dtype, cdtype):
    n_pad = a_p.shape[0]
    hp = w_p.shape[1]
    num_i = n_pad // row_tile
    num_k = n_pad // k_tile
    kernel = functools.partial(_gcn_kernel, n_real=n_real, row_tile=row_tile,
                               num_k=num_k, cdtype=cdtype)
    return pl.pallas_call(
        kernel,
        out_shape=(jax.ShapeDtypeStruct((n_pad, hp), out_dtype),
                   jax.ShapeDtypeStruct((num_i, 2, hp), jnp.float32)),
        grid=(num_i, num_k),
        in_specs=[
            pl.BlockSpec((row_tile, k_tile), lambda i, k: (i, k)),  # A block
            pl.BlockSpec((k_tile, hp), lambda i, k: (k, 0)),        # X block
            pl.BlockSpec((hp, hp), lambda i, k: (0, 0)),            # W resident
            pl.BlockSpec((1, hp), lambda i, k: (0, 0)),             # bias
            pl.BlockSpec((1, hp), lambda i, k: (0, 0)),             # BN scale
            pl.BlockSpec((1, hp), lambda i, k: (0, 0)),             # BN shift
        ],
        out_specs=(pl.BlockSpec((row_tile, hp), lambda i, k: (i, 0)),
                   pl.BlockSpec((1, 2, hp), lambda i, k: (i, 0, 0))),
        scratch_shapes=[pltpu.VMEM((row_tile, hp), jnp.float32)],
        compiler_params=pltpu.CompilerParams(
            dimension_semantics=("parallel", "arbitrary"),
            vmem_limit_bytes=VMEM_LIMIT),
    )(a_p, x_p, w_p, b_p, scale, shift)


# ------------- final BatchNorm apply (scale/shift), row streamed ------------

def _affine_kernel(x_ref, scale_ref, shift_ref, o_ref):
    y = x_ref[...].astype(jnp.float32) * scale_ref[...] + shift_ref[...]
    o_ref[...] = y.astype(o_ref.dtype)


def pallas_affine(x, scale, shift, *, row_tile):
    n_pad, hp = x.shape
    return pl.pallas_call(
        _affine_kernel,
        out_shape=jax.ShapeDtypeStruct((n_pad, hp), jnp.float32),
        grid=(n_pad // row_tile,),
        in_specs=[pl.BlockSpec((row_tile, hp), lambda i: (i, 0)),
                  pl.BlockSpec((1, hp), lambda i: (0, 0)),
                  pl.BlockSpec((1, hp), lambda i: (0, 0))],
        out_specs=pl.BlockSpec((row_tile, hp), lambda i: (i, 0)),
        compiler_params=pltpu.CompilerParams(
            dimension_semantics=("parallel",),
            vmem_limit_bytes=VMEM_LIMIT),
    )(x, scale, shift)


# --------------------------- parameters & glue ------------------------------

def init_params(key, input_dim, hid_dim, n_hidden_layers, n_graph_layers,
                batch_norm):
    """PyTorch-Linear-style uniform(-1/sqrt(fan_in), 1/sqrt(fan_in)) init."""
    # TODO(synk): PyG GCNConv uses Glorot weight init + zero bias; parameter
    # distributions differ from the PyTorch module (forward math is identical).
    def lin(k, fan_in, fan_out):
        k1, k2 = jax.random.split(k)
        bound = 1.0 / jnp.sqrt(fan_in)
        w = jax.random.uniform(k1, (fan_in, fan_out), jnp.float32, -bound, bound)
        b = jax.random.uniform(k2, (fan_out,), jnp.float32, -bound, bound)
        return w, b

    keys = jax.random.split(key, 1 + n_hidden_layers + n_graph_layers)
    return {
        "input_linear": lin(keys[0], input_dim, hid_dim),
        "hidden": [lin(keys[1 + i], hid_dim, hid_dim)
                   for i in range(n_hidden_layers)],
        "gcn": [lin(keys[1 + n_hidden_layers + i], hid_dim, hid_dim)
                for i in range(n_graph_layers)],
        "bn": [(jnp.ones((hid_dim,), jnp.float32),
                jnp.zeros((hid_dim,), jnp.float32))
               for _ in range(n_graph_layers)] if batch_norm else [],
    }


def normalized_adjacency(edge_index, num_nodes):
    """Dense GCN normalization D^-1/2 (A + I) D^-1/2 (plain-JAX glue)."""
    # TODO(synk): assumes edge_index has no pre-existing self-loops and
    # collapses duplicate edges (PyG GCNConv manages self-loops itself).
    src, dst = edge_index[0], edge_index[1]
    a = jnp.zeros((num_nodes, num_nodes), jnp.float32).at[dst, src].set(1.0)
    a_hat = a + jnp.eye(num_nodes, dtype=jnp.float32)
    deg = a_hat.sum(axis=1)
    d_inv_sqrt = jax.lax.rsqrt(deg)
    return d_inv_sqrt[:, None] * a_hat * d_inv_sqrt[None, :]


def pad_adjacency(adj_norm, num_nodes, *, node_tile=NODE_TILE,
                  compute_dtype=jnp.float32):
    """Pad the normalized adjacency to tile-aligned (n_pad, n_pad) and cast.

    Hoisted OUT of the jitted forward (perf review): call once per graph and
    reuse the result across forward calls.
    """
    n_pad = padded_num_nodes(num_nodes, node_tile)
    a_p = jnp.zeros((n_pad, n_pad), compute_dtype)
    return a_p.at[:num_nodes, :num_nodes].set(adj_norm.astype(compute_dtype))


# --------------------------- encoder (wrapper) ------------------------------

@functools.partial(jax.jit,
                   static_argnames=("batch_norm", "compute_dtype", "eps"))
def custom_stellar_encoder_forward(params, x, a_p, *, batch_norm,
                                   compute_dtype=jnp.float32, eps=1e-5):
    n, input_dim = x.shape
    n_pad = a_p.shape[0]
    hid = params["input_linear"][0].shape[1]
    ip = _round_up(input_dim, LANE)
    hp = _round_up(hid, LANE)
    cdt = compute_dtype
    row_tile = _pick_tile(n_pad)   # same tile for A rows and the reduction K
    k_tile = row_tile

    # zero-pad x to lane-dense / tile-aligned shape (pad lanes stay zero).
    x_p = jnp.zeros((n_pad, ip), cdt).at[:n, :input_dim].set(x.astype(cdt))

    w0, b0 = params["input_linear"]
    mlp_w = [_pad2(w0, ip, hp).astype(cdt)]
    mlp_b = [_pad1_row(b0, hp).astype(jnp.float32)]
    for w, b in params["hidden"]:
        mlp_w.append(_pad2(w, hp, hp).astype(cdt))
        mlp_b.append(_pad1_row(b, hp).astype(jnp.float32))

    # single fused kernel for the whole MLP stack (f32 output, it is returned)
    feat_p = fused_mlp(x_p, mlp_w, mlp_b, row_tile=row_tile)

    ones = jnp.ones((1, hp), jnp.float32)
    zeros = jnp.zeros((1, hp), jnp.float32)
    scale, shift = ones, zeros            # identity normalize for layer 0

    out_p = feat_p
    for li, (w, b) in enumerate(params["gcn"]):
        w_p = _pad2(w, hp, hp).astype(cdt)
        b_p = _pad1_row(b, hp).astype(jnp.float32)
        out_p, stats = pallas_gcn(a_p, out_p, w_p, b_p, scale, shift,
                                  n_real=n, row_tile=row_tile, k_tile=k_tile,
                                  out_dtype=cdt, cdtype=cdt)
        if batch_norm:
            # tiny (num_i, 2, hp) -> (2, hp) reduction in plain JAX; BN folded
            # into scale/shift and fused into the next layer's GCN prologue.
            # NOTE: E[x^2]-E[x]^2 with f32 sums; clamped at 0 (fine at these
            # tolerances, use a two-pass formulation for tighter accuracy).
            s = jnp.sum(stats, axis=0)
            mean = s[0] / n
            var = jnp.maximum(s[1] / n - mean * mean, 0.0)
            inv_std = jax.lax.rsqrt(var + eps)
            scale_vec = _pad1_row(params["bn"][li][0], hp)[0] * inv_std
            shift_vec = _pad1_row(params["bn"][li][1], hp)[0] - mean * scale_vec
            scale, shift = scale_vec[None, :], shift_vec[None, :]
        else:
            scale, shift = ones, zeros

    if batch_norm and params["gcn"]:
        # the last graph layer's BatchNorm has no "next layer" to fuse into
        out_p = pallas_affine(out_p, scale, shift, row_tile=row_tile)
        out_feat = out_p[:n, :hid]
    else:
        out_feat = out_p[:n, :hid].astype(jnp.float32)

    return feat_p[:n, :hid], out_feat


# ---------------------- pure-JAX reference (unpadded) -----------------------

def reference_forward(params, x, adj_norm, *, batch_norm, eps=1e-5):
    w, b = params["input_linear"]
    feat = jnp.maximum(x @ w + b, 0.0)
    for w, b in params["hidden"]:
        feat = jnp.maximum(feat @ w + b, 0.0)
    out_feat = feat
    for i, (w, b) in enumerate(params["gcn"]):
        out_feat = adj_norm @ (out_feat @ w) + b
        if batch_norm:
            g, bb = params["bn"][i]
            m = out_feat.mean(0, keepdims=True)
            v = ((out_feat - m) ** 2).mean(0, keepdims=True)
            out_feat = (out_feat - m) * jax.lax.rsqrt(v + eps) * g + bb
    return feat, out_feat


if __name__ == "__main__":
    # force accurate f32 matmuls on both the reference and the kernels so the
    # f32-path comparison is meaningful on TPU.
    jax.config.update("jax_default_matmul_precision", "highest")

    N_NODES = 16
    INPUT_DIM = 16
    HID_DIM = 32
    N_HIDDEN_LAYERS = 1
    N_GRAPH_LAYERS = 2          # exercises the fused BN->next-layer prologue
    BATCH_NORM = True

    key = jax.random.PRNGKey(0)
    k_x, k_p = jax.random.split(key)
    x = jax.random.normal(k_x, (N_NODES, INPUT_DIM), jnp.float32)

    # deterministic edge_index: bidirectional ring graph, shape (2, 2N)
    nodes = jnp.arange(N_NODES)
    fwd = jnp.stack([nodes, (nodes + 1) % N_NODES])
    bwd = jnp.stack([(nodes + 1) % N_NODES, nodes])
    edge_index = jnp.concatenate([fwd, bwd], axis=1)

    params = init_params(k_p, INPUT_DIM, HID_DIM, N_HIDDEN_LAYERS,
                         N_GRAPH_LAYERS, BATCH_NORM)
    adj_norm = normalized_adjacency(edge_index, N_NODES)

    # ---- f32 path (matches the PyTorch module numerics) ----
    a_p32 = pad_adjacency(adj_norm, N_NODES, compute_dtype=jnp.float32)
    feat, out_feat = custom_stellar_encoder_forward(
        params, x, a_p32, batch_norm=BATCH_NORM)
    jax.block_until_ready((feat, out_feat))

    feat_ref, out_ref = reference_forward(params, x, adj_norm,
                                          batch_norm=BATCH_NORM)
    assert feat.shape == (N_NODES, HID_DIM)
    assert out_feat.shape == (N_NODES, HID_DIM)
    assert jnp.allclose(feat, feat_ref, atol=1e-3, rtol=1e-3), \
        float(jnp.max(jnp.abs(feat - feat_ref)))
    assert jnp.allclose(out_feat, out_ref, atol=1e-3, rtol=1e-3), \
        float(jnp.max(jnp.abs(out_feat - out_ref)))

    # ---- bf16 MXU path (v6e/v7x-oriented: bf16 operands, f32 accumulation) ----
    a_pbf = pad_adjacency(adj_norm, N_NODES, compute_dtype=jnp.bfloat16)
    feat_bf, out_bf = custom_stellar_encoder_forward(
        params, x, a_pbf, batch_norm=BATCH_NORM, compute_dtype=jnp.bfloat16)
    jax.block_until_ready((feat_bf, out_bf))
    assert jnp.allclose(feat_bf, feat_ref, atol=0.5, rtol=0.1), \
        float(jnp.max(jnp.abs(feat_bf - feat_ref)))
    assert jnp.allclose(out_bf, out_ref, atol=0.5, rtol=0.1), \
        float(jnp.max(jnp.abs(out_bf - out_ref)))

    print("KERNEL_OK")
</pallas_src>

<mosaic_0001>
module attributes {stable_mosaic.version = 11 : i64} {
  func.func @_gcn_kernel(%arg0: i32, %arg1: i32, %arg2: memref<128x128xf32, #tpu.memory_space<vmem>>, %arg3: memref<128x128xf32, #tpu.memory_space<vmem>>, %arg4: memref<128x128xf32, #tpu.memory_space<vmem>>, %arg5: memref<1x128xf32, #tpu.memory_space<vmem>>, %arg6: memref<1x128xf32, #tpu.memory_space<vmem>>, %arg7: memref<1x128xf32, #tpu.memory_space<vmem>>, %arg8: memref<128x128xf32, #tpu.memory_space<vmem>>, %arg9: memref<1x2x128xf32, #tpu.memory_space<vmem>>, %arg10: memref<128x128xf32, #tpu.memory_space<vmem>>) attributes {dimension_semantics = [#tpu.dimension_semantics<parallel>, #tpu.dimension_semantics<arbitrary>], iteration_bounds = array<i64: 1, 1>, scalar_prefetch = 0 : i64, scratch_operands = 1 : i64, tpu.core_type = #tpu.core_type<tc>, window_params = [{transform_indices = @transform_0, window_bounds = array<i64: 128, 128>}, {transform_indices = @transform_1, window_bounds = array<i64: 128, 128>}, {pipeline_mode = #tpu.pipeline_mode<synchronous>, transform_indices = @transform_2, window_bounds = array<i64: 128, 128>}, {pipeline_mode = #tpu.pipeline_mode<synchronous>, transform_indices = @transform_3, window_bounds = array<i64: 1, 128>}, {pipeline_mode = #tpu.pipeline_mode<synchronous>, transform_indices = @transform_4, window_bounds = array<i64: 1, 128>}, {pipeline_mode = #tpu.pipeline_mode<synchronous>, transform_indices = @transform_5, window_bounds = array<i64: 1, 128>}, {transform_indices = @transform_6, window_bounds = array<i64: 128, 128>}, {transform_indices = @transform_7, window_bounds = array<i64: 1, 2, 128>}]} {
    %c128_i32 = arith.constant 128 : i32
    %0 = arith.muli %arg0, %c128_i32 : i32
    %1 = tpu.iota {dimensions = array<i32: 0>} : vector<128x1xi32>
    %2 = vector.broadcast %0 : i32 to vector<128x1xi32>
    %3 = arith.addi %2, %1 : vector<128x1xi32>
    %c16_i32 = arith.constant 16 : i32
    %4 = vector.broadcast %c16_i32 : i32 to vector<128x1xi32>
    %5 = arith.cmpi slt, %3, %4 : vector<128x1xi32>
    %6 = arith.extui %5 : vector<128x1xi1> to vector<128x1xi32>
    %7 = arith.sitofp %6 : vector<128x1xi32> to vector<128x1xf32>
    %c0_i32 = arith.constant 0 : i32
    %8 = arith.cmpi eq, %arg1, %c0_i32 : i32
    %9 = arith.extui %8 : i1 to i32
    %c0_i32_0 = arith.constant 0 : i32
    %10 = arith.cmpi ne, %9, %c0_i32_0 : i32
    scf.if %10 {
      %cst_17 = arith.constant 0.000000e+00 : f32
      %28 = vector.broadcast %cst_17 : f32 to vector<128x128xf32>
      %c0_18 = arith.constant 0 : index
      %c0_19 = arith.constant 0 : index
      %29 = vector.load %arg10[%c0_18, %c0_19] : memref<128x128xf32, #tpu.memory_space<vmem>>, vector<128x128xf32>
      tpu.vector_store %arg10[%c0_18, %c0_19], %28 {strides = array<i32>} : memref<128x128xf32, #tpu.memory_space<vmem>>, vector<128x128xf32>,
    } else {
    }
    %c0 = arith.constant 0 : index
    %c0_1 = arith.constant 0 : index
    %11 = vector.load %arg3[%c0, %c0_1] : memref<128x128xf32, #tpu.memory_space<vmem>>, vector<128x128xf32>
    %c0_2 = arith.constant 0 : index
    %c0_3 = arith.constant 0 : index
    %12 = vector.load %arg6[%c0_2, %c0_3] : memref<1x128xf32, #tpu.memory_space<vmem>>, vector<1x128xf32>
    %13 = vector.broadcast %12 : vector<1x128xf32> to vector<128x128xf32>
    %14 = arith.mulf %11, %13 : vector<128x128xf32>
    %c0_4 = arith.constant 0 : index
    %c0_5 = arith.constant 0 : index
    %15 = vector.load %arg7[%c0_4, %c0_5] : memref<1x128xf32, #tpu.memory_space<vmem>>, vector<1x128xf32>
    %16 = vector.broadcast %15 : vector<1x128xf32> to vector<128x128xf32>
    %17 = arith.addf %14, %16 : vector<128x128xf32>
    %c0_6 = arith.constant 0 : index
    %c0_7 = arith.constant 0 : index
    %18 = vector.load %arg4[%c0_6, %c0_7] : memref<128x128xf32, #tpu.memory_space<vmem>>, vector<128x128xf32>
    %cst = arith.constant dense<0.000000e+00> : vector<128x128xf32>
    %19 = tpu.matmul %17, %18, %cst {dimension_numbers = #tpu.dot_dimension_numbers<[1], [0], [0], [1], [0, 0, 1, 1], [], []>, precision = #tpu.contract_precision<fp32>} : vector<128x128xf32>, vector<128x128xf32>, vector<128x128xf32> -> vector<128x128xf32>
    %c0_8 = arith.constant 0 : index
    %c0_9 = arith.constant 0 : index
    %20 = vector.load %arg10[%c0_8, %c0_9] : memref<128x128xf32, #tpu.memory_space<vmem>>, vector<128x128xf32>
    %c0_10 = arith.constant 0 : index
    %c0_11 = arith.constant 0 : index
    %21 = vector.load %arg2[%c0_10, %c0_11] : memref<128x128xf32, #tpu.memory_space<vmem>>, vector<128x128xf32>
    %cst_12 = arith.constant dense<0.000000e+00> : vector<128x128xf32>
    %22 = tpu.matmul %21, %19, %cst_12 {dimension_numbers = #tpu.dot_dimension_numbers<[1], [0], [0], [1], [0, 0, 1, 1], [], []>, precision = #tpu.contract_precision<fp32>} : vector<128x128xf32>, vector<128x128xf32>, vector<128x128xf32> -> vector<128x128xf32>
    %23 = arith.addf %20, %22 : vector<128x128xf32>
    %c0_13 = arith.constant 0 : index
    %c0_14 = arith.constant 0 : index
    %24 = vector.load %arg10[%c0_13, %c0_14] : memref<128x128xf32, #tpu.memory_space<vmem>>, vector<128x128xf32>
    tpu.vector_store %arg10[%c0_13, %c0_14], %23 {strides = array<i32>} : memref<128x128xf32, #tpu.memory_space<vmem>>, vector<128x128xf32>,
    %c0_i32_15 = arith.constant 0 : i32
    %25 = arith.cmpi eq, %arg1, %c0_i32_15 : i32
    %26 = arith.extui %25 : i1 to i32
    %c0_i32_16 = arith.constant 0 : i32
    %27 = arith.cmpi ne, %26, %c0_i32_16 : i32
    scf.if %27 {
      %c0_17 = arith.constant 0 : index
      %c0_18 = arith.constant 0 : index
      %28 = vector.load %arg10[%c0_17, %c0_18] : memref<128x128xf32, #tpu.memory_space<vmem>>, vector<128x128xf32>
      %c0_19 = arith.constant 0 : index
      %c0_20 = arith.constant 0 : index
      %29 = vector.load %arg5[%c0_19, %c0_20] : memref<1x128xf32, #tpu.memory_space<vmem>>, vector<1x128xf32>
      %30 = vector.broadcast %29 : vector<1x128xf32> to vector<128x128xf32>
      %31 = vector.broadcast %7 : vector<128x1xf32> to vector<128x128xf32>
      %32 = arith.mulf %30, %31 : vector<128x128xf32>
      %33 = arith.addf %28, %32 : vector<128x128xf32>
      %c0_21 = arith.constant 0 : index
      %c0_22 = arith.constant 0 : index
      %34 = vector.load %arg8[%c0_21, %c0_22] : memref<128x128xf32, #tpu.memory_space<vmem>>, vector<128x128xf32>
      tpu.vector_store %arg8[%c0_21, %c0_22], %33 {strides = array<i32>} : memref<128x128xf32, #tpu.memory_space<vmem>>, vector<128x128xf32>,
      %cst_23 = arith.constant dense<0.000000e+00> : vector<128xf32>
      %35 = vector.multi_reduction <add>, %33, %cst_23 [0] : vector<128x128xf32> to vector<128xf32>
      %36 = vector.shape_cast %35 : vector<128xf32> to vector<1x128xf32>
      %c0_24 = arith.constant 0 : index
      %c0_25 = arith.constant 0 : index
      %c0_26 = arith.constant 0 : index
      %37 = vector.load %arg9[%c0_24, %c0_25, %c0_26] : memref<1x2x128xf32, #tpu.memory_space<vmem>>, vector<1x1x128xf32>
      %38 = vector.shape_cast %37 : vector<1x1x128xf32> to vector<1x128xf32>
      %39 = vector.shape_cast %36 : vector<1x128xf32> to vector<1x1x128xf32>
      tpu.vector_store %arg9[%c0_24, %c0_25, %c0_26], %39 {strides = array<i32>} : memref<1x2x128xf32, #tpu.memory_space<vmem>>, vector<1x1x128xf32>,
      %40 = arith.mulf %33, %33 : vector<128x128xf32>
      %cst_27 = arith.constant dense<0.000000e+00> : vector<128xf32>
      %41 = vector.multi_reduction <add>, %40, %cst_27 [0] : vector<128x128xf32> to vector<128xf32>
      %42 = vector.shape_cast %41 : vector<128xf32> to vector<1x128xf32>
      %c0_28 = arith.constant 0 : index
      %c1 = arith.constant 1 : index
      %c0_29 = arith.constant 0 : index
      %43 = vector.load %arg9[%c0_28, %c1, %c0_29] : memref<1x2x128xf32, #tpu.memory_space<vmem>>, vector<1x1x128xf32>
      %44 = vector.shape_cast %43 : vector<1x1x128xf32> to vector<1x128xf32>
      %45 = vector.shape_cast %42 : vector<1x128xf32> to vector<1x1x128xf32>
      tpu.vector_store %arg9[%c0_28, %c1, %c0_29], %45 {strides = array<i32>} : memref<1x2x128xf32, #tpu.memory_space<vmem>>, vector<1x1x128xf32>,
    } else {
    }
    return
  }
  func.func @transform_0(%arg0: i32, %arg1: i32) -> (i32, i32) {
    %c0_i32 = arith.constant 0 : i32
    return %arg0, %arg1 : i32, i32
  }
  func.func @transform_1(%arg0: i32, %arg1: i32) -> (i32, i32) {
    %c0_i32 = arith.constant 0 : i32
    %c0_i32_0 = arith.constant 0 : i32
    return %arg1, %c0_i32 : i32, i32
  }
  func.func @transform_2(%arg0: i32, %arg1: i32) -> (i32, i32) {
    %c0_i32 = arith.constant 0 : i32
    %c0_i32_0 = arith.constant 0 : i32
    %c0_i32_1 = arith.constant 0 : i32
    return %c0_i32, %c0_i32_0 : i32, i32
  }
  func.func @transform_3(%arg0: i32, %arg1: i32) -> (i32, i32) {
    %c0_i32 = arith.constant 0 : i32
    %c0_i32_0 = arith.constant 0 : i32
    %c0_i32_1 = arith.constant 0 : i32
    return %c0_i32, %c0_i32_0 : i32, i32
  }
  func.func @transform_4(%arg0: i32, %arg1: i32) -> (i32, i32) {
    %c0_i32 = arith.constant 0 : i32
    %c0_i32_0 = arith.constant 0 : i32
    %c0_i32_1 = arith.constant 0 : i32
    return %c0_i32, %c0_i32_0 : i32, i32
  }
  func.func @transform_5(%arg0: i32, %arg1: i32) -> (i32, i32) {
    %c0_i32 = arith.constant 0 : i32
    %c0_i32_0 = arith.constant 0 : i32
    %c0_i32_1 = arith.constant 0 : i32
    return %c0_i32, %c0_i32_0 : i32, i32
  }
  func.func @transform_6(%arg0: i32, %arg1: i32) -> (i32, i32) {
    %c0_i32 = arith.constant 0 : i32
    %c0_i32_0 = arith.constant 0 : i32
    return %arg0, %c0_i32 : i32, i32
  }
  func.func @transform_7(%arg0: i32, %arg1: i32) -> (i32, i32, i32) {
    %c0_i32 = arith.constant 0 : i32
    %c0_i32_0 = arith.constant 0 : i32
    %c0_i32_1 = arith.constant 0 : i32
    return %arg0, %c0_i32, %c0_i32_0 : i32, i32, i32
  }
}

module attributes {stable_mosaic.version = 11 : i64} {
  func.func @_mlp_kernel(%arg0: i32, %arg1: memref<128x128xf32, #tpu.memory_space<vmem>>, %arg2: memref<128x128xf32, #tpu.memory_space<vmem>>, %arg3: memref<1x128xf32, #tpu.memory_space<vmem>>, %arg4: memref<128x128xf32, #tpu.memory_space<vmem>>, %arg5: memref<1x128xf32, #tpu.memory_space<vmem>>, %arg6: memref<128x128xf32, #tpu.memory_space<vmem>>) attributes {dimension_semantics = [#tpu.dimension_semantics<parallel>], iteration_bounds = array<i64: 1>, scalar_prefetch = 0 : i64, scratch_operands = 0 : i64, tpu.core_type = #tpu.core_type<tc>, window_params = [{transform_indices = @transform_0, window_bounds = array<i64: 128, 128>}, {pipeline_mode = #tpu.pipeline_mode<synchronous>, transform_indices = @transform_1, window_bounds = array<i64: 128, 128>}, {pipeline_mode = #tpu.pipeline_mode<synchronous>, transform_indices = @transform_2, window_bounds = array<i64: 1, 128>}, {pipeline_mode = #tpu.pipeline_mode<synchronous>, transform_indices = @transform_3, window_bounds = array<i64: 128, 128>}, {pipeline_mode = #tpu.pipeline_mode<synchronous>, transform_indices = @transform_4, window_bounds = array<i64: 1, 128>}, {transform_indices = @transform_5, window_bounds = array<i64: 128, 128>}]} {
    %c0 = arith.constant 0 : index
    %c0_0 = arith.constant 0 : index
    %0 = vector.load %arg1[%c0, %c0_0] : memref<128x128xf32, #tpu.memory_space<vmem>>, vector<128x128xf32>
    %c0_1 = arith.constant 0 : index
    %c0_2 = arith.constant 0 : index
    %1 = vector.load %arg2[%c0_1, %c0_2] : memref<128x128xf32, #tpu.memory_space<vmem>>, vector<128x128xf32>
    %cst = arith.constant dense<0.000000e+00> : vector<128x128xf32>
    %2 = tpu.matmul %0, %1, %cst {dimension_numbers = #tpu.dot_dimension_numbers<[1], [0], [0], [1], [0, 0, 1, 1], [], []>, precision = #tpu.contract_precision<fp32>} : vector<128x128xf32>, vector<128x128xf32>, vector<128x128xf32> -> vector<128x128xf32>
    %c0_3 = arith.constant 0 : index
    %c0_4 = arith.constant 0 : index
    %3 = vector.load %arg3[%c0_3, %c0_4] : memref<1x128xf32, #tpu.memory_space<vmem>>, vector<1x128xf32>
    %4 = vector.broadcast %3 : vector<1x128xf32> to vector<128x128xf32>
    %5 = arith.addf %2, %4 : vector<128x128xf32>
    %cst_5 = arith.constant 0.000000e+00 : f32
    %6 = vector.broadcast %cst_5 : f32 to vector<128x128xf32>
    %7 = arith.maximumf %5, %6 : vector<128x128xf32>
    %c0_6 = arith.constant 0 : index
    %c0_7 = arith.constant 0 : index
    %8 = vector.load %arg4[%c0_6, %c0_7] : memref<128x128xf32, #tpu.memory_space<vmem>>, vector<128x128xf32>
    %cst_8 = arith.constant dense<0.000000e+00> : vector<128x128xf32>
    %9 = tpu.matmul %7, %8, %cst_8 {dimension_numbers = #tpu.dot_dimension_numbers<[1], [0], [0], [1], [0, 0, 1, 1], [], []>, precision = #tpu.contract_precision<fp32>} : vector<128x128xf32>, vector<128x128xf32>, vector<128x128xf32> -> vector<128x128xf32>
    %c0_9 = arith.constant 0 : index
    %c0_10 = arith.constant 0 : index
    %10 = vector.load %arg5[%c0_9, %c0_10] : memref<1x128xf32, #tpu.memory_space<vmem>>, vector<1x128xf32>
    %11 = vector.broadcast %10 : vector<1x128xf32> to vector<128x128xf32>
    %12 = arith.addf %9, %11 : vector<128x128xf32>
    %cst_11 = arith.constant 0.000000e+00 : f32
    %13 = vector.broadcast %cst_11 : f32 to vector<128x128xf32>
    %14 = arith.maximumf %12, %13 : vector<128x128xf32>
    %c0_12 = arith.constant 0 : index
    %c0_13 = arith.constant 0 : index
    %15 = vector.load %arg6[%c0_12, %c0_13] : memref<128x128xf32, #tpu.memory_space<vmem>>, vector<128x128xf32>
    tpu.vector_store %arg6[%c0_12, %c0_13], %14 {strides = array<i32>} : memref<128x128xf32, #tpu.memory_space<vmem>>, vector<128x128xf32>,
    return
  }
  func.func @transform_0(%arg0: i32) -> (i32, i32) {
    %c0_i32 = arith.constant 0 : i32
    %c0_i32_0 = arith.constant 0 : i32
    return %arg0, %c0_i32 : i32, i32
  }
  func.func @transform_1(%arg0: i32) -> (i32, i32) {
    %c0_i32 = arith.constant 0 : i32
    %c0_i32_0 = arith.constant 0 : i32
    %c0_i32_1 = arith.constant 0 : i32
    return %c0_i32, %c0_i32_0 : i32, i32
  }
  func.func @transform_2(%arg0: i32) -> (i32, i32) {
    %c0_i32 = arith.constant 0 : i32
    %c0_i32_0 = arith.constant 0 : i32
    %c0_i32_1 = arith.constant 0 : i32
    return %c0_i32, %c0_i32_0 : i32, i32
  }
  func.func @transform_3(%arg0: i32) -> (i32, i32) {
    %c0_i32 = arith.constant 0 : i32
    %c0_i32_0 = arith.constant 0 : i32
    %c0_i32_1 = arith.constant 0 : i32
    return %c0_i32, %c0_i32_0 : i32, i32
  }
  func.func @transform_4(%arg0: i32) -> (i32, i32) {
    %c0_i32 = arith.constant 0 : i32
    %c0_i32_0 = arith.constant 0 : i32
    %c0_i32_1 = arith.constant 0 : i32
    return %c0_i32, %c0_i32_0 : i32, i32
  }
  func.func @transform_5(%arg0: i32) -> (i32, i32) {
    %c0_i32 = arith.constant 0 : i32
    %c0_i32_0 = arith.constant 0 : i32
    return %arg0, %c0_i32 : i32, i32
  }
}

module attributes {stable_mosaic.version = 11 : i64} {
  func.func @_affine_kernel(%arg0: i32, %arg1: memref<128x128xf32, #tpu.memory_space<vmem>>, %arg2: memref<1x128xf32, #tpu.memory_space<vmem>>, %arg3: memref<1x128xf32, #tpu.memory_space<vmem>>, %arg4: memref<128x128xf32, #tpu.memory_space<vmem>>) attributes {dimension_semantics = [#tpu.dimension_semantics<parallel>], iteration_bounds = array<i64: 1>, scalar_prefetch = 0 : i64, scratch_operands = 0 : i64, tpu.core_type = #tpu.core_type<tc>, window_params = [{transform_indices = @transform_0, window_bounds = array<i64: 128, 128>}, {pipeline_mode = #tpu.pipeline_mode<synchronous>, transform_indices = @transform_1, window_bounds = array<i64: 1, 128>}, {pipeline_mode = #tpu.pipeline_mode<synchronous>, transform_indices = @transform_2, window_bounds = array<i64: 1, 128>}, {transform_indices = @transform_3, window_bounds = array<i64: 128, 128>}]} {
    %c0 = arith.constant 0 : index
    %c0_0 = arith.constant 0 : index
    %0 = vector.load %arg1[%c0, %c0_0] : memref<128x128xf32, #tpu.memory_space<vmem>>, vector<128x128xf32>
    %c0_1 = arith.constant 0 : index
    %c0_2 = arith.constant 0 : index
    %1 = vector.load %arg2[%c0_1, %c0_2] : memref<1x128xf32, #tpu.memory_space<vmem>>, vector<1x128xf32>
    %2 = vector.broadcast %1 : vector<1x128xf32> to vector<128x128xf32>
    %3 = arith.mulf %0, %2 : vector<128x128xf32>
    %c0_3 = arith.constant 0 : index
    %c0_4 = arith.constant 0 : index
    %4 = vector.load %arg3[%c0_3, %c0_4] : memref<1x128xf32, #tpu.memory_space<vmem>>, vector<1x128xf32>
    %5 = vector.broadcast %4 : vector<1x128xf32> to vector<128x128xf32>
    %6 = arith.addf %3, %5 : vector<128x128xf32>
    %c0_5 = arith.constant 0 : index
    %c0_6 = arith.constant 0 : index
    %7 = vector.load %arg4[%c0_5, %c0_6] : memref<128x128xf32, #tpu.memory_space<vmem>>, vector<128x128xf32>
    tpu.vector_store %arg4[%c0_5, %c0_6], %6 {strides = array<i32>} : memref<128x128xf32, #tpu.memory_space<vmem>>, vector<128x128xf32>,
    return
  }
  func.func @transform_0(%arg0: i32) -> (i32, i32) {
    %c0_i32 = arith.constant 0 : i32
    %c0_i32_0 = arith.constant 0 : i32
    return %arg0, %c0_i32 : i32, i32
  }
  func.func @transform_1(%arg0: i32) -> (i32, i32) {
    %c0_i32 = arith.constant 0 : i32
    %c0_i32_0 = arith.constant 0 : i32
    %c0_i32_1 = arith.constant 0 : i32
    return %c0_i32, %c0_i32_0 : i32, i32
  }
  func.func @transform_2(%arg0: i32) -> (i32, i32) {
    %c0_i32 = arith.constant 0 : i32
    %c0_i32_0 = arith.constant 0 : i32
    %c0_i32_1 = arith.constant 0 : i32
    return %c0_i32, %c0_i32_0 : i32, i32
  }
  func.func @transform_3(%arg0: i32) -> (i32, i32) {
    %c0_i32 = arith.constant 0 : i32
    %c0_i32_0 = arith.constant 0 : i32
    return %arg0, %c0_i32 : i32, i32
  }
}

</mosaic_0001>

<llo_original>
// kernel: custom_stellar_encoder_forward.7
$region0: #{custom_stellar_encoder_forward.7}
  #allocation0 [shape = 'u32[]', space=smem, size = 0x4, offset = 0x4, fixed_abs, tag = 'smem constant byte address 0x4 - core index']
  #allocation1 [shape = 'u32[144,128]{1,0:T(1,128)}', space=vmem, size = 0x12000, scoped, tag = 'internal scratch']
  %s0 = inlined_call_operand.vmem [shape: f32[128,128], index: 0, kind: input, shape index: {}]
  %s1 = inlined_call_operand.vmem [shape: f32[1,128], index: 1, kind: input, shape index: {}]
  %s2 = inlined_call_operand.vmem [shape: f32[1,128], index: 2, kind: input, shape index: {}]
  %s3 = inlined_call_operand.vmem [shape: f32[128,128], index: 3, kind: output, shape index: {}]
  %s4 = sld [smem:[#allocation0]]
  $region22: #{custom_stellar_encoder_forward.7} parent=0
    _
  %s6 = ssub.s32 1, %s4
  %s7 = scalar_select 0, %s6, %s4
  // Predicated region
  $region2: #{custom_stellar_encoder_forward.7} parent=0 // pred_check
    _
  $region3: #{custom_stellar_encoder_forward.7} parent=0 // pred_check_branch
    %9 = sbr.rel (0) target = $region5
  $region4: #{custom_stellar_encoder_forward.7} parent=0 // pred_region
    _
  $region5: #{custom_stellar_encoder_forward.7} parent=0 // pred_fallthru
    _
  // Predicated region
  $region6: #{custom_stellar_encoder_forward.7} parent=0 // pred_check
    _
  $region7: #{custom_stellar_encoder_forward.7} parent=0 // pred_check_branch
    %11 = sbr.rel (0) target = $region9
  $region8: #{custom_stellar_encoder_forward.7} parent=0 // pred_region
    _
  $region9: #{custom_stellar_encoder_forward.7} parent=0 // pred_fallthru
    _
  // Predicated region
  $region10: #{custom_stellar_encoder_forward.7} parent=0 // pred_check
    _
  $region11: #{custom_stellar_encoder_forward.7} parent=0 // pred_check_branch
    %13 = sbr.rel (0) target = $region13
  $region12: #{custom_stellar_encoder_forward.7} parent=0 // pred_region
    _
  $region13: #{custom_stellar_encoder_forward.7} parent=0 // pred_fallthru
    _
  %v14 = vld [vmem:[%s0] sm:$0xff]
  %v15 = vld [vmem:[%s0 + $0x8] sm:$0xff]
  %v16 = vld [vmem:[%s0 + $0x10] sm:$0xff]
  %v17 = vld [vmem:[%s0 + $0x18] sm:$0xff]
  %v18 = vld [vmem:[%s0 + $0x20] sm:$0xff]
  %v19 = vld [vmem:[%s0 + $0x28] sm:$0xff]
  %v20 = vld [vmem:[%s0 + $0x30] sm:$0xff]
  %v21 = vld [vmem:[%s0 + $0x38] sm:$0xff]
  %v22 = vld [vmem:[%s0 + $0x40] sm:$0xff]
  %v23 = vld [vmem:[%s0 + $0x48] sm:$0xff]
  %v24 = vld [vmem:[%s0 + $0x50] sm:$0xff]
  %v25 = vld [vmem:[%s0 + $0x58] sm:$0xff]
  %v26 = vld [vmem:[%s0 + $0x60] sm:$0xff]
  %v27 = vld [vmem:[%s0 + $0x68] sm:$0xff]
  %v28 = vld [vmem:[%s0 + $0x70] sm:$0xff]
  %v29 = vld [vmem:[%s0 + $0x78] sm:$0xff]
  %v30 = vld [vmem:[%s1] sm:$0x1]
  %v32 = vlaneseq
  %v33 = vshrl.u32 %v32, 7
  %v34 = vsub.s32 0, %v33
  %v35 = vrot.slane %v30, %v34
  %v37 = vmul.f32 %v14, %v35
  %v38 = vmul.f32 %v15, %v35
  %v39 = vmul.f32 %v16, %v35
  %v40 = vmul.f32 %v17, %v35
  %v41 = vmul.f32 %v18, %v35
  %v42 = vmul.f32 %v19, %v35
  %v43 = vmul.f32 %v20, %v35
  %v44 = vmul.f32 %v21, %v35
  %v45 = vmul.f32 %v22, %v35
  %v46 = vmul.f32 %v23, %v35
  %v47 = vmul.f32 %v24, %v35
  %v48 = vmul.f32 %v25, %v35
  %v49 = vmul.f32 %v26, %v35
  %v50 = vmul.f32 %v27, %v35
  %v51 = vmul.f32 %v28, %v35
  %v52 = vmul.f32 %v29, %v35
  %v53 = vld [vmem:[%s2] sm:$0x1]
  %v55 = vlaneseq
  %v56 = vshrl.u32 %v55, 7
  %v57 = vsub.s32 0, %v56
  %v58 = vrot.slane %v53, %v57
  %v60 = vadd.f32 %v37, %v58
  %v61 = vadd.f32 %v38, %v58
  %v62 = vadd.f32 %v39, %v58
  %v63 = vadd.f32 %v40, %v58
  %v64 = vadd.f32 %v41, %v58
  %v65 = vadd.f32 %v42, %v58
  %v66 = vadd.f32 %v43, %v58
  %v67 = vadd.f32 %v44, %v58
  %v68 = vadd.f32 %v45, %v58
  %v69 = vadd.f32 %v46, %v58
  %v70 = vadd.f32 %v47, %v58
  %v71 = vadd.f32 %v48, %v58
  %v72 = vadd.f32 %v49, %v58
  %v73 = vadd.f32 %v50, %v58
  %v74 = vadd.f32 %v51, %v58
  %v75 = vadd.f32 %v52, %v58
  %76 = vst [vmem:[%s3] sm:$0xff] %v60
  %77 = vst [vmem:[%s3 + $0x8] sm:$0xff] %v61
  %78 = vst [vmem:[%s3 + $0x10] sm:$0xff] %v62
  %79 = vst [vmem:[%s3 + $0x18] sm:$0xff] %v63
  %80 = vst [vmem:[%s3 + $0x20] sm:$0xff] %v64
  %81 = vst [vmem:[%s3 + $0x28] sm:$0xff] %v65
  %82 = vst [vmem:[%s3 + $0x30] sm:$0xff] %v66
  %83 = vst [vmem:[%s3 + $0x38] sm:$0xff] %v67
  %84 = vst [vmem:[%s3 + $0x40] sm:$0xff] %v68
  %85 = vst [vmem:[%s3 + $0x48] sm:$0xff] %v69
  %86 = vst [vmem:[%s3 + $0x50] sm:$0xff] %v70
  %87 = vst [vmem:[%s3 + $0x58] sm:$0xff] %v71
  %88 = vst [vmem:[%s3 + $0x60] sm:$0xff] %v72
  %89 = vst [vmem:[%s3 + $0x68] sm:$0xff] %v73
  %90 = vst [vmem:[%s3 + $0x70] sm:$0xff] %v74
  %91 = vst [vmem:[%s3 + $0x78] sm:$0xff] %v75
  // Predicated region
  $region14: #{custom_stellar_encoder_forward.7} parent=0 // pred_check
    _
  $region15: #{custom_stellar_encoder_forward.7} parent=0 // pred_check_branch
    %93 = sbr.rel (0) target = $region17
  $region16: #{custom_stellar_encoder_forward.7} parent=0 // pred_region
    _
  $region17: #{custom_stellar_encoder_forward.7} parent=0 // pred_fallthru
    _
  // Predicated region
  $region18: #{custom_stellar_encoder_forward.7} parent=0 // pred_check
    _
  $region19: #{custom_stellar_encoder_forward.7} parent=0 // pred_check_branch
    %95 = sbr.rel (0) target = $region21
  $region20: #{custom_stellar_encoder_forward.7} parent=0 // pred_region
    _
  $region21: #{custom_stellar_encoder_forward.7} parent=0 // pred_fallthru
    _

// kernel: custom_stellar_encoder_forward.4
$region0: #{custom_stellar_encoder_forward.4}
  #allocation0 [shape = 'u32[]', space=smem, size = 0x4, offset = 0x4, fixed_abs, tag = 'smem constant byte address 0x4 - core index']
  #allocation1 [shape = 'u32[144,128]{1,0:T(1,128)}', space=vmem, size = 0x12000, scoped, tag = 'internal scratch']
  %s0 = inlined_call_operand.vmem [shape: f32[128,128], index: 0, kind: input, shape index: {}]
  %s1 = inlined_call_operand.vmem [shape: f32[128,128], index: 1, kind: input, shape index: {}]
  %s2 = inlined_call_operand.vmem [shape: f32[1,128], index: 2, kind: input, shape index: {}]
  %s3 = inlined_call_operand.vmem [shape: f32[128,128], index: 3, kind: input, shape index: {}]
  %s4 = inlined_call_operand.vmem [shape: f32[1,128], index: 4, kind: input, shape index: {}]
  %s5 = inlined_call_operand.vmem [shape: f32[128,128], index: 5, kind: output, shape index: {}]
  %s6 = sld [smem:[#allocation0]]
  $region30: #{custom_stellar_encoder_forward.4} parent=0
    _
  %s8 = ssub.s32 1, %s6
  %s9 = scalar_select 0, %s8, %s6
  // Predicated region
  $region2: #{custom_stellar_encoder_forward.4} parent=0 // pred_check
    _
  $region3: #{custom_stellar_encoder_forward.4} parent=0 // pred_check_branch
    %11 = sbr.rel (0) target = $region5
  $region4: #{custom_stellar_encoder_forward.4} parent=0 // pred_region
    _
  $region5: #{custom_stellar_encoder_forward.4} parent=0 // pred_fallthru
    _
  // Predicated region
  $region6: #{custom_stellar_encoder_forward.4} parent=0 // pred_check
    _
  $region7: #{custom_stellar_encoder_forward.4} parent=0 // pred_check_branch
    %13 = sbr.rel (0) target = $region9
  $region8: #{custom_stellar_encoder_forward.4} parent=0 // pred_region
    _
  $region9: #{custom_stellar_encoder_forward.4} parent=0 // pred_fallthru
    _
  // Predicated region
  $region10: #{custom_stellar_encoder_forward.4} parent=0 // pred_check
    _
  $region11: #{custom_stellar_encoder_forward.4} parent=0 // pred_check_branch
    %15 = sbr.rel (0) target = $region13
  $region12: #{custom_stellar_encoder_forward.4} parent=0 // pred_region
    _
  $region13: #{custom_stellar_encoder_forward.4} parent=0 // pred_fallthru
    _
  // Predicated region
  $region14: #{custom_stellar_encoder_forward.4} parent=0 // pred_check
    _
  $region15: #{custom_stellar_encoder_forward.4} parent=0 // pred_check_branch
    %17 = sbr.rel (0) target = $region17
  $region16: #{custom_stellar_encoder_forward.4} parent=0 // pred_region
    _
  $region17: #{custom_stellar_encoder_forward.4} parent=0 // pred_fallthru
    _
  // Predicated region
  $region18: #{custom_stellar_encoder_forward.4} parent=0 // pred_check
    _
  $region19: #{custom_stellar_encoder_forward.4} parent=0 // pred_check_branch
    %19 = sbr.rel (0) target = $region21
  $region20: #{custom_stellar_encoder_forward.4} parent=0 // pred_region
    _
  $region21: #{custom_stellar_encoder_forward.4} parent=0 // pred_fallthru
    _
  %v20 = vld [vmem:[%s0] sm:$0xff]
  %v21 = vld [vmem:[%s0 + $0x8] sm:$0xff]
  %v22 = vld [vmem:[%s0 + $0x10] sm:$0xff]
  %v23 = vld [vmem:[%s0 + $0x18] sm:$0xff]
  %v24 = vld [vmem:[%s0 + $0x20] sm:$0xff]
  %v25 = vld [vmem:[%s0 + $0x28] sm:$0xff]
  %v26 = vld [vmem:[%s0 + $0x30] sm:$0xff]
  %v27 = vld [vmem:[%s0 + $0x38] sm:$0xff]
  %v28 = vld [vmem:[%s0 + $0x40] sm:$0xff]
  %v29 = vld [vmem:[%s0 + $0x48] sm:$0xff]
  %v30 = vld [vmem:[%s0 + $0x50] sm:$0xff]
  %v31 = vld [vmem:[%s0 + $0x58] sm:$0xff]
  %v32 = vld [vmem:[%s0 + $0x60] sm:$0xff]
  %v33 = vld [vmem:[%s0 + $0x68] sm:$0xff]
  %v34 = vld [vmem:[%s0 + $0x70] sm:$0xff]
  %v35 = vld [vmem:[%s0 + $0x78] sm:$0xff]
  %v36 = vld [vmem:[%s1] sm:$0xff]
  %v37 = vld [vmem:[%s1 + $0x8] sm:$0xff]
  %v38 = vld [vmem:[%s1 + $0x10] sm:$0xff]
  %v39 = vld [vmem:[%s1 + $0x18] sm:$0xff]
  %v40 = vld [vmem:[%s1 + $0x20] sm:$0xff]
  %v41 = vld [vmem:[%s1 + $0x28] sm:$0xff]
  %v42 = vld [vmem:[%s1 + $0x30] sm:$0xff]
  %v43 = vld [vmem:[%s1 + $0x38] sm:$0xff]
  %v44 = vld [vmem:[%s1 + $0x40] sm:$0xff]
  %v45 = vld [vmem:[%s1 + $0x48] sm:$0xff]
  %v46 = vld [vmem:[%s1 + $0x50] sm:$0xff]
  %v47 = vld [vmem:[%s1 + $0x58] sm:$0xff]
  %v48 = vld [vmem:[%s1 + $0x60] sm:$0xff]
  %v49 = vld [vmem:[%s1 + $0x68] sm:$0xff]
  %v50 = vld [vmem:[%s1 + $0x70] sm:$0xff]
  %v51 = vld [vmem:[%s1 + $0x78] sm:$0xff]
  %v52 = vld [vmem:[%s2] sm:$0x1]
  %v54 = vlaneseq
  %v55 = vshrl.u32 %v54, 7
  %v56 = vsub.s32 0, %v55
  %v57 = vrot.slane %v52, %v56
  %59 = vmatprep.subr.mxu0 0.0
  %v60 = vand.u32 %v36, 4294901760
  %61 = vmatpush1.msra.mxu0 %v60
  %62 = vmatprep.subr.mxu0 0.0
  %v63 = vand.u32 %v37, 4294901760
  %64 = vmatpush1.msra.mxu0 %v63
  %65 = vmatprep.subr.mxu0 0.0
  %v66 = vand.u32 %v38, 4294901760
  %67 = vmatpush1.msra.mxu0 %v66
  %68 = vmatprep.subr.mxu0 0.0
  %v69 = vand.u32 %v39, 4294901760
  %70 = vmatpush1.msra.mxu0 %v69
  %71 = vmatprep.subr.mxu0 0.0
  %v72 = vand.u32 %v40, 4294901760
  %73 = vmatpush1.msra.mxu0 %v72
  %74 = vmatprep.subr.mxu0 0.0
  %v75 = vand.u32 %v41, 4294901760
  %76 = vmatpush1.msra.mxu0 %v75
  %77 = vmatprep.subr.mxu0 0.0
  %v78 = vand.u32 %v42, 4294901760
  %79 = vmatpush1.msra.mxu0 %v78
  %80 = vmatprep.subr.mxu0 0.0
  %v81 = vand.u32 %v43, 4294901760
  %82 = vmatpush1.msra.mxu0 %v81
  %83 = vmatprep.subr.mxu0 0.0
  %v84 = vand.u32 %v44, 4294901760
  %85 = vmatpush1.msra.mxu0 %v84
  %86 = vmatprep.subr.mxu0 0.0
  %v87 = vand.u32 %v45, 4294901760
  %88 = vmatpush1.msra.mxu0 %v87
  %89 = vmatprep.subr.mxu0 0.0
  %v90 = vand.u32 %v46, 4294901760
  %91 = vmatpush1.msra.mxu0 %v90
  %92 = vmatprep.subr.mxu0 0.0
  %v93 = vand.u32 %v47, 4294901760
  %94 = vmatpush1.msra.mxu0 %v93
  %95 = vmatprep.subr.mxu0 0.0
  %v96 = vand.u32 %v48, 4294901760
  %97 = vmatpush1.msra.mxu0 %v96
  %98 = vmatprep.subr.mxu0 0.0
  %v99 = vand.u32 %v49, 4294901760
  %100 = vmatpush1.msra.mxu0 %v99
  %101 = vmatprep.subr.mxu0 0.0
  %v102 = vand.u32 %v50, 4294901760
  %103 = vmatpush1.msra.mxu0 %v102
  %104 = vmatprep.subr.mxu0 0.0
  %v105 = vand.u32 %v51, 4294901760
  %106 = vmatpush1.msra.mxu0 %v105
  %107 = vmatprep.subr.mxu0 0.0
  %108 = vmatpush1.msra.mxu0 0.0
  %109 = vmatprep.subr.mxu0 0.0
  %110 = vmatpush1.msra.mxu0 0.0
  %111 = vmatprep.subr.mxu0 0.0
  %112 = vmatpush1.msra.mxu0 0.0
  %113 = vmatprep.subr.mxu0 0.0
  %114 = vmatpush1.msra.mxu0 0.0
  %115 = vmatprep.subr.mxu0 0.0
  %116 = vmatpush1.msra.mxu0 0.0
  %117 = vmatprep.subr.mxu0 0.0
  %118 = vmatpush1.msra.mxu0 0.0
  %119 = vmatprep.subr.mxu0 0.0
  %120 = vmatpush1.msra.mxu0 0.0
  %121 = vmatprep.subr.mxu0 0.0
  %122 = vmatpush1.msra.mxu0 0.0
  %123 = vmatprep.subr.mxu0 0.0
  %124 = vmatpush1.msra.mxu0 0.0
  %125 = vmatprep.subr.mxu0 0.0
  %126 = vmatpush1.msra.mxu0 0.0
  %127 = vmatprep.subr.mxu0 0.0
  %128 = vmatpush1.msra.mxu0 0.0
  %129 = vmatprep.subr.mxu0 0.0
  %130 = vmatpush1.msra.mxu0 0.0
  %131 = vmatprep.subr.mxu0 0.0
  %132 = vmatpush1.msra.mxu0 0.0
  %133 = vmatprep.subr.mxu0 0.0
  %134 = vmatpush1.msra.mxu0 0.0
  %135 = vmatprep.subr.mxu0 0.0
  %136 = vmatpush1.msra.mxu0 0.0
  %137 = vmatprep.subr.mxu0 0.0
  %138 = vmatpush1.msra.mxu0 0.0
  %139 = vmatprep.mubr.f32.mxu0 0.0
  %v140 = vand.u32 %v20, 4294901760
  %v141 = vsub.f32 %v20, %v140
  %v142 = vand.u32 %v141, 4294901760
  %v143 = vsub.f32 %v141, %v142
  %v144 = vand.u32 %v143, 4294901760
  %145 = vmatmul.mubr.f32.gmra.mrb[0].mxu0 %v144
  %v146 = vpop.f32.mrb[0].mxu0
  %v147 = vadd.f32 %v57, %v146
  %v148 = vpop.f32.mrb[0].mxu0
  %149 = vmatprep.mubr.f32.mxu0 0.0
  %v150 = vand.u32 %v21, 4294901760
  %v151 = vsub.f32 %v21, %v150
  %v152 = vand.u32 %v151, 4294901760
  %v153 = vsub.f32 %v151, %v152
  %v154 = vand.u32 %v153, 4294901760
  %155 = vmatmul.mubr.f32.gmra.mrb[0].mxu0 %v154
  %v156 = vpop.f32.mrb[0].mxu0
  %v157 = vadd.f32 %v57, %v156
  %v158 = vpop.f32.mrb[0].mxu0
  %159 = vmatprep.mubr.f32.mxu0 0.0
  %v160 = vand.u32 %v22, 4294901760
  %v161 = vsub.f32 %v22, %v160
  %v162 = vand.u32 %v161, 4294901760
  %v163 = vsub.f32 %v161, %v162
  %v164 = vand.u32 %v163, 4294901760
  %165 = vmatmul.mubr.f32.gmra.mrb[0].mxu0 %v164
  %v166 = vpop.f32.mrb[0].mxu0
  %v167 = vadd.f32 %v57, %v166
  %v168 = vpop.f32.mrb[0].mxu0
  %169 = vmatprep.mubr.f32.mxu0 0.0
  %v170 = vand.u32 %v23, 4294901760
  %v171 = vsub.f32 %v23, %v170
  %v172 = vand.u32 %v171, 4294901760
  %v173 = vsub.f32 %v171, %v172
  %v174 = vand.u32 %v173, 4294901760
  %175 = vmatmul.mubr.f32.gmra.mrb[0].mxu0 %v174
  %v176 = vpop.f32.mrb[0].mxu0
  %v177 = vadd.f32 %v57, %v176
  %v178 = vpop.f32.mrb[0].mxu0
  %179 = vmatprep.mubr.f32.mxu0 0.0
  %v180 = vand.u32 %v24, 4294901760
  %v181 = vsub.f32 %v24, %v180
  %v182 = vand.u32 %v181, 4294901760
  %v183 = vsub.f32 %v181, %v182
  %v184 = vand.u32 %v183, 4294901760
  %185 = vmatmul.mubr.f32.gmra.mrb[0].mxu0 %v184
  %v186 = vpop.f32.mrb[0].mxu0
  %v187 = vadd.f32 %v57, %v186
  %v188 = vpop.f32.mrb[0].mxu0
  %189 = vmatprep.mubr.f32.mxu0 0.0
  %v190 = vand.u32 %v25, 4294901760
  %v191 = vsub.f32 %v25, %v190
  %v192 = vand.u32 %v191, 4294901760
  %v193 = vsub.f32 %v191, %v192
  %v194 = vand.u32 %v193, 4294901760
  %195 = vmatmul.mubr.f32.gmra.mrb[0].mxu0 %v194
  %v196 = vpop.f32.mrb[0].mxu0
  %v197 = vadd.f32 %v57, %v196
  %v198 = vpop.f32.mrb[0].mxu0
  %199 = vmatprep.mubr.f32.mxu0 0.0
  %v200 = vand.u32 %v26, 4294901760
  %v201 = vsub.f32 %v26, %v200
  %v202 = vand.u32 %v201, 4294901760
  %v203 = vsub.f32 %v201, %v202
  %v204 = vand.u32 %v203, 4294901760
  %205 = vmatmul.mubr.f32.gmra.mrb[0].mxu0 %v204
  %v206 = vpop.f32.mrb[0].mxu0
  %v207 = vadd.f32 %v57, %v206
  %v208 = vpop.f32.mrb[0].mxu0
  %209 = vmatprep.mubr.f32.mxu0 0.0
  %v210 = vand.u32 %v27, 4294901760
  %v211 = vsub.f32 %v27, %v210
  %v212 = vand.u32 %v211, 4294901760
  %v213 = vsub.f32 %v211, %v212
  %v214 = vand.u32 %v213, 4294901760
  %215 = vmatmul.mubr.f32.gmra.mrb[0].mxu0 %v214
  %v216 = vpop.f32.mrb[0].mxu0
  %v217 = vadd.f32 %v57, %v216
  %v218 = vpop.f32.mrb[0].mxu0
  %219 = vmatprep.mubr.f32.mxu0 0.0
  %v220 = vand.u32 %v28, 4294901760
  %v221 = vsub.f32 %v28, %v220
  %v222 = vand.u32 %v221, 4294901760
  %v223 = vsub.f32 %v221, %v222
  %v224 = vand.u32 %v223, 4294901760
  %225 = vmatmul.mubr.f32.gmra.mrb[0].mxu0 %v224
  %v226 = vpop.f32.mrb[0].mxu0
  %v227 = vadd.f32 %v57, %v226
  %v228 = vpop.f32.mrb[0].mxu0
  %229 = vmatprep.mubr.f32.mxu0 0.0
  %v230 = vand.u32 %v29, 4294901760
  %v231 = vsub.f32 %v29, %v230
  %v232 = vand.u32 %v231, 4294901760
  %v233 = vsub.f32 %v231, %v232
  %v234 = vand.u32 %v233, 4294901760
  %235 = vmatmul.mubr.f32.gmra.mrb[0].mxu0 %v234
  %v236 = vpop.f32.mrb[0].mxu0
  %v237 = vadd.f32 %v57, %v236
  %v238 = vpop.f32.mrb[0].mxu0
  %239 = vmatprep.mubr.f32.mxu0 0.0
  %v240 = vand.u32 %v30, 4294901760
  %v241 = vsub.f32 %v30, %v240
  %v242 = vand.u32 %v241, 4294901760
  %v243 = vsub.f32 %v241, %v242
  %v244 = vand.u32 %v243, 4294901760
  %245 = vmatmul.mubr.f32.gmra.mrb[0].mxu0 %v244
  %v246 = vpop.f32.mrb[0].mxu0
  %v247 = vadd.f32 %v57, %v246
  %v248 = vpop.f32.mrb[0].mxu0
  %249 = vmatprep.mubr.f32.mxu0 0.0
  %v250 = vand.u32 %v31, 4294901760
  %v251 = vsub.f32 %v31, %v250
  %v252 = vand.u32 %v251, 4294901760
  %v253 = vsub.f32 %v251, %v252
  %v254 = vand.u32 %v253, 4294901760
  %255 = vmatmul.mubr.f32.gmra.mrb[0].mxu0 %v254
  %v256 = vpop.f32.mrb[0].mxu0
  %v257 = vadd.f32 %v57, %v256
  %v258 = vpop.f32.mrb[0].mxu0
  %259 = vmatprep.mubr.f32.mxu0 0.0
  %v260 = vand.u32 %v32, 4294901760
  %v261 = vsub.f32 %v32, %v260
  %v262 = vand.u32 %v261, 4294901760
  %v263 = vsub.f32 %v261, %v262
  %v264 = vand.u32 %v263, 4294901760
  %265 = vmatmul.mubr.f32.gmra.mrb[0].mxu0 %v264
  %v266 = vpop.f32.mrb[0].mxu0
  %v267 = vadd.f32 %v57, %v266
  %v268 = vpop.f32.mrb[0].mxu0
  %269 = vmatprep.mubr.f32.mxu0 0.0
  %v270 = vand.u32 %v33, 4294901760
  %v271 = vsub.f32 %v33, %v270
  %v272 = vand.u32 %v271, 4294901760
  %v273 = vsub.f32 %v271, %v272
  %v274 = vand.u32 %v273, 4294901760
  %275 = vmatmul.mubr.f32.gmra.mrb[0].mxu0 %v274
  %v276 = vpop.f32.mrb[0].mxu0
  %v277 = vadd.f32 %v57, %v276
  %v278 = vpop.f32.mrb[0].mxu0
  %279 = vmatprep.mubr.f32.mxu0 0.0
  %v280 = vand.u32 %v34, 4294901760
  %v281 = vsub.f32 %v34, %v280
  %v282 = vand.u32 %v281, 4294901760
  %v283 = vsub.f32 %v281, %v282
  %v284 = vand.u32 %v283, 4294901760
  %285 = vmatmul.mubr.f32.gmra.mrb[0].mxu0 %v284
  %v286 = vpop.f32.mrb[0].mxu0
  %v287 = vadd.f32 %v57, %v286
  %v288 = vpop.f32.mrb[0].mxu0
  %289 = vmatprep.mubr.f32.mxu0 0.0
  %v290 = vand.u32 %v35, 4294901760
  %v291 = vsub.f32 %v35, %v290
  %v292 = vand.u32 %v291, 4294901760
  %v293 = vsub.f32 %v291, %v292
  %v294 = vand.u32 %v293, 4294901760
  %295 = vmatmul.mubr.f32.gmra.mrb[0].mxu0 %v294
  %v296 = vpop.f32.mrb[0].mxu0
  %v297 = vadd.f32 %v57, %v296
  %v298 = vpop.f32.mrb[0].mxu0
  %299 = vdwg.mxu0
  %300 = vmatprep.subr.mxu0 0.0
  %v301 = vand.u32 %v36, 4294901760
  %v302 = vsub.f32 %v36, %v301
  %v303 = vand.u32 %v302, 4294901760
  %v304 = vsub.f32 %v302, %v303
  %v305 = vand.u32 %v304, 4294901760
  %306 = vmatpush1.msra.mxu0 %v305
  %307 = vmatprep.subr.mxu0 0.0
  %v308 = vand.u32 %v37, 4294901760
  %v309 = vsub.f32 %v37, %v308
  %v310 = vand.u32 %v309, 4294901760
  %v311 = vsub.f32 %v309, %v310
  %v312 = vand.u32 %v311, 4294901760
  %313 = vmatpush1.msra.mxu0 %v312
  %314 = vmatprep.subr.mxu0 0.0
  %v315 = vand.u32 %v38, 4294901760
  %v316 = vsub.f32 %v38, %v315
  %v317 = vand.u32 %v316, 4294901760
  %v318 = vsub.f32 %v316, %v317
  %v319 = vand.u32 %v318, 4294901760
  %320 = vmatpush1.msra.mxu0 %v319
  %321 = vmatprep.subr.mxu0 0.0
  %v322 = vand.u32 %v39, 4294901760
  %v323 = vsub.f32 %v39, %v322
  %v324 = vand.u32 %v323, 4294901760
  %v325 = vsub.f32 %v323, %v324
  %v326 = vand.u32 %v325, 4294901760
  %327 = vmatpush1.msra.mxu0 %v326
  %328 = vmatprep.subr.mxu0 0.0
  %v329 = vand.u32 %v40, 4294901760
  %v330 = vsub.f32 %v40, %v329
  %v331 = vand.u32 %v330, 4294901760
  %v332 = vsub.f32 %v330, %v331
  %v333 = vand.u32 %v332, 4294901760
  %334 = vmatpush1.msra.mxu0 %v333
  %335 = vmatprep.subr.mxu0 0.0
  %v336 = vand.u32 %v41, 4294901760
  %v337 = vsub.f32 %v41, %v336
  %v338 = vand.u32 %v337, 4294901760
  %v339 = vsub.f32 %v337, %v338
  %v340 = vand.u32 %v339, 4294901760
  %341 = vmatpush1.msra.mxu0 %v340
  %342 = vmatprep.subr.mxu0 0.0
  %v343 = vand.u32 %v42, 4294901760
  %v344 = vsub.f32 %v42, %v343
  %v345 = vand.u32 %v344, 4294901760
  %v346 = vsub.f32 %v344, %v345
  %v347 = vand.u32 %v346, 4294901760
  %348 = vmatpush1.msra.mxu0 %v347
  %349 = vmatprep.subr.mxu0 0.0
  %v350 = vand.u32 %v43, 4294901760
  %v351 = vsub.f32 %v43, %v350
  %v352 = vand.u32 %v351, 4294901760
  %v353 = vsub.f32 %v351, %v352
  %v354 = vand.u32 %v353, 4294901760
  %355 = vmatpush1.msra.mxu0 %v354
  %356 = vmatprep.subr.mxu0 0.0
  %v357 = vand.u32 %v44, 4294901760
  %v358 = vsub.f32 %v44, %v357
  %v359 = vand.u32 %v358, 4294901760
  %v360 = vsub.f32 %v358, %v359
  %v361 = vand.u32 %v360, 4294901760
  %362 = vmatpush1.msra.mxu0 %v361
  %363 = vmatprep.subr.mxu0 0.0
  %v364 = vand.u32 %v45, 4294901760
  %v365 = vsub.f32 %v45, %v364
  %v366 = vand.u32 %v365, 4294901760
  %v367 = vsub.f32 %v365, %v366
  %v368 = vand.u32 %v367, 4294901760
  %369 = vmatpush1.msra.mxu0 %v368
  %370 = vmatprep.subr.mxu0 0.0
  %v371 = vand.u32 %v46, 4294901760
  %v372 = vsub.f32 %v46, %v371
  %v373 = vand.u32 %v372, 4294901760
  %v374 = vsub.f32 %v372, %v373
  %v375 = vand.u32 %v374, 4294901760
  %376 = vmatpush1.msra.mxu0 %v375
  %377 = vmatprep.subr.mxu0 0.0
  %v378 = vand.u32 %v47, 4294901760
  %v379 = vsub.f32 %v47, %v378
  %v380 = vand.u32 %v379, 4294901760
  %v381 = vsub.f32 %v379, %v380
  %v382 = vand.u32 %v381, 4294901760
  %383 = vmatpush1.msra.mxu0 %v382
  %384 = vmatprep.subr.mxu0 0.0
  %v385 = vand.u32 %v48, 4294901760
  %v386 = vsub.f32 %v48, %v385
  %v387 = vand.u32 %v386, 4294901760
  %v388 = vsub.f32 %v386, %v387
  %v389 = vand.u32 %v388, 4294901760
  %390 = vmatpush1.msra.mxu0 %v389
  %391 = vmatprep.subr.mxu0 0.0
  %v392 = vand.u32 %v49, 4294901760
  %v393 = vsub.f32 %v49, %v392
  %v394 = vand.u32 %v393, 4294901760
  %v395 = vsub.f32 %v393, %v394
  %v396 = vand.u32 %v395, 4294901760
  %397 = vmatpush1.msra.mxu0 %v396
  %398 = vmatprep.subr.mxu0 0.0
  %v399 = vand.u32 %v50, 4294901760
  %v400 = vsub.f32 %v50, %v399
  %v401 = vand.u32 %v400, 4294901760
  %v402 = vsub.f32 %v400, %v401
  %v403 = vand.u32 %v402, 4294901760
  %404 = vmatpush1.msra.mxu0 %v403
  %405 = vmatprep.subr.mxu0 0.0
  %v406 = vand.u32 %v51, 4294901760
  %v407 = vsub.f32 %v51, %v406
  %v408 = vand.u32 %v407, 4294901760
  %v409 = vsub.f32 %v407, %v408
  %v410 = vand.u32 %v409, 4294901760
  %411 = vmatpush1.msra.mxu0 %v410
  %412 = vmatprep.subr.mxu0 0.0
  %413 = vmatpush1.msra.mxu0 0.0
  %414 = vmatprep.subr.mxu0 0.0
  %415 = vmatpush1.msra.mxu0 0.0
  %416 = vmatprep.subr.mxu0 0.0
  %417 = vmatpush1.msra.mxu0 0.0
  %418 = vmatprep.subr.mxu0 0.0
  %419 = vmatpush1.msra.mxu0 0.0
  %420 = vmatprep.subr.mxu0 0.0
  %421 = vmatpush1.msra.mxu0 0.0
  %422 = vmatprep.subr.mxu0 0.0
  %423 = vmatpush1.msra.mxu0 0.0
  %424 = vmatprep.subr.mxu0 0.0
  %425 = vmatpush1.msra.mxu0 0.0
  %426 = vmatprep.subr.mxu0 0.0
  %427 = vmatpush1.msra.mxu0 0.0
  %428 = vmatprep.subr.mxu0 0.0
  %429 = vmatpush1.msra.mxu0 0.0
  %430 = vmatprep.subr.mxu0 0.0
  %431 = vmatpush1.msra.mxu0 0.0
  %432 = vmatprep.subr.mxu0 0.0
  %433 = vmatpush1.msra.mxu0 0.0
  %434 = vmatprep.subr.mxu0 0.0
  %435 = vmatpush1.msra.mxu0 0.0
  %436 = vmatprep.subr.mxu0 0.0
  %437 = vmatpush1.msra.mxu0 0.0
  %438 = vmatprep.subr.mxu0 0.0
  %439 = vmatpush1.msra.mxu0 0.0
  %440 = vmatprep.subr.mxu0 0.0
  %441 = vmatpush1.msra.mxu0 0.0
  %442 = vmatprep.subr.mxu0 0.0
  %443 = vmatpush1.msra.mxu0 0.0
  %444 = vmatprep.mubr.f32.mxu0 0.0
  %v445 = vand.u32 %v20, 4294901760
  %446 = vmatmul.mubr.f32.gmra.mrb[0].mxu0 %v445
  %v447 = vpop.f32.mrb[0].mxu0
  %v448 = vadd.f32 %v147, %v447
  %v449 = vpop.f32.mrb[0].mxu0
  %450 = vmatprep.mubr.f32.mxu0 0.0
  %v451 = vand.u32 %v21, 4294901760
  %452 = vmatmul.mubr.f32.gmra.mrb[0].mxu0 %v451
  %v453 = vpop.f32.mrb[0].mxu0
  %v454 = vadd.f32 %v157, %v453
  %v455 = vpop.f32.mrb[0].mxu0
  %456 = vmatprep.mubr.f32.mxu0 0.0
  %v457 = vand.u32 %v22, 4294901760
  %458 = vmatmul.mubr.f32.gmra.mrb[0].mxu0 %v457
  %v459 = vpop.f32.mrb[0].mxu0
  %v460 = vadd.f32 %v167, %v459
  %v461 = vpop.f32.mrb[0].mxu0
  %462 = vmatprep.mubr.f32.mxu0 0.0
  %v463 = vand.u32 %v23, 4294901760
  %464 = vmatmul.mubr.f32.gmra.mrb[0].mxu0 %v463
  %v465 = vpop.f32.mrb[0].mxu0
  %v466 = vadd.f32 %v177, %v465
  %v467 = vpop.f32.mrb[0].mxu0
  %468 = vmatprep.mubr.f32.mxu0 0.0
  %v469 = vand.u32 %v24, 4294901760
  %470 = vmatmul.mubr.f32.gmra.mrb[0].mxu0 %v469
  %v471 = vpop.f32.mrb[0].mxu0
  %v472 = vadd.f32 %v187, %v471
  %v473 = vpop.f32.mrb[0].mxu0
  %474 = vmatprep.mubr.f32.mxu0 0.0
  %v475 = vand.u32 %v25, 4294901760
  %476 = vmatmul.mubr.f32.gmra.mrb[0].mxu0 %v475
  %v477 = vpop.f32.mrb[0].mxu0
  %v478 = vadd.f32 %v197, %v477
  %v479 = vpop.f32.mrb[0].mxu0
  %480 = vmatprep.mubr.f32.mxu0 0.0
  %v481 = vand.u32 %v26, 4294901760
  %482 = vmatmul.mubr.f32.gmra.mrb[0].mxu0 %v481
  %v483 = vpop.f32.mrb[0].mxu0
  %v484 = vadd.f32 %v207, %v483
  %v485 = vpop.f32.mrb[0].mxu0
  %486 = vmatprep.mubr.f32.mxu0 0.0
  %v487 = vand.u32 %v27, 4294901760
  %488 = vmatmul.mubr.f32.gmra.mrb[0].mxu0 %v487
  %v489 = vpop.f32.mrb[0].mxu0
  %v490 = vadd.f32 %v217, %v489
  %v491 = vpop.f32.mrb[0].mxu0
  %492 = vmatprep.mubr.f32.mxu0 0.0
  %v493 = vand.u32 %v28, 4294901760
  %494 = vmatmul.mubr.f32.gmra.mrb[0].mxu0 %v493
  %v495 = vpop.f32.mrb[0].mxu0
  %v496 = vadd.f32 %v227, %v495
  %v497 = vpop.f32.mrb[0].mxu0
  %498 = vmatprep.mubr.f32.mxu0 0.0
  %v499 = vand.u32 %v29, 4294901760
  %500 = vmatmul.mubr.f32.gmra.mrb[0].mxu0 %v499
  %v501 = vpop.f32.mrb[0].mxu0
  %v502 = vadd.f32 %v237, %v501
  %v503 = vpop.f32.mrb[0].mxu0
  %504 = vmatprep.mubr.f32.mxu0 0.0
  %v505 = vand.u32 %v30, 4294901760
  %506 = vmatmul.mubr.f32.gmra.mrb[0].mxu0 %v505
  %v507 = vpop.f32.mrb[0].mxu0
  %v508 = vadd.f32 %v247, %v507
  %v509 = vpop.f32.mrb[0].mxu0
  %510 = vmatprep.mubr.f32.mxu0 0.0
  %v511 = vand.u32 %v31, 4294901760
  %512 = vmatmul.mubr.f32.gmra.mrb[0].mxu0 %v511
  %v513 = vpop.f32.mrb[0].mxu0
  %v514 = vadd.f32 %v257, %v513
  %v515 = vpop.f32.mrb[0].mxu0
  %516 = vmatprep.mubr.f32.mxu0 0.0
  %v517 = vand.u32 %v32, 4294901760
  %518 = vmatmul.mubr.f32.gmra.mrb[0].mxu0 %v517
  %v519 = vpop.f32.mrb[0].mxu0
  %v520 = vadd.f32 %v267, %v519
  %v521 = vpop.f32.mrb[0].mxu0
  %522 = vmatprep.mubr.f32.mxu0 0.0
  %v523 = vand.u32 %v33, 4294901760
  %524 = vmatmul.mubr.f32.gmra.mrb[0].mxu0 %v523
  %v525 = vpop.f32.mrb[0].mxu0
  %v526 = vadd.f32 %v277, %v525
  %v527 = vpop.f32.mrb[0].mxu0
  %528 = vmatprep.mubr.f32.mxu0 0.0
  %v529 = vand.u32 %v34, 4294901760
  %530 = vmatmul.mubr.f32.gmra.mrb[0].mxu0 %v529
  %v531 = vpop.f32.mrb[0].mxu0
  %v532 = vadd.f32 %v287, %v531
  %v533 = vpop.f32.mrb[0].mxu0
  %534 = vmatprep.mubr.f32.mxu0 0.0
  %v535 = vand.u32 %v35, 4294901760
  %536 = vmatmul.mubr.f32.gmra.mrb[0].mxu0 %v535
  %v537 = vpop.f32.mrb[0].mxu0
  %v538 = vadd.f32 %v297, %v537
  %v539 = vpop.f32.mrb[0].mxu0
  %540 = vdwg.mxu0
  %541 = vmatprep.subr.mxu0 0.0
  %v542 = vand.u32 %v36, 4294901760
  %v543 = vsub.f32 %v36, %v542
  %544 = vmatpush1.msra.mxu0 %v543
  %545 = vmatprep.subr.mxu0 0.0
  %v546 = vand.u32 %v37, 4294901760
  %v547 = vsub.f32 %v37, %v546
  %548 = vmatpush1.msra.mxu0 %v547
  %549 = vmatprep.subr.mxu0 0.0
  %v550 = vand.u32 %v38, 4294901760
  %v551 = vsub.f32 %v38, %v550
  %552 = vmatpush1.msra.mxu0 %v551
  %553 = vmatprep.subr.mxu0 0.0
  %v554 = vand.u32 %v39, 4294901760
  %v555 = vsub.f32 %v39, %v554
  %556 = vmatpush1.msra.mxu0 %v555
  %557 = vmatprep.subr.mxu0 0.0
  %v558 = vand.u32 %v40, 4294901760
  %v559 = vsub.f32 %v40, %v558
  %560 = vmatpush1.msra.mxu0 %v559
  %561 = vmatprep.subr.mxu0 0.0
  %v562 = vand.u32 %v41, 4294901760
  %v563 = vsub.f32 %v41, %v562
  %564 = vmatpush1.msra.mxu0 %v563
  %565 = vmatprep.subr.mxu0 0.0
  %v566 = vand.u32 %v42, 4294901760
  %v567 = vsub.f32 %v42, %v566
  %568 = vmatpush1.msra.mxu0 %v567
  %569 = vmatprep.subr.mxu0 0.0
  %v570 = vand.u32 %v43, 4294901760
  %v571 = vsub.f32 %v43, %v570
  %572 = vmatpush1.msra.mxu0 %v571
  %573 = vmatprep.subr.mxu0 0.0
  %v574 = vand.u32 %v44, 4294901760
  %v575 = vsub.f32 %v44, %v574
  %576 = vmatpush1.msra.mxu0 %v575
  %577 = vmatprep.subr.mxu0 0.0
  %v578 = vand.u32 %v45, 4294901760
  %v579 = vsub.f32 %v45, %v578
  %580 = vmatpush1.msra.mxu0 %v579
  %581 = vmatprep.subr.mxu0 0.0
  %v582 = vand.u32 %v46, 4294901760
  %v583 = vsub.f32 %v46, %v582
  %584 = vmatpush1.msra.mxu0 %v583
  %585 = vmatprep.subr.mxu0 0.0
  %v586 = vand.u32 %v47, 4294901760
  %v587 = vsub.f32 %v47, %v586
  %588 = vmatpush1.msra.mxu0 %v587
  %589 = vmatprep.subr.mxu0 0.0
  %v590 = vand.u32 %v48, 4294901760
  %v591 = vsub.f32 %v48, %v590
  %592 = vmatpush1.msra.mxu0 %v591
  %593 = vmatprep.subr.mxu0 0.0
  %v594 = vand.u32 %v49, 4294901760
  %v595 = vsub.f32 %v49, %v594
  %596 = vmatpush1.msra.mxu0 %v595
  %597 = vmatprep.subr.mxu0 0.0
  %v598 = vand.u32 %v50, 4294901760
  %v599 = vsub.f32 %v50, %v598
  %600 = vmatpush1.msra.mxu0 %v599
  %601 = vmatprep.subr.mxu0 0.0
  %v602 = vand.u32 %v51, 4294901760
  %v603 = vsub.f32 %v51, %v602
  %604 = vmatpush1.msra.mxu0 %v603
  %605 = vmatprep.subr.mxu0 0.0
  %606 = vmatpush1.msra.mxu0 0.0
  %607 = vmatprep.subr.mxu0 0.0
  %608 = vmatpush1.msra.mxu0 0.0
  %609 = vmatprep.subr.mxu0 0.0
  %610 = vmatpush1.msra.mxu0 0.0
  %611 = vmatprep.subr.mxu0 0.0
  %612 = vmatpush1.msra.mxu0 0.0
  %613 = vmatprep.subr.mxu0 0.0
  %614 = vmatpush1.msra.mxu0 0.0
  %615 = vmatprep.subr.mxu0 0.0
  %616 = vmatpush1.msra.mxu0 0.0
  %617 = vmatprep.subr.mxu0 0.0
  %618 = vmatpush1.msra.mxu0 0.0
  %619 = vmatprep.subr.mxu0 0.0
  %620 = vmatpush1.msra.mxu0 0.0
  %621 = vmatprep.subr.mxu0 0.0
  %622 = vmatpush1.msra.mxu0 0.0
  %623 = vmatprep.subr.mxu0 0.0
  %624 = vmatpush1.msra.mxu0 0.0
  %625 = vmatprep.subr.mxu0 0.0
  %626 = vmatpush1.msra.mxu0 0.0
  %627 = vmatprep.subr.mxu0 0.0
  %628 = vmatpush1.msra.mxu0 0.0
  %629 = vmatprep.subr.mxu0 0.0
  %630 = vmatpush1.msra.mxu0 0.0
  %631 = vmatprep.subr.mxu0 0.0
  %632 = vmatpush1.msra.mxu0 0.0
  %633 = vmatprep.subr.mxu0 0.0
  %634 = vmatpush1.msra.mxu0 0.0
  %635 = vmatprep.subr.mxu0 0.0
  %636 = vmatpush1.msra.mxu0 0.0
  %637 = vmatprep.mubr.f32.mxu0 0.0
  %v638 = vand.u32 %v20, 4294901760
  %v639 = vsub.f32 %v20, %v638
  %640 = vmatmul.mubr.f32.gmra.mrb[0].mxu0 %v639
  %v641 = vpop.f32.mrb[0].mxu0
  %v642 = vadd.f32 %v448, %v641
  %v643 = vpop.f32.mrb[0].mxu0
  %644 = vmatprep.mubr.f32.mxu0 0.0
  %v645 = vand.u32 %v21, 4294901760
  %v646 = vsub.f32 %v21, %v645
  %647 = vmatmul.mubr.f32.gmra.mrb[0].mxu0 %v646
  %v648 = vpop.f32.mrb[0].mxu0
  %v649 = vadd.f32 %v454, %v648
  %v650 = vpop.f32.mrb[0].mxu0
  %651 = vmatprep.mubr.f32.mxu0 0.0
  %v652 = vand.u32 %v22, 4294901760
  %v653 = vsub.f32 %v22, %v652
  %654 = vmatmul.mubr.f32.gmra.mrb[0].mxu0 %v653
  %v655 = vpop.f32.mrb[0].mxu0
  %v656 = vadd.f32 %v460, %v655
  %v657 = vpop.f32.mrb[0].mxu0
  %658 = vmatprep.mubr.f32.mxu0 0.0
  %v659 = vand.u32 %v23, 4294901760
  %v660 = vsub.f32 %v23, %v659
  %661 = vmatmul.mubr.f32.gmra.mrb[0].mxu0 %v660
  %v662 = vpop.f32.mrb[0].mxu0
  %v663 = vadd.f32 %v466, %v662
  %v664 = vpop.f32.mrb[0].mxu0
  %665 = vmatprep.mubr.f32.mxu0 0.0
  %v666 = vand.u32 %v24, 4294901760
  %v667 = vsub.f32 %v24, %v666
  %668 = vmatmul.mubr.f32.gmra.mrb[0].mxu0 %v667
  %v669 = vpop.f32.mrb[0].mxu0
  %v670 = vadd.f32 %v472, %v669
  %v671 = vpop.f32.mrb[0].mxu0
  %672 = vmatprep.mubr.f32.mxu0 0.0
  %v673 = vand.u32 %v25, 4294901760
  %v674 = vsub.f32 %v25, %v673
  %675 = vmatmul.mubr.f32.gmra.mrb[0].mxu0 %v674
  %v676 = vpop.f32.mrb[0].mxu0
  %v677 = vadd.f32 %v478, %v676
  %v678 = vpop.f32.mrb[0].mxu0
  %679 = vmatprep.mubr.f32.mxu0 0.0
  %v680 = vand.u32 %v26, 4294901760
  %v681 = vsub.f32 %v26, %v680
  %682 = vmatmul.mubr.f32.gmra.mrb[0].mxu0 %v681
  %v683 = vpop.f32.mrb[0].mxu0
  %v684 = vadd.f32 %v484, %v683
  %v685 = vpop.f32.mrb[0].mxu0
  %686 = vmatprep.mubr.f32.mxu0 0.0
  %v687 = vand.u32 %v27, 4294901760
  %v688 = vsub.f32 %v27, %v687
  %689 = vmatmul.mubr.f32.gmra.mrb[0].mxu0 %v688
  %v690 = vpop.f32.mrb[0].mxu0
  %v691 = vadd.f32 %v490, %v690
  %v692 = vpop.f32.mrb[0].mxu0
  %693 = vmatprep.mubr.f32.mxu0 0.0
  %v694 = vand.u32 %v28, 4294901760
  %v695 = vsub.f32 %v28, %v694
  %696 = vmatmul.mubr.f32.gmra.mrb[0].mxu0 %v695
  %v697 = vpop.f32.mrb[0].mxu0
  %v698 = vadd.f32 %v496, %v697
  %v699 = vpop.f32.mrb[0].mxu0
  %700 = vmatprep.mubr.f32.mxu0 0.0
  %v701 = vand.u32 %v29, 4294901760
  %v702 = vsub.f32 %v29, %v701
  %703 = vmatmul.mubr.f32.gmra.mrb[0].mxu0 %v702
  %v704 = vpop.f32.mrb[0].mxu0
  %v705 = vadd.f32 %v502, %v704
  %v706 = vpop.f32.mrb[0].mxu0
  %707 = vmatprep.mubr.f32.mxu0 0.0
  %v708 = vand.u32 %v30, 4294901760
  %v709 = vsub.f32 %v30, %v708
  %710 = vmatmul.mubr.f32.gmra.mrb[0].mxu0 %v709
  %v711 = vpop.f32.mrb[0].mxu0
  %v712 = vadd.f32 %v508, %v711
  %v713 = vpop.f32.mrb[0].mxu0
  %714 = vmatprep.mubr.f32.mxu0 0.0
  %v715 = vand.u32 %v31, 4294901760
  %v716 = vsub.f32 %v31, %v715
  %717 = vmatmul.mubr.f32.gmra.mrb[0].mxu0 %v716
  %v718 = vpop.f32.mrb[0].mxu0
  %v719 = vadd.f32 %v514, %v718
  %v720 = vpop.f32.mrb[0].mxu0
  %721 = vmatprep.mubr.f32.mxu0 0.0
  %v722 = vand.u32 %v32, 4294901760
  %v723 = vsub.f32 %v32, %v722
  %724 = vmatmul.mubr.f32.gmra.mrb[0].mxu0 %v723
  %v725 = vpop.f32.mrb[0].mxu0
  %v726 = vadd.f32 %v520, %v725
  %v727 = vpop.f32.mrb[0].mxu0
  %728 = vmatprep.mubr.f32.mxu0 0.0
  %v729 = vand.u32 %v33, 4294901760
  %v730 = vsub.f32 %v33, %v729
  %731 = vmatmul.mubr.f32.gmra.mrb[0].mxu0 %v730
  %v732 = vpop.f32.mrb[0].mxu0
  %v733 = vadd.f32 %v526, %v732
  %v734 = vpop.f32.mrb[0].mxu0
  %735 = vmatprep.mubr.f32.mxu0 0.0
  %v736 = vand.u32 %v34, 4294901760
  %v737 = vsub.f32 %v34, %v736
  %738 = vmatmul.mubr.f32.gmra.mrb[0].mxu0 %v737
  %v739 = vpop.f32.mrb[0].mxu0
  %v740 = vadd.f32 %v532, %v739
  %v741 = vpop.f32.mrb[0].mxu0
  %742 = vmatprep.mubr.f32.mxu0 0.0
  %v743 = vand.u32 %v35, 4294901760
  %v744 = vsub.f32 %v35, %v743
  %745 = vmatmul.mubr.f32.gmra.mrb[0].mxu0 %v744
  %v746 = vpop.f32.mrb[0].mxu0
  %v747 = vadd.f32 %v538, %v746
  %v748 = vpop.f32.mrb[0].mxu0
  %749 = vdwg.mxu0
  %750 = vmatprep.subr.mxu0 0.0
  %v751 = vand.u32 %v36, 4294901760
  %752 = vmatpush1.msra.mxu0 %v751
  %753 = vmatprep.subr.mxu0 0.0
  %v754 = vand.u32 %v37, 4294901760
  %755 = vmatpush1.msra.mxu0 %v754
  %756 = vmatprep.subr.mxu0 0.0
  %v757 = vand.u32 %v38, 4294901760
  %758 = vmatpush1.msra.mxu0 %v757
  %759 = vmatprep.subr.mxu0 0.0
  %v760 = vand.u32 %v39, 4294901760
  %761 = vmatpush1.msra.mxu0 %v760
  %762 = vmatprep.subr.mxu0 0.0
  %v763 = vand.u32 %v40, 4294901760
  %764 = vmatpush1.msra.mxu0 %v763
  %765 = vmatprep.subr.mxu0 0.0
  %v766 = vand.u32 %v41, 4294901760
  %767 = vmatpush1.msra.mxu0 %v766
  %768 = vmatprep.subr.mxu0 0.0
  %v769 = vand.u32 %v42, 4294901760
  %770 = vmatpush1.msra.mxu0 %v769
  %771 = vmatprep.subr.mxu0 0.0
  %v772 = vand.u32 %v43, 4294901760
  %773 = vmatpush1.msra.mxu0 %v772
  %774 = vmatprep.subr.mxu0 0.0
  %v775 = vand.u32 %v44, 4294901760
  %776 = vmatpush1.msra.mxu0 %v775
  %777 = vmatprep.subr.mxu0 0.0
  %v778 = vand.u32 %v45, 4294901760
  %779 = vmatpush1.msra.mxu0 %v778
  %780 = vmatprep.subr.mxu0 0.0
  %v781 = vand.u32 %v46, 4294901760
  %782 = vmatpush1.msra.mxu0 %v781
  %783 = vmatprep.subr.mxu0 0.0
  %v784 = vand.u32 %v47, 4294901760
  %785 = vmatpush1.msra.mxu0 %v784
  %786 = vmatprep.subr.mxu0 0.0
  %v787 = vand.u32 %v48, 4294901760
  %788 = vmatpush1.msra.mxu0 %v787
  %789 = vmatprep.subr.mxu0 0.0
  %v790 = vand.u32 %v49, 4294901760
  %791 = vmatpush1.msra.mxu0 %v790
  %792 = vmatprep.subr.mxu0 0.0
  %v793 = vand.u32 %v50, 4294901760
  %794 = vmatpush1.msra.mxu0 %v793
  %795 = vmatprep.subr.mxu0 0.0
  %v796 = vand.u32 %v51, 4294901760
  %797 = vmatpush1.msra.mxu0 %v796
  %798 = vmatprep.subr.mxu0 0.0
  %799 = vmatpush1.msra.mxu0 0.0
  %800 = vmatprep.subr.mxu0 0.0
  %801 = vmatpush1.msra.mxu0 0.0
  %802 = vmatprep.subr.mxu0 0.0
  %803 = vmatpush1.msra.mxu0 0.0
  %804 = vmatprep.subr.mxu0 0.0
  %805 = vmatpush1.msra.mxu0 0.0
  %806 = vmatprep.subr.mxu0 0.0
  %807 = vmatpush1.msra.mxu0 0.0
  %808 = vmatprep.subr.mxu0 0.0
  %809 = vmatpush1.msra.mxu0 0.0
  %810 = vmatprep.subr.mxu0 0.0
  %811 = vmatpush1.msra.mxu0 0.0
  %812 = vmatprep.subr.mxu0 0.0
  %813 = vmatpush1.msra.mxu0 0.0
  %814 = vmatprep.subr.mxu0 0.0
  %815 = vmatpush1.msra.mxu0 0.0
  %816 = vmatprep.subr.mxu0 0.0
  %817 = vmatpush1.msra.mxu0 0.0
  %818 = vmatprep.subr.mxu0 0.0
  %819 = vmatpush1.msra.mxu0 0.0
  %820 = vmatprep.subr.mxu0 0.0
  %821 = vmatpush1.msra.mxu0 0.0
  %822 = vmatprep.subr.mxu0 0.0
  %823 = vmatpush1.msra.mxu0 0.0
  %824 = vmatprep.subr.mxu0 0.0
  %825 = vmatpush1.msra.mxu0 0.0
  %826 = vmatprep.subr.mxu0 0.0
  %827 = vmatpush1.msra.mxu0 0.0
  %828 = vmatprep.subr.mxu0 0.0
  %829 = vmatpush1.msra.mxu0 0.0
  %830 = vmatprep.mubr.f32.mxu0 0.0
  %v831 = vand.u32 %v20, 4294901760
  %v832 = vsub.f32 %v20, %v831
  %v833 = vand.u32 %v832, 4294901760
  %834 = vmatmul.mubr.f32.gmra.mrb[0].mxu0 %v833
  %v835 = vpop.f32.mrb[0].mxu0
  %v836 = vadd.f32 %v642, %v835
  %v837 = vpop.f32.mrb[0].mxu0
  %838 = vmatprep.mubr.f32.mxu0 0.0
  %v839 = vand.u32 %v21, 4294901760
  %v840 = vsub.f32 %v21, %v839
  %v841 = vand.u32 %v840, 4294901760
  %842 = vmatmul.mubr.f32.gmra.mrb[0].mxu0 %v841
  %v843 = vpop.f32.mrb[0].mxu0
  %v844 = vadd.f32 %v649, %v843
  %v845 = vpop.f32.mrb[0].mxu0
  %846 = vmatprep.mubr.f32.mxu0 0.0
  %v847 = vand.u32 %v22, 4294901760
  %v848 = vsub.f32 %v22, %v847
  %v849 = vand.u32 %v848, 4294901760
  %850 = vmatmul.mubr.f32.gmra.mrb[0].mxu0 %v849
  %v851 = vpop.f32.mrb[0].mxu0
  %v852 = vadd.f32 %v656, %v851
  %v853 = vpop.f32.mrb[0].mxu0
  %854 = vmatprep.mubr.f32.mxu0 0.0
  %v855 = vand.u32 %v23, 4294901760
  %v856 = vsub.f32 %v23, %v855
  %v857 = vand.u32 %v856, 4294901760
  %858 = vmatmul.mubr.f32.gmra.mrb[0].mxu0 %v857
  %v859 = vpop.f32.mrb[0].mxu0
  %v860 = vadd.f32 %v663, %v859
  %v861 = vpop.f32.mrb[0].mxu0
  %862 = vmatprep.mubr.f32.mxu0 0.0
  %v863 = vand.u32 %v24, 4294901760
  %v864 = vsub.f32 %v24, %v863
  %v865 = vand.u32 %v864, 4294901760
  %866 = vmatmul.mubr.f32.gmra.mrb[0].mxu0 %v865
  %v867 = vpop.f32.mrb[0].mxu0
  %v868 = vadd.f32 %v670, %v867
  %v869 = vpop.f32.mrb[0].mxu0
  %870 = vmatprep.mubr.f32.mxu0 0.0
  %v871 = vand.u32 %v25, 4294901760
  %v872 = vsub.f32 %v25, %v871
  %v873 = vand.u32 %v872, 4294901760
  %874 = vmatmul.mubr.f32.gmra.mrb[0].mxu0 %v873
  %v875 = vpop.f32.mrb[0].mxu0
  %v876 = vadd.f32 %v677, %v875
  %v877 = vpop.f32.mrb[0].mxu0
  %878 = vmatprep.mubr.f32.mxu0 0.0
  %v879 = vand.u32 %v26, 4294901760
  %v880 = vsub.f32 %v26, %v879
  %v881 = vand.u32 %v880, 4294901760
  %882 = vmatmul.mubr.f32.gmra.mrb[0].mxu0 %v881
  %v883 = vpop.f32.mrb[0].mxu0
  %v884 = vadd.f32 %v684, %v883
  %v885 = vpop.f32.mrb[0].mxu0
  %886 = vmatprep.mubr.f32.mxu0 0.0
  %v887 = vand.u32 %v27, 4294901760
  %v888 = vsub.f32 %v27, %v887
  %v889 = vand.u32 %v888, 4294901760
  %890 = vmatmul.mubr.f32.gmra.mrb[0].mxu0 %v889
  %v891 = vpop.f32.mrb[0].mxu0
  %v892 = vadd.f32 %v691, %v891
  %v893 = vpop.f32.mrb[0].mxu0
  %894 = vmatprep.mubr.f32.mxu0 0.0
  %v895 = vand.u32 %v28, 4294901760
  %v896 = vsub.f32 %v28, %v895
  %v897 = vand.u32 %v896, 4294901760
  %898 = vmatmul.mubr.f32.gmra.mrb[0].mxu0 %v897
  %v899 = vpop.f32.mrb[0].mxu0
  %v900 = vadd.f32 %v698, %v899
  %v901 = vpop.f32.mrb[0].mxu0
  %902 = vmatprep.mubr.f32.mxu0 0.0
  %v903 = vand.u32 %v29, 4294901760
  %v904 = vsub.f32 %v29, %v903
  %v905 = vand.u32 %v904, 4294901760
  %906 = vmatmul.mubr.f32.gmra.mrb[0].mxu0 %v905
  %v907 = vpop.f32.mrb[0].mxu0
  %v908 = vadd.f32 %v705, %v907
  %v909 = vpop.f32.mrb[0].mxu0
  %910 = vmatprep.mubr.f32.mxu0 0.0
  %v911 = vand.u32 %v30, 4294901760
  %v912 = vsub.f32 %v30, %v911
  %v913 = vand.u32 %v912, 4294901760
  %914 = vmatmul.mubr.f32.gmra.mrb[0].mxu0 %v913
  %v915 = vpop.f32.mrb[0].mxu0
  %v916 = vadd.f32 %v712, %v915
  %v917 = vpop.f32.mrb[0].mxu0
  %918 = vmatprep.mubr.f32.mxu0 0.0
  %v919 = vand.u32 %v31, 4294901760
  %v920 = vsub.f32 %v31, %v919
  %v921 = vand.u32 %v920, 4294901760
  %922 = vmatmul.mubr.f32.gmra.mrb[0].mxu0 %v921
  %v923 = vpop.f32.mrb[0].mxu0
  %v924 = vadd.f32 %v719, %v923
  %v925 = vpop.f32.mrb[0].mxu0
  %926 = vmatprep.mubr.f32.mxu0 0.0
  %v927 = vand.u32 %v32, 4294901760
  %v928 = vsub.f32 %v32, %v927
  %v929 = vand.u32 %v928, 4294901760
  %930 = vmatmul.mubr.f32.gmra.mrb[0].mxu0 %v929
  %v931 = vpop.f32.mrb[0].mxu0
  %v932 = vadd.f32 %v726, %v931
  %v933 = vpop.f32.mrb[0].mxu0
  %934 = vmatprep.mubr.f32.mxu0 0.0
  %v935 = vand.u32 %v33, 4294901760
  %v936 = vsub.f32 %v33, %v935
  %v937 = vand.u32 %v936, 4294901760
  %938 = vmatmul.mubr.f32.gmra.mrb[0].mxu0 %v937
  %v939 = vpop.f32.mrb[0].mxu0
  %v940 = vadd.f32 %v733, %v939
  %v941 = vpop.f32.mrb[0].mxu0
  %942 = vmatprep.mubr.f32.mxu0 0.0
  %v943 = vand.u32 %v34, 4294901760
  %v944 = vsub.f32 %v34, %v943
  %v945 = vand.u32 %v944, 4294901760
  %946 = vmatmul.mubr.f32.gmra.mrb[0].mxu0 %v945
  %v947 = vpop.f32.mrb[0].mxu0
  %v948 = vadd.f32 %v740, %v947
  %v949 = vpop.f32.mrb[0].mxu0
  %950 = vmatprep.mubr.f32.mxu0 0.0
  %v951 = vand.u32 %v35, 4294901760
  %v952 = vsub.f32 %v35, %v951
  %v953 = vand.u32 %v952, 4294901760
  %954 = vmatmul.mubr.f32.gmra.mrb[0].mxu0 %v953
  %v955 = vpop.f32.mrb[0].mxu0
  %v956 = vadd.f32 %v747, %v955
  %v957 = vpop.f32.mrb[0].mxu0
  %958 = vdwg.mxu0
  %959 = vmatprep.subr.mxu0 0.0
  %v960 = vand.u32 %v36, 4294901760
  %v961 = vsub.f32 %v36, %v960
  %v962 = vand.u32 %v961, 4294901760
  %963 = vmatpush1.msra.mxu0 %v962
  %964 = vmatprep.subr.mxu0 0.0
  %v965 = vand.u32 %v37, 4294901760
  %v966 = vsub.f32 %v37, %v965
  %v967 = vand.u32 %v966, 4294901760
  %968 = vmatpush1.msra.mxu0 %v967
  %969 = vmatprep.subr.mxu0 0.0
  %v970 = vand.u32 %v38, 4294901760
  %v971 = vsub.f32 %v38, %v970
  %v972 = vand.u32 %v971, 4294901760
  %973 = vmatpush1.msra.mxu0 %v972
  %974 = vmatprep.subr.mxu0 0.0
  %v975 = vand.u32 %v39, 4294901760
  %v976 = vsub.f32 %v39, %v975
  %v977 = vand.u32 %v976, 4294901760
  %978 = vmatpush1.msra.mxu0 %v977
  %979 = vmatprep.subr.mxu0 0.0
  %v980 = vand.u32 %v40, 4294901760
  %v981 = vsub.f32 %v40, %v980
  %v982 = vand.u32 %v981, 4294901760
  %983 = vmatpush1.msra.mxu0 %v982
  %984 = vmatprep.subr.mxu0 0.0
  %v985 = vand.u32 %v41, 4294901760
  %v986 = vsub.f32 %v41, %v985
  %v987 = vand.u32 %v986, 4294901760
  %988 = vmatpush1.msra.mxu0 %v987
  %989 = vmatprep.subr.mxu0 0.0
  %v990 = vand.u32 %v42, 4294901760
  %v991 = vsub.f32 %v42, %v990
  %v992 = vand.u32 %v991, 4294901760
  %993 = vmatpush1.msra.mxu0 %v992
  %994 = vmatprep.subr.mxu0 0.0
  %v995 = vand.u32 %v43, 4294901760
  %v996 = vsub.f32 %v43, %v995
  %v997 = vand.u32 %v996, 4294901760
  %998 = vmatpush1.msra.mxu0 %v997
  %999 = vmatprep.subr.mxu0 0.0
  %v1000 = vand.u32 %v44, 4294901760
  %v1001 = vsub.f32 %v44, %v1000
  %v1002 = vand.u32 %v1001, 4294901760
  %1003 = vmatpush1.msra.mxu0 %v1002
  %1004 = vmatprep.subr.mxu0 0.0
  %v1005 = vand.u32 %v45, 4294901760
  %v1006 = vsub.f32 %v45, %v1005
  %v1007 = vand.u32 %v1006, 4294901760
  %1008 = vmatpush1.msra.mxu0 %v1007
  %1009 = vmatprep.subr.mxu0 0.0
  %v1010 = vand.u32 %v46, 4294901760
  %v1011 = vsub.f32 %v46, %v1010
  %v1012 = vand.u32 %v1011, 4294901760
  %1013 = vmatpush1.msra.mxu0 %v1012
  %1014 = vmatprep.subr.mxu0 0.0
  %v1015 = vand.u32 %v47, 4294901760
  %v1016 = vsub.f32 %v47, %v1015
  %v1017 = vand.u32 %v1016, 4294901760
  %1018 = vmatpush1.msra.mxu0 %v1017
  %1019 = vmatprep.subr.mxu0 0.0
  %v1020 = vand.u32 %v48, 4294901760
  %v1021 = vsub.f32 %v48, %v1020
  %v1022 = vand.u32 %v1021, 4294901760
  %1023 = vmatpush1.msra.mxu0 %v1022
  %1024 = vmatprep.subr.mxu0 0.0
  %v1025 = vand.u32 %v49, 4294901760
  %v1026 = vsub.f32 %v49, %v1025
  %v1027 = vand.u32 %v1026, 4294901760
  %1028 = vmatpush1.msra.mxu0 %v1027
  %1029 = vmatprep.subr.mxu0 0.0
  %v1030 = vand.u32 %v50, 4294901760
  %v1031 = vsub.f32 %v50, %v1030
  %v1032 = vand.u32 %v1031, 4294901760
  %1033 = vmatpush1.msra.mxu0 %v1032
  %1034 = vmatprep.subr.mxu0 0.0
  %v1035 = vand.u32 %v51, 4294901760
  %v1036 = vsub.f32 %v51, %v1035
  %v1037 = vand.u32 %v1036, 4294901760
  %1038 = vmatpush1.msra.mxu0 %v1037
  %1039 = vmatprep.subr.mxu0 0.0
  %1040 = vmatpush1.msra.mxu0 0.0
  %1041 = vmatprep.subr.mxu0 0.0
  %1042 = vmatpush1.msra.mxu0 0.0
  %1043 = vmatprep.subr.mxu0 0.0
  %1044 = vmatpush1.msra.mxu0 0.0
  %1045 = vmatprep.subr.mxu0 0.0
  %1046 = vmatpush1.msra.mxu0 0.0
  %1047 = vmatprep.subr.mxu0 0.0
  %1048 = vmatpush1.msra.mxu0 0.0
  %1049 = vmatprep.subr.mxu0 0.0
  %1050 = vmatpush1.msra.mxu0 0.0
  %1051 = vmatprep.subr.mxu0 0.0
  %1052 = vmatpush1.msra.mxu0 0.0
  %1053 = vmatprep.subr.mxu0 0.0
  %1054 = vmatpush1.msra.mxu0 0.0
  %1055 = vmatprep.subr.mxu0 0.0
  %1056 = vmatpush1.msra.mxu0 0.0
  %1057 = vmatprep.subr.mxu0 0.0
  %1058 = vmatpush1.msra.mxu0 0.0
  %1059 = vmatprep.subr.mxu0 0.0
  %1060 = vmatpush1.msra.mxu0 0.0
  %1061 = vmatprep.subr.mxu0 0.0
  %1062 = vmatpush1.msra.mxu0 0.0
  %1063 = vmatprep.subr.mxu0 0.0
  %1064 = vmatpush1.msra.mxu0 0.0
  %1065 = vmatprep.subr.mxu0 0.0
  %1066 = vmatpush1.msra.mxu0 0.0
  %1067 = vmatprep.subr.mxu0 0.0
  %1068 = vmatpush1.msra.mxu0 0.0
  %1069 = vmatprep.subr.mxu0 0.0
  %1070 = vmatpush1.msra.mxu0 0.0
  %1071 = vmatprep.mubr.f32.mxu0 0.0
  %v1072 = vand.u32 %v20, 4294901760
  %1073 = vmatmul.mubr.f32.gmra.mrb[0].mxu0 %v1072
  %v1074 = vpop.f32.mrb[0].mxu0
  %v1075 = vadd.f32 %v836, %v1074
  %v1076 = vpop.f32.mrb[0].mxu0
  %1077 = vmatprep.mubr.f32.mxu0 0.0
  %v1078 = vand.u32 %v21, 4294901760
  %1079 = vmatmul.mubr.f32.gmra.mrb[0].mxu0 %v1078
  %v1080 = vpop.f32.mrb[0].mxu0
  %v1081 = vadd.f32 %v844, %v1080
  %v1082 = vpop.f32.mrb[0].mxu0
  %1083 = vmatprep.mubr.f32.mxu0 0.0
  %v1084 = vand.u32 %v22, 4294901760
  %1085 = vmatmul.mubr.f32.gmra.mrb[0].mxu0 %v1084
  %v1086 = vpop.f32.mrb[0].mxu0
  %v1087 = vadd.f32 %v852, %v1086
  %v1088 = vpop.f32.mrb[0].mxu0
  %1089 = vmatprep.mubr.f32.mxu0 0.0
  %v1090 = vand.u32 %v23, 4294901760
  %1091 = vmatmul.mubr.f32.gmra.mrb[0].mxu0 %v1090
  %v1092 = vpop.f32.mrb[0].mxu0
  %v1093 = vadd.f32 %v860, %v1092
  %v1094 = vpop.f32.mrb[0].mxu0
  %1095 = vmatprep.mubr.f32.mxu0 0.0
  %v1096 = vand.u32 %v24, 4294901760
  %1097 = vmatmul.mubr.f32.gmra.mrb[0].mxu0 %v1096
  %v1098 = vpop.f32.mrb[0].mxu0
  %v1099 = vadd.f32 %v868, %v1098
  %v1100 = vpop.f32.mrb[0].mxu0
  %1101 = vmatprep.mubr.f32.mxu0 0.0
  %v1102 = vand.u32 %v25, 4294901760
  %1103 = vmatmul.mubr.f32.gmra.mrb[0].mxu0 %v1102
  %v1104 = vpop.f32.mrb[0].mxu0
  %v1105 = vadd.f32 %v876, %v1104
  %v1106 = vpop.f32.mrb[0].mxu0
  %1107 = vmatprep.mubr.f32.mxu0 0.0
  %v1108 = vand.u32 %v26, 4294901760
  %1109 = vmatmul.mubr.f32.gmra.mrb[0].mxu0 %v1108
  %v1110 = vpop.f32.mrb[0].mxu0
  %v1111 = vadd.f32 %v884, %v1110
  %v1112 = vpop.f32.mrb[0].mxu0
  %1113 = vmatprep.mubr.f32.mxu0 0.0
  %v1114 = vand.u32 %v27, 4294901760
  %1115 = vmatmul.mubr.f32.gmra.mrb[0].mxu0 %v1114
  %v1116 = vpop.f32.mrb[0].mxu0
  %v1117 = vadd.f32 %v892, %v1116
  %v1118 = vpop.f32.mrb[0].mxu0
  %1119 = vmatprep.mubr.f32.mxu0 0.0
  %v1120 = vand.u32 %v28, 4294901760
  %1121 = vmatmul.mubr.f32.gmra.mrb[0].mxu0 %v1120
  %v1122 = vpop.f32.mrb[0].mxu0
  %v1123 = vadd.f32 %v900, %v1122
  %v1124 = vpop.f32.mrb[0].mxu0
  %1125 = vmatprep.mubr.f32.mxu0 0.0
  %v1126 = vand.u32 %v29, 4294901760
  %1127 = vmatmul.mubr.f32.gmra.mrb[0].mxu0 %v1126
  %v1128 = vpop.f32.mrb[0].mxu0
  %v1129 = vadd.f32 %v908, %v1128
  %v1130 = vpop.f32.mrb[0].mxu0
  %1131 = vmatprep.mubr.f32.mxu0 0.0
  %v1132 = vand.u32 %v30, 4294901760
  %1133 = vmatmul.mubr.f32.gmra.mrb[0].mxu0 %v1132
  %v1134 = vpop.f32.mrb[0].mxu0
  %v1135 = vadd.f32 %v916, %v1134
  %v1136 = vpop.f32.mrb[0].mxu0
  %1137 = vmatprep.mubr.f32.mxu0 0.0
  %v1138 = vand.u32 %v31, 4294901760
  %1139 = vmatmul.mubr.f32.gmra.mrb[0].mxu0 %v1138
  %v1140 = vpop.f32.mrb[0].mxu0
  %v1141 = vadd.f32 %v924, %v1140
  %v1142 = vpop.f32.mrb[0].mxu0
  %1143 = vmatprep.mubr.f32.mxu0 0.0
  %v1144 = vand.u32 %v32, 4294901760
  %1145 = vmatmul.mubr.f32.gmra.mrb[0].mxu0 %v1144
  %v1146 = vpop.f32.mrb[0].mxu0
  %v1147 = vadd.f32 %v932, %v1146
  %v1148 = vpop.f32.mrb[0].mxu0
  %1149 = vmatprep.mubr.f32.mxu0 0.0
  %v1150 = vand.u32 %v33, 4294901760
  %1151 = vmatmul.mubr.f32.gmra.mrb[0].mxu0 %v1150
  %v1152 = vpop.f32.mrb[0].mxu0
  %v1153 = vadd.f32 %v940, %v1152
  %v1154 = vpop.f32.mrb[0].mxu0
  %1155 = vmatprep.mubr.f32.mxu0 0.0
  %v1156 = vand.u32 %v34, 4294901760
  %1157 = vmatmul.mubr.f32.gmra.mrb[0].mxu0 %v1156
  %v1158 = vpop.f32.mrb[0].mxu0
  %v1159 = vadd.f32 %v948, %v1158
  %v1160 = vpop.f32.mrb[0].mxu0
  %1161 = vmatprep.mubr.f32.mxu0 0.0
  %v1162 = vand.u32 %v35, 4294901760
  %1163 = vmatmul.mubr.f32.gmra.mrb[0].mxu0 %v1162
  %v1164 = vpop.f32.mrb[0].mxu0
  %v1165 = vadd.f32 %v956, %v1164
  %v1166 = vpop.f32.mrb[0].mxu0
  %1167 = vdwg.mxu0
  %1168 = vmatprep.subr.mxu0 0.0
  %v1169 = vand.u32 %v36, 4294901760
  %1170 = vmatpush1.msra.mxu0 %v1169
  %1171 = vmatprep.subr.mxu0 0.0
  %v1172 = vand.u32 %v37, 4294901760
  %1173 = vmatpush1.msra.mxu0 %v1172
  %1174 = vmatprep.subr.mxu0 0.0
  %v1175 = vand.u32 %v38, 4294901760
  %1176 = vmatpush1.msra.mxu0 %v1175
  %1177 = vmatprep.subr.mxu0 0.0
  %v1178 = vand.u32 %v39, 4294901760
  %1179 = vmatpush1.msra.mxu0 %v1178
  %1180 = vmatprep.subr.mxu0 0.0
  %v1181 = vand.u32 %v40, 4294901760
  %1182 = vmatpush1.msra.mxu0 %v1181
  %1183 = vmatprep.subr.mxu0 0.0
  %v1184 = vand.u32 %v41, 4294901760
  %1185 = vmatpush1.msra.mxu0 %v1184
  %1186 = vmatprep.subr.mxu0 0.0
  %v1187 = vand.u32 %v42, 4294901760
  %1188 = vmatpush1.msra.mxu0 %v1187
  %1189 = vmatprep.subr.mxu0 0.0
  %v1190 = vand.u32 %v43, 4294901760
  %1191 = vmatpush1.msra.mxu0 %v1190
  %1192 = vmatprep.subr.mxu0 0.0
  %v1193 = vand.u32 %v44, 4294901760
  %1194 = vmatpush1.msra.mxu0 %v1193
  %1195 = vmatprep.subr.mxu0 0.0
  %v1196 = vand.u32 %v45, 4294901760
  %1197 = vmatpush1.msra.mxu0 %v1196
  %1198 = vmatprep.subr.mxu0 0.0
  %v1199 = vand.u32 %v46, 4294901760
  %1200 = vmatpush1.msra.mxu0 %v1199
  %1201 = vmatprep.subr.mxu0 0.0
  %v1202 = vand.u32 %v47, 4294901760
  %1203 = vmatpush1.msra.mxu0 %v1202
  %1204 = vmatprep.subr.mxu0 0.0
  %v1205 = vand.u32 %v48, 4294901760
  %1206 = vmatpush1.msra.mxu0 %v1205
  %1207 = vmatprep.subr.mxu0 0.0
  %v1208 = vand.u32 %v49, 4294901760
  %1209 = vmatpush1.msra.mxu0 %v1208
  %1210 = vmatprep.subr.mxu0 0.0
  %v1211 = vand.u32 %v50, 4294901760
  %1212 = vmatpush1.msra.mxu0 %v1211
  %1213 = vmatprep.subr.mxu0 0.0
  %v1214 = vand.u32 %v51, 4294901760
  %1215 = vmatpush1.msra.mxu0 %v1214
  %1216 = vmatprep.subr.mxu0 0.0
  %1217 = vmatpush1.msra.mxu0 0.0
  %1218 = vmatprep.subr.mxu0 0.0
  %1219 = vmatpush1.msra.mxu0 0.0
  %1220 = vmatprep.subr.mxu0 0.0
  %1221 = vmatpush1.msra.mxu0 0.0
  %1222 = vmatprep.subr.mxu0 0.0
  %1223 = vmatpush1.msra.mxu0 0.0
  %1224 = vmatprep.subr.mxu0 0.0
  %1225 = vmatpush1.msra.mxu0 0.0
  %1226 = vmatprep.subr.mxu0 0.0
  %1227 = vmatpush1.msra.mxu0 0.0
  %1228 = vmatprep.subr.mxu0 0.0
  %1229 = vmatpush1.msra.mxu0 0.0
  %1230 = vmatprep.subr.mxu0 0.0
  %1231 = vmatpush1.msra.mxu0 0.0
  %1232 = vmatprep.subr.mxu0 0.0
  %1233 = vmatpush1.msra.mxu0 0.0
  %1234 = vmatprep.subr.mxu0 0.0
  %1235 = vmatpush1.msra.mxu0 0.0
  %1236 = vmatprep.subr.mxu0 0.0
  %1237 = vmatpush1.msra.mxu0 0.0
  %1238 = vmatprep.subr.mxu0 0.0
  %1239 = vmatpush1.msra.mxu0 0.0
  %1240 = vmatprep.subr.mxu0 0.0
  %1241 = vmatpush1.msra.mxu0 0.0
  %1242 = vmatprep.subr.mxu0 0.0
  %1243 = vmatpush1.msra.mxu0 0.0
  %1244 = vmatprep.subr.mxu0 0.0
  %1245 = vmatpush1.msra.mxu0 0.0
  %1246 = vmatprep.subr.mxu0 0.0
  %1247 = vmatpush1.msra.mxu0 0.0
  %1248 = vmatprep.mubr.f32.mxu0 0.0
  %v1249 = vand.u32 %v20, 4294901760
  %1250 = vmatmul.mubr.f32.gmra.mrb[0].mxu0 %v1249
  %v1251 = vpop.f32.mrb[0].mxu0
  %v1252 = vadd.f32 %v1075, %v1251
  %v1253 = vpop.f32.mrb[0].mxu0
  %1254 = vmatprep.mubr.f32.mxu0 0.0
  %v1255 = vand.u32 %v21, 4294901760
  %1256 = vmatmul.mubr.f32.gmra.mrb[0].mxu0 %v1255
  %v1257 = vpop.f32.mrb[0].mxu0
  %v1258 = vadd.f32 %v1081, %v1257
  %v1259 = vpop.f32.mrb[0].mxu0
  %1260 = vmatprep.mubr.f32.mxu0 0.0
  %v1261 = vand.u32 %v22, 4294901760
  %1262 = vmatmul.mubr.f32.gmra.mrb[0].mxu0 %v1261
  %v1263 = vpop.f32.mrb[0].mxu0
  %v1264 = vadd.f32 %v1087, %v1263
  %v1265 = vpop.f32.mrb[0].mxu0
  %1266 = vmatprep.mubr.f32.mxu0 0.0
  %v1267 = vand.u32 %v23, 4294901760
  %1268 = vmatmul.mubr.f32.gmra.mrb[0].mxu0 %v1267
  %v1269 = vpop.f32.mrb[0].mxu0
  %v1270 = vadd.f32 %v1093, %v1269
  %v1271 = vpop.f32.mrb[0].mxu0
  %1272 = vmatprep.mubr.f32.mxu0 0.0
  %v1273 = vand.u32 %v24, 4294901760
  %1274 = vmatmul.mubr.f32.gmra.mrb[0].mxu0 %v1273
  %v1275 = vpop.f32.mrb[0].mxu0
  %v1276 = vadd.f32 %v1099, %v1275
  %v1277 = vpop.f32.mrb[0].mxu0
  %1278 = vmatprep.mubr.f32.mxu0 0.0
  %v1279 = vand.u32 %v25, 4294901760
  %1280 = vmatmul.mubr.f32.gmra.mrb[0].mxu0 %v1279
  %v1281 = vpop.f32.mrb[0].mxu0
  %v1282 = vadd.f32 %v1105, %v1281
  %v1283 = vpop.f32.mrb[0].mxu0
  %1284 = vmatprep.mubr.f32.mxu0 0.0
  %v1285 = vand.u32 %v26, 4294901760
  %1286 = vmatmul.mubr.f32.gmra.mrb[0].mxu0 %v1285
  %v1287 = vpop.f32.mrb[0].mxu0
  %v1288 = vadd.f32 %v1111, %v1287
  %v1289 = vpop.f32.mrb[0].mxu0
  %1290 = vmatprep.mubr.f32.mxu0 0.0
  %v1291 = vand.u32 %v27, 4294901760
  %1292 = vmatmul.mubr.f32.gmra.mrb[0].mxu0 %v1291
  %v1293 = vpop.f32.mrb[0].mxu0
  %v1294 = vadd.f32 %v1117, %v1293
  %v1295 = vpop.f32.mrb[0].mxu0
  %1296 = vmatprep.mubr.f32.mxu0 0.0
  %v1297 = vand.u32 %v28, 4294901760
  %1298 = vmatmul.mubr.f32.gmra.mrb[0].mxu0 %v1297
  %v1299 = vpop.f32.mrb[0].mxu0
  %v1300 = vadd.f32 %v1123, %v1299
  %v1301 = vpop.f32.mrb[0].mxu0
  %1302 = vmatprep.mubr.f32.mxu0 0.0
  %v1303 = vand.u32 %v29, 4294901760
  %1304 = vmatmul.mubr.f32.gmra.mrb[0].mxu0 %v1303
  %v1305 = vpop.f32.mrb[0].mxu0
  %v1306 = vadd.f32 %v1129, %v1305
  %v1307 = vpop.f32.mrb[0].mxu0
  %1308 = vmatprep.mubr.f32.mxu0 0.0
  %v1309 = vand.u32 %v30, 4294901760
  %1310 = vmatmul.mubr.f32.gmra.mrb[0].mxu0 %v1309
  %v1311 = vpop.f32.mrb[0].mxu0
  %v1312 = vadd.f32 %v1135, %v1311
  %v1313 = vpop.f32.mrb[0].mxu0
  %1314 = vmatprep.mubr.f32.mxu0 0.0
  %v1315 = vand.u32 %v31, 4294901760
  %1316 = vmatmul.mubr.f32.gmra.mrb[0].mxu0 %v1315
  %v1317 = vpop.f32.mrb[0].mxu0
  %v1318 = vadd.f32 %v1141, %v1317
  %v1319 = vpop.f32.mrb[0].mxu0
  %1320 = vmatprep.mubr.f32.mxu0 0.0
  %v1321 = vand.u32 %v32, 4294901760
  %1322 = vmatmul.mubr.f32.gmra.mrb[0].mxu0 %v1321
  %v1323 = vpop.f32.mrb[0].mxu0
  %v1324 = vadd.f32 %v1147, %v1323
  %v1325 = vpop.f32.mrb[0].mxu0
  %1326 = vmatprep.mubr.f32.mxu0 0.0
  %v1327 = vand.u32 %v33, 4294901760
  %1328 = vmatmul.mubr.f32.gmra.mrb[0].mxu0 %v1327
  %v1329 = vpop.f32.mrb[0].mxu0
  %v1330 = vadd.f32 %v1153, %v1329
  %v1331 = vpop.f32.mrb[0].mxu0
  %1332 = vmatprep.mubr.f32.mxu0 0.0
  %v1333 = vand.u32 %v34, 4294901760
  %1334 = vmatmul.mubr.f32.gmra.mrb[0].mxu0 %v1333
  %v1335 = vpop.f32.mrb[0].mxu0
  %v1336 = vadd.f32 %v1159, %v1335
  %v1337 = vpop.f32.mrb[0].mxu0
  %1338 = vmatprep.mubr.f32.mxu0 0.0
  %v1339 = vand.u32 %v35, 4294901760
  %1340 = vmatmul.mubr.f32.gmra.mrb[0].mxu0 %v1339
  %v1341 = vpop.f32.mrb[0].mxu0
  %v1342 = vadd.f32 %v1165, %v1341
  %v1343 = vpop.f32.mrb[0].mxu0
  %1344 = vdwg.mxu0
  %v1345 = vmax.f32 %v1252, 0.0
  %v1346 = vmax.f32 %v1258, 0.0
  %v1347 = vmax.f32 %v1264, 0.0
  %v1348 = vmax.f32 %v1270, 0.0
  %v1349 = vmax.f32 %v1276, 0.0
  %v1350 = vmax.f32 %v1282, 0.0
  %v1351 = vmax.f32 %v1288, 0.0
  %v1352 = vmax.f32 %v1294, 0.0
  %v1353 = vmax.f32 %v1300, 0.0
  %v1354 = vmax.f32 %v1306, 0.0
  %v1355 = vmax.f32 %v1312, 0.0
  %v1356 = vmax.f32 %v1318, 0.0
  %v1357 = vmax.f32 %v1324, 0.0
  %v1358 = vmax.f32 %v1330, 0.0
  %v1359 = vmax.f32 %v1336, 0.0
  %v1360 = vmax.f32 %v1342, 0.0
  %v1361 = vld [vmem:[%s3] sm:$0xff]
  %v1362 = vld [vmem:[%s3 + $0x8] sm:$0xff]
  %v1363 = vld [vmem:[%s3 + $0x10] sm:$0xff]
  %v1364 = vld [vmem:[%s3 + $0x18] sm:$0xff]
  %v1365 = vld [vmem:[%s3 + $0x20] sm:$0xff]
  %v1366 = vld [vmem:[%s3 + $0x28] sm:$0xff]
  %v1367 = vld [vmem:[%s3 + $0x30] sm:$0xff]
  %v1368 = vld [vmem:[%s3 + $0x38] sm:$0xff]
  %v1369 = vld [vmem:[%s3 + $0x40] sm:$0xff]
  %v1370 = vld [vmem:[%s3 + $0x48] sm:$0xff]
  %v1371 = vld [vmem:[%s3 + $0x50] sm:$0xff]
  %v1372 = vld [vmem:[%s3 + $0x58] sm:$0xff]
  %v1373 = vld [vmem:[%s3 + $0x60] sm:$0xff]
  %v1374 = vld [vmem:[%s3 + $0x68] sm:$0xff]
  %v1375 = vld [vmem:[%s3 + $0x70] sm:$0xff]
  %v1376 = vld [vmem:[%s3 + $0x78] sm:$0xff]
  %v1377 = vld [vmem:[%s4] sm:$0x1]
  %v1379 = vlaneseq
  %v1380 = vshrl.u32 %v1379, 7
  %v1381 = vsub.s32 0, %v1380
  %v1382 = vrot.slane %v1377, %v1381
  %1384 = vmatprep.subr.mxu0 0.0
  %v1385 = vand.u32 %v1361, 4294901760
  %1386 = vmatpush1.msra.mxu0 %v1385
  %1387 = vmatprep.subr.mxu0 0.0
  %v1388 = vand.u32 %v1362, 4294901760
  %1389 = vmatpush1.msra.mxu0 %v1388
  %1390 = vmatprep.subr.mxu0 0.0
  %v1391 = vand.u32 %v1363, 4294901760
  %1392 = vmatpush1.msra.mxu0 %v1391
  %1393 = vmatprep.subr.mxu0 0.0
  %v1394 = vand.u32 %v1364, 4294901760
  %1395 = vmatpush1.msra.mxu0 %v1394
  %1396 = vmatprep.subr.mxu0 0.0
  %v1397 = vand.u32 %v1365, 4294901760
  %1398 = vmatpush1.msra.mxu0 %v1397
  %1399 = vmatprep.subr.mxu0 0.0
  %v1400 = vand.u32 %v1366, 4294901760
  %1401 = vmatpush1.msra.mxu0 %v1400
  %1402 = vmatprep.subr.mxu0 0.0
  %v1403 = vand.u32 %v1367, 4294901760
  %1404 = vmatpush1.msra.mxu0 %v1403
  %1405 = vmatprep.subr.mxu0 0.0
  %v1406 = vand.u32 %v1368, 4294901760
  %1407 = vmatpush1.msra.mxu0 %v1406
  %1408 = vmatprep.subr.mxu0 0.0
  %v1409 = vand.u32 %v1369, 4294901760
  %1410 = vmatpush1.msra.mxu0 %v1409
  %1411 = vmatprep.subr.mxu0 0.0
  %v1412 = vand.u32 %v1370, 4294901760
  %1413 = vmatpush1.msra.mxu0 %v1412
  %1414 = vmatprep.subr.mxu0 0.0
  %v1415 = vand.u32 %v1371, 4294901760
  %1416 = vmatpush1.msra.mxu0 %v1415
  %1417 = vmatprep.subr.mxu0 0.0
  %v1418 = vand.u32 %v1372, 4294901760
  %1419 = vmatpush1.msra.mxu0 %v1418
  %1420 = vmatprep.subr.mxu0 0.0
  %v1421 = vand.u32 %v1373, 4294901760
  %1422 = vmatpush1.msra.mxu0 %v1421
  %1423 = vmatprep.subr.mxu0 0.0
  %v1424 = vand.u32 %v1374, 4294901760
  %1425 = vmatpush1.msra.mxu0 %v1424
  %1426 = vmatprep.subr.mxu0 0.0
  %v1427 = vand.u32 %v1375, 4294901760
  %1428 = vmatpush1.msra.mxu0 %v1427
  %1429 = vmatprep.subr.mxu0 0.0
  %v1430 = vand.u32 %v1376, 4294901760
  %1431 = vmatpush1.msra.mxu0 %v1430
  %1432 = vmatprep.subr.mxu0 0.0
  %1433 = vmatpush1.msra.mxu0 0.0
  %1434 = vmatprep.subr.mxu0 0.0
  %1435 = vmatpush1.msra.mxu0 0.0
  %1436 = vmatprep.subr.mxu0 0.0
  %1437 = vmatpush1.msra.mxu0 0.0
  %1438 = vmatprep.subr.mxu0 0.0
  %1439 = vmatpush1.msra.mxu0 0.0
  %1440 = vmatprep.subr.mxu0 0.0
  %1441 = vmatpush1.msra.mxu0 0.0
  %1442 = vmatprep.subr.mxu0 0.0
  %1443 = vmatpush1.msra.mxu0 0.0
  %1444 = vmatprep.subr.mxu0 0.0
  %1445 = vmatpush1.msra.mxu0 0.0
  %1446 = vmatprep.subr.mxu0 0.0
  %1447 = vmatpush1.msra.mxu0 0.0
  %1448 = vmatprep.subr.mxu0 0.0
  %1449 = vmatpush1.msra.mxu0 0.0
  %1450 = vmatprep.subr.mxu0 0.0
  %1451 = vmatpush1.msra.mxu0 0.0
  %1452 = vmatprep.subr.mxu0 0.0
  %1453 = vmatpush1.msra.mxu0 0.0
  %1454 = vmatprep.subr.mxu0 0.0
  %1455 = vmatpush1.msra.mxu0 0.0
  %1456 = vmatprep.subr.mxu0 0.0
  %1457 = vmatpush1.msra.mxu0 0.0
  %1458 = vmatprep.subr.mxu0 0.0
  %1459 = vmatpush1.msra.mxu0 0.0
  %1460 = vmatprep.subr.mxu0 0.0
  %1461 = vmatpush1.msra.mxu0 0.0
  %1462 = vmatprep.subr.mxu0 0.0
  %1463 = vmatpush1.msra.mxu0 0.0
  %1464 = vmatprep.mubr.f32.mxu0 0.0
  %v1465 = vand.u32 %v1345, 4294901760
  %v1466 = vsub.f32 %v1345, %v1465
  %v1467 = vand.u32 %v1466, 4294901760
  %v1468 = vsub.f32 %v1466, %v1467
  %v1469 = vand.u32 %v1468, 4294901760
  %1470 = vmatmul.mubr.f32.gmra.mrb[0].mxu0 %v1469
  %v1471 = vpop.f32.mrb[0].mxu0
  %v1472 = vadd.f32 %v1382, %v1471
  %v1473 = vpop.f32.mrb[0].mxu0
  %1474 = vmatprep.mubr.f32.mxu0 0.0
  %v1475 = vand.u32 %v1346, 4294901760
  %v1476 = vsub.f32 %v1346, %v1475
  %v1477 = vand.u32 %v1476, 4294901760
  %v1478 = vsub.f32 %v1476, %v1477
  %v1479 = vand.u32 %v1478, 4294901760
  %1480 = vmatmul.mubr.f32.gmra.mrb[0].mxu0 %v1479
  %v1481 = vpop.f32.mrb[0].mxu0
  %v1482 = vadd.f32 %v1382, %v1481
  %v1483 = vpop.f32.mrb[0].mxu0
  %1484 = vmatprep.mubr.f32.mxu0 0.0
  %v1485 = vand.u32 %v1347, 4294901760
  %v1486 = vsub.f32 %v1347, %v1485
  %v1487 = vand.u32 %v1486, 4294901760
  %v1488 = vsub.f32 %v1486, %v1487
  %v1489 = vand.u32 %v1488, 4294901760
  %1490 = vmatmul.mubr.f32.gmra.mrb[0].mxu0 %v1489
  %v1491 = vpop.f32.mrb[0].mxu0
  %v1492 = vadd.f32 %v1382, %v1491
  %v1493 = vpop.f32.mrb[0].mxu0
  %1494 = vmatprep.mubr.f32.mxu0 0.0
  %v1495 = vand.u32 %v1348, 4294901760
  %v1496 = vsub.f32 %v1348, %v1495
  %v1497 = vand.u32 %v1496, 4294901760
  %v1498 = vsub.f32 %v1496, %v1497
  %v1499 = vand.u32 %v1498, 4294901760
  %1500 = vmatmul.mubr.f32.gmra.mrb[0].mxu0 %v1499
  %v1501 = vpop.f32.mrb[0].mxu0
  %v1502 = vadd.f32 %v1382, %v1501
  %v1503 = vpop.f32.mrb[0].mxu0
  %1504 = vmatprep.mubr.f32.mxu0 0.0
  %v1505 = vand.u32 %v1349, 4294901760
  %v1506 = vsub.f32 %v1349, %v1505
  %v1507 = vand.u32 %v1506, 4294901760
  %v1508 = vsub.f32 %v1506, %v1507
  %v1509 = vand.u32 %v1508, 4294901760
  %1510 = vmatmul.mubr.f32.gmra.mrb[0].mxu0 %v1509
  %v1511 = vpop.f32.mrb[0].mxu0
  %v1512 = vadd.f32 %v1382, %v1511
  %v1513 = vpop.f32.mrb[0].mxu0
  %1514 = vmatprep.mubr.f32.mxu0 0.0
  %v1515 = vand.u32 %v1350, 4294901760
  %v1516 = vsub.f32 %v1350, %v1515
  %v1517 = vand.u32 %v1516, 4294901760
  %v1518 = vsub.f32 %v1516, %v1517
  %v1519 = vand.u32 %v1518, 4294901760
  %1520 = vmatmul.mubr.f32.gmra.mrb[0].mxu0 %v1519
  %v1521 = vpop.f32.mrb[0].mxu0
  %v1522 = vadd.f32 %v1382, %v1521
  %v1523 = vpop.f32.mrb[0].mxu0
  %1524 = vmatprep.mubr.f32.mxu0 0.0
  %v1525 = vand.u32 %v1351, 4294901760
  %v1526 = vsub.f32 %v1351, %v1525
  %v1527 = vand.u32 %v1526, 4294901760
  %v1528 = vsub.f32 %v1526, %v1527
  %v1529 = vand.u32 %v1528, 4294901760
  %1530 = vmatmul.mubr.f32.gmra.mrb[0].mxu0 %v1529
  %v1531 = vpop.f32.mrb[0].mxu0
  %v1532 = vadd.f32 %v1382, %v1531
  %v1533 = vpop.f32.mrb[0].mxu0
  %1534 = vmatprep.mubr.f32.mxu0 0.0
  %v1535 = vand.u32 %v1352, 4294901760
  %v1536 = vsub.f32 %v1352, %v1535
  %v1537 = vand.u32 %v1536, 4294901760
  %v1538 = vsub.f32 %v1536, %v1537
  %v1539 = vand.u32 %v1538, 4294901760
  %1540 = vmatmul.mubr.f32.gmra.mrb[0].mxu0 %v1539
  %v1541 = vpop.f32.mrb[0].mxu0
  %v1542 = vadd.f32 %v1382, %v1541
  %v1543 = vpop.f32.mrb[0].mxu0
  %1544 = vmatprep.mubr.f32.mxu0 0.0
  %v1545 = vand.u32 %v1353, 4294901760
  %v1546 = vsub.f32 %v1353, %v1545
  %v1547 = vand.u32 %v1546, 4294901760
  %v1548 = vsub.f32 %v1546, %v1547
  %v1549 = vand.u32 %v1548, 4294901760
  %1550 = vmatmul.mubr.f32.gmra.mrb[0].mxu0 %v1549
  %v1551 = vpop.f32.mrb[0].mxu0
  %v1552 = vadd.f32 %v1382, %v1551
  %v1553 = vpop.f32.mrb[0].mxu0
  %1554 = vmatprep.mubr.f32.mxu0 0.0
  %v1555 = vand.u32 %v1354, 4294901760
  %v1556 = vsub.f32 %v1354, %v1555
  %v1557 = vand.u32 %v1556, 4294901760
  %v1558 = vsub.f32 %v1556, %v1557
  %v1559 = vand.u32 %v1558, 4294901760
  %1560 = vmatmul.mubr.f32.gmra.mrb[0].mxu0 %v1559
  %v1561 = vpop.f32.mrb[0].mxu0
  %v1562 = vadd.f32 %v1382, %v1561
  %v1563 = vpop.f32.mrb[0].mxu0
  %1564 = vmatprep.mubr.f32.mxu0 0.0
  %v1565 = vand.u32 %v1355, 4294901760
  %v1566 = vsub.f32 %v1355, %v1565
  %v1567 = vand.u32 %v1566, 4294901760
  %v1568 = vsub.f32 %v1566, %v1567
  %v1569 = vand.u32 %v1568, 4294901760
  %1570 = vmatmul.mubr.f32.gmra.mrb[0].mxu0 %v1569
  %v1571 = vpop.f32.mrb[0].mxu0
  %v1572 = vadd.f32 %v1382, %v1571
  %v1573 = vpop.f32.mrb[0].mxu0
  %1574 = vmatprep.mubr.f32.mxu0 0.0
  %v1575 = vand.u32 %v1356, 4294901760
  %v1576 = vsub.f32 %v1356, %v1575
  %v1577 = vand.u32 %v1576, 4294901760
  %v1578 = vsub.f32 %v1576, %v1577
  %v1579 = vand.u32 %v1578, 4294901760
  %1580 = vmatmul.mubr.f32.gmra.mrb[0].mxu0 %v1579
  %v1581 = vpop.f32.mrb[0].mxu0
  %v1582 = vadd.f32 %v1382, %v1581
  %v1583 = vpop.f32.mrb[0].mxu0
  %1584 = vmatprep.mubr.f32.mxu0 0.0
  %v1585 = vand.u32 %v1357, 4294901760
  %v1586 = vsub.f32 %v1357, %v1585
  %v1587 = vand.u32 %v1586, 4294901760
  %v1588 = vsub.f32 %v1586, %v1587
  %v1589 = vand.u32 %v1588, 4294901760
  %1590 = vmatmul.mubr.f32.gmra.mrb[0].mxu0 %v1589
  %v1591 = vpop.f32.mrb[0].mxu0
  %v1592 = vadd.f32 %v1382, %v1591
  %v1593 = vpop.f32.mrb[0].mxu0
  %1594 = vmatprep.mubr.f32.mxu0 0.0
  %v1595 = vand.u32 %v1358, 4294901760
  %v1596 = vsub.f32 %v1358, %v1595
  %v1597 = vand.u32 %v1596, 4294901760
  %v1598 = vsub.f32 %v1596, %v1597
  %v1599 = vand.u32 %v1598, 4294901760
  %1600 = vmatmul.mubr.f32.gmra.mrb[0].mxu0 %v1599
  %v1601 = vpop.f32.mrb[0].mxu0
  %v1602 = vadd.f32 %v1382, %v1601
  %v1603 = vpop.f32.mrb[0].mxu0
  %1604 = vmatprep.mubr.f32.mxu0 0.0
  %v1605 = vand.u32 %v1359, 4294901760
  %v1606 = vsub.f32 %v1359, %v1605
  %v1607 = vand.u32 %v1606, 4294901760
  %v1608 = vsub.f32 %v1606, %v1607
  %v1609 = vand.u32 %v1608, 4294901760
  %1610 = vmatmul.mubr.f32.gmra.mrb[0].mxu0 %v1609
  %v1611 = vpop.f32.mrb[0].mxu0
  %v1612 = vadd.f32 %v1382, %v1611
  %v1613 = vpop.f32.mrb[0].mxu0
  %1614 = vmatprep.mubr.f32.mxu0 0.0
  %v1615 = vand.u32 %v1360, 4294901760
  %v1616 = vsub.f32 %v1360, %v1615
  %v1617 = vand.u32 %v1616, 4294901760
  %v1618 = vsub.f32 %v1616, %v1617
  %v1619 = vand.u32 %v1618, 4294901760
  %1620 = vmatmul.mubr.f32.gmra.mrb[0].mxu0 %v1619
  %v1621 = vpop.f32.mrb[0].mxu0
  %v1622 = vadd.f32 %v1382, %v1621
  %v1623 = vpop.f32.mrb[0].mxu0
  %1624 = vdwg.mxu0
  %1625 = vmatprep.subr.mxu0 0.0
  %v1626 = vand.u32 %v1361, 4294901760
  %v1627 = vsub.f32 %v1361, %v1626
  %v1628 = vand.u32 %v1627, 4294901760
  %v1629 = vsub.f32 %v1627, %v1628
  %v1630 = vand.u32 %v1629, 4294901760
  %1631 = vmatpush1.msra.mxu0 %v1630
  %1632 = vmatprep.subr.mxu0 0.0
  %v1633 = vand.u32 %v1362, 4294901760
  %v1634 = vsub.f32 %v1362, %v1633
  %v1635 = vand.u32 %v1634, 4294901760
  %v1636 = vsub.f32 %v1634, %v1635
  %v1637 = vand.u32 %v1636, 4294901760
  %1638 = vmatpush1.msra.mxu0 %v1637
  %1639 = vmatprep.subr.mxu0 0.0
  %v1640 = vand.u32 %v1363, 4294901760
  %v1641 = vsub.f32 %v1363, %v1640
  %v1642 = vand.u32 %v1641, 4294901760
  %v1643 = vsub.f32 %v1641, %v1642
  %v1644 = vand.u32 %v1643, 4294901760
  %1645 = vmatpush1.msra.mxu0 %v1644
  %1646 = vmatprep.subr.mxu0 0.0
  %v1647 = vand.u32 %v1364, 4294901760
  %v1648 = vsub.f32 %v1364, %v1647
  %v1649 = vand.u32 %v1648, 4294901760
  %v1650 = vsub.f32 %v1648, %v1649
  %v1651 = vand.u32 %v1650, 4294901760
  %1652 = vmatpush1.msra.mxu0 %v1651
  %1653 = vmatprep.subr.mxu0 0.0
  %v1654 = vand.u32 %v1365, 4294901760
  %v1655 = vsub.f32 %v1365, %v1654
  %v1656 = vand.u32 %v1655, 4294901760
  %v1657 = vsub.f32 %v1655, %v1656
  %v1658 = vand.u32 %v1657, 4294901760
  %1659 = vmatpush1.msra.mxu0 %v1658
  %1660 = vmatprep.subr.mxu0 0.0
  %v1661 = vand.u32 %v1366, 4294901760
  %v1662 = vsub.f32 %v1366, %v1661
  %v1663 = vand.u32 %v1662, 4294901760
  %v1664 = vsub.f32 %v1662, %v1663
  %v1665 = vand.u32 %v1664, 4294901760
  %1666 = vmatpush1.msra.mxu0 %v1665
  %1667 = vmatprep.subr.mxu0 0.0
  %v1668 = vand.u32 %v1367, 4294901760
  %v1669 = vsub.f32 %v1367, %v1668
  %v1670 = vand.u32 %v1669, 4294901760
  %v1671 = vsub.f32 %v1669, %v1670
  %v1672 = vand.u32 %v1671, 4294901760
  %1673 = vmatpush1.msra.mxu0 %v1672
  %1674 = vmatprep.subr.mxu0 0.0
  %v1675 = vand.u32 %v1368, 4294901760
  %v1676 = vsub.f32 %v1368, %v1675
  %v1677 = vand.u32 %v1676, 4294901760
  %v1678 = vsub.f32 %v1676, %v1677
  %v1679 = vand.u32 %v1678, 4294901760
  %1680 = vmatpush1.msra.mxu0 %v1679
  %1681 = vmatprep.subr.mxu0 0.0
  %v1682 = vand.u32 %v1369, 4294901760
  %v1683 = vsub.f32 %v1369, %v1682
  %v1684 = vand.u32 %v1683, 4294901760
  %v1685 = vsub.f32 %v1683, %v1684
  %v1686 = vand.u32 %v1685, 4294901760
  %1687 = vmatpush1.msra.mxu0 %v1686
  %1688 = vmatprep.subr.mxu0 0.0
  %v1689 = vand.u32 %v1370, 4294901760
  %v1690 = vsub.f32 %v1370, %v1689
  %v1691 = vand.u32 %v1690, 4294901760
  %v1692 = vsub.f32 %v1690, %v1691
  %v1693 = vand.u32 %v1692, 4294901760
  %1694 = vmatpush1.msra.mxu0 %v1693
  %1695 = vmatprep.subr.mxu0 0.0
  %v1696 = vand.u32 %v1371, 4294901760
  %v1697 = vsub.f32 %v1371, %v1696
  %v1698 = vand.u32 %v1697, 4294901760
  %v1699 = vsub.f32 %v1697, %v1698
  %v1700 = vand.u32 %v1699, 4294901760
  %1701 = vmatpush1.msra.mxu0 %v1700
  %1702 = vmatprep.subr.mxu0 0.0
  %v1703 = vand.u32 %v1372, 4294901760
  %v1704 = vsub.f32 %v1372, %v1703
  %v1705 = vand.u32 %v1704, 4294901760
  %v1706 = vsub.f32 %v1704, %v1705
  %v1707 = vand.u32 %v1706, 4294901760
  %1708 = vmatpush1.msra.mxu0 %v1707
  %1709 = vmatprep.subr.mxu0 0.0
  %v1710 = vand.u32 %v1373, 4294901760
  %v1711 = vsub.f32 %v1373, %v1710
  %v1712 = vand.u32 %v1711, 4294901760
  %v1713 = vsub.f32 %v1711, %v1712
  %v1714 = vand.u32 %v1713, 4294901760
  %1715 = vmatpush1.msra.mxu0 %v1714
  %1716 = vmatprep.subr.mxu0 0.0
  %v1717 = vand.u32 %v1374, 4294901760
  %v1718 = vsub.f32 %v1374, %v1717
  %v1719 = vand.u32 %v1718, 4294901760
  %v1720 = vsub.f32 %v1718, %v1719
  %v1721 = vand.u32 %v1720, 4294901760
  %1722 = vmatpush1.msra.mxu0 %v1721
  %1723 = vmatprep.subr.mxu0 0.0
  %v1724 = vand.u32 %v1375, 4294901760
  %v1725 = vsub.f32 %v1375, %v1724
  %v1726 = vand.u32 %v1725, 4294901760
  %v1727 = vsub.f32 %v1725, %v1726
  %v1728 = vand.u32 %v1727, 4294901760
  %1729 = vmatpush1.msra.mxu0 %v1728
  %1730 = vmatprep.subr.mxu0 0.0
  %v1731 = vand.u32 %v1376, 4294901760
  %v1732 = vsub.f32 %v1376, %v1731
  %v1733 = vand.u32 %v1732, 4294901760
  %v1734 = vsub.f32 %v1732, %v1733
  %v1735 = vand.u32 %v1734, 4294901760
  %1736 = vmatpush1.msra.mxu0 %v1735
  %1737 = vmatprep.subr.mxu0 0.0
  %1738 = vmatpush1.msra.mxu0 0.0
  %1739 = vmatprep.subr.mxu0 0.0
  %1740 = vmatpush1.msra.mxu0 0.0
  %1741 = vmatprep.subr.mxu0 0.0
  %1742 = vmatpush1.msra.mxu0 0.0
  %1743 = vmatprep.subr.mxu0 0.0
  %1744 = vmatpush1.msra.mxu0 0.0
  %1745 = vmatprep.subr.mxu0 0.0
  %1746 = vmatpush1.msra.mxu0 0.0
  %1747 = vmatprep.subr.mxu0 0.0
  %1748 = vmatpush1.msra.mxu0 0.0
  %1749 = vmatprep.subr.mxu0 0.0
  %1750 = vmatpush1.msra.mxu0 0.0
  %1751 = vmatprep.subr.mxu0 0.0
  %1752 = vmatpush1.msra.mxu0 0.0
  %1753 = vmatprep.subr.mxu0 0.0
  %1754 = vmatpush1.msra.mxu0 0.0
  %1755 = vmatprep.subr.mxu0 0.0
  %1756 = vmatpush1.msra.mxu0 0.0
  %1757 = vmatprep.subr.mxu0 0.0
  %1758 = vmatpush1.msra.mxu0 0.0
  %1759 = vmatprep.subr.mxu0 0.0
  %1760 = vmatpush1.msra.mxu0 0.0
  %1761 = vmatprep.subr.mxu0 0.0
  %1762 = vmatpush1.msra.mxu0 0.0
  %1763 = vmatprep.subr.mxu0 0.0
  %1764 = vmatpush1.msra.mxu0 0.0
  %1765 = vmatprep.subr.mxu0 0.0
  %1766 = vmatpush1.msra.mxu0 0.0
  %1767 = vmatprep.subr.mxu0 0.0
  %1768 = vmatpush1.msra.mxu0 0.0
  %1769 = vmatprep.mubr.f32.mxu0 0.0
  %v1770 = vand.u32 %v1345, 4294901760
  %1771 = vmatmul.mubr.f32.gmra.mrb[0].mxu0 %v1770
  %v1772 = vpop.f32.mrb[0].mxu0
  %v1773 = vadd.f32 %v1472, %v1772
  %v1774 = vpop.f32.mrb[0].mxu0
  %1775 = vmatprep.mubr.f32.mxu0 0.0
  %v1776 = vand.u32 %v1346, 4294901760
  %1777 = vmatmul.mubr.f32.gmra.mrb[0].mxu0 %v1776
  %v1778 = vpop.f32.mrb[0].mxu0
  %v1779 = vadd.f32 %v1482, %v1778
  %v1780 = vpop.f32.mrb[0].mxu0
  %1781 = vmatprep.mubr.f32.mxu0 0.0
  %v1782 = vand.u32 %v1347, 4294901760
  %1783 = vmatmul.mubr.f32.gmra.mrb[0].mxu0 %v1782
  %v1784 = vpop.f32.mrb[0].mxu0
  %v1785 = vadd.f32 %v1492, %v1784
  %v1786 = vpop.f32.mrb[0].mxu0
  %1787 = vmatprep.mubr.f32.mxu0 0.0
  %v1788 = vand.u32 %v1348, 4294901760
  %1789 = vmatmul.mubr.f32.gmra.mrb[0].mxu0 %v1788
  %v1790 = vpop.f32.mrb[0].mxu0
  %v1791 = vadd.f32 %v1502, %v1790
  %v1792 = vpop.f32.mrb[0].mxu0
  %1793 = vmatprep.mubr.f32.mxu0 0.0
  %v1794 = vand.u32 %v1349, 4294901760
  %1795 = vmatmul.mubr.f32.gmra.mrb[0].mxu0 %v1794
  %v1796 = vpop.f32.mrb[0].mxu0
  %v1797 = vadd.f32 %v1512, %v1796
  %v1798 = vpop.f32.mrb[0].mxu0
  %1799 = vmatprep.mubr.f32.mxu0 0.0
  %v1800 = vand.u32 %v1350, 4294901760
  %1801 = vmatmul.mubr.f32.gmra.mrb[0].mxu0 %v1800
  %v1802 = vpop.f32.mrb[0].mxu0
  %v1803 = vadd.f32 %v1522, %v1802
  %v1804 = vpop.f32.mrb[0].mxu0
  %1805 = vmatprep.mubr.f32.mxu0 0.0
  %v1806 = vand.u32 %v1351, 4294901760
  %1807 = vmatmul.mubr.f32.gmra.mrb[0].mxu0 %v1806
  %v1808 = vpop.f32.mrb[0].mxu0
  %v1809 = vadd.f32 %v1532, %v1808
  %v1810 = vpop.f32.mrb[0].mxu0
  %1811 = vmatprep.mubr.f32.mxu0 0.0
  %v1812 = vand.u32 %v1352, 4294901760
  %1813 = vmatmul.mubr.f32.gmra.mrb[0].mxu0 %v1812
  %v1814 = vpop.f32.mrb[0].mxu0
  %v1815 = vadd.f32 %v1542, %v1814
  %v1816 = vpop.f32.mrb[0].mxu0
  %1817 = vmatprep.mubr.f32.mxu0 0.0
  %v1818 = vand.u32 %v1353, 4294901760
  %1819 = vmatmul.mubr.f32.gmra.mrb[0].mxu0 %v1818
  %v1820 = vpop.f32.mrb[0].mxu0
  %v1821 = vadd.f32 %v1552, %v1820
  %v1822 = vpop.f32.mrb[0].mxu0
  %1823 = vmatprep.mubr.f32.mxu0 0.0
  %v1824 = vand.u32 %v1354, 4294901760
  %1825 = vmatmul.mubr.f32.gmra.mrb[0].mxu0 %v1824
  %v1826 = vpop.f32.mrb[0].mxu0
  %v1827 = vadd.f32 %v1562, %v1826
  %v1828 = vpop.f32.mrb[0].mxu0
  %1829 = vmatprep.mubr.f32.mxu0 0.0
  %v1830 = vand.u32 %v1355, 4294901760
  %1831 = vmatmul.mubr.f32.gmra.mrb[0].mxu0 %v1830
  %v1832 = vpop.f32.mrb[0].mxu0
  %v1833 = vadd.f32 %v1572, %v1832
  %v1834 = vpop.f32.mrb[0].mxu0
  %1835 = vmatprep.mubr.f32.mxu0 0.0
  %v1836 = vand.u32 %v1356, 4294901760
  %1837 = vmatmul.mubr.f32.gmra.mrb[0].mxu0 %v1836
  %v1838 = vpop.f32.mrb[0].mxu0
  %v1839 = vadd.f32 %v1582, %v1838
  %v1840 = vpop.f32.mrb[0].mxu0
  %1841 = vmatprep.mubr.f32.mxu0 0.0
  %v1842 = vand.u32 %v1357, 4294901760
  %1843 = vmatmul.mubr.f32.gmra.mrb[0].mxu0 %v1842
  %v1844 = vpop.f32.mrb[0].mxu0
  %v1845 = vadd.f32 %v1592, %v1844
  %v1846 = vpop.f32.mrb[0].mxu0
  %1847 = vmatprep.mubr.f32.mxu0 0.0
  %v1848 = vand.u32 %v1358, 4294901760
  %1849 = vmatmul.mubr.f32.gmra.mrb[0].mxu0 %v1848
  %v1850 = vpop.f32.mrb[0].mxu0
  %v1851 = vadd.f32 %v1602, %v1850
  %v1852 = vpop.f32.mrb[0].mxu0
  %1853 = vmatprep.mubr.f32.mxu0 0.0
  %v1854 = vand.u32 %v1359, 4294901760
  %1855 = vmatmul.mubr.f32.gmra.mrb[0].mxu0 %v1854
  %v1856 = vpop.f32.mrb[0].mxu0
  %v1857 = vadd.f32 %v1612, %v1856
  %v1858 = vpop.f32.mrb[0].mxu0
  %1859 = vmatprep.mubr.f32.mxu0 0.0
  %v1860 = vand.u32 %v1360, 4294901760
  %1861 = vmatmul.mubr.f32.gmra.mrb[0].mxu0 %v1860
  %v1862 = vpop.f32.mrb[0].mxu0
  %v1863 = vadd.f32 %v1622, %v1862
  %v1864 = vpop.f32.mrb[0].mxu0
  %1865 = vdwg.mxu0
  %1866 = vmatprep.subr.mxu0 0.0
  %v1867 = vand.u32 %v1361, 4294901760
  %v1868 = vsub.f32 %v1361, %v1867
  %1869 = vmatpush1.msra.mxu0 %v1868
  %1870 = vmatprep.subr.mxu0 0.0
  %v1871 = vand.u32 %v1362, 4294901760
  %v1872 = vsub.f32 %v1362, %v1871
  %1873 = vmatpush1.msra.mxu0 %v1872
  %1874 = vmatprep.subr.mxu0 0.0
  %v1875 = vand.u32 %v1363, 4294901760
  %v1876 = vsub.f32 %v1363, %v1875
  %1877 = vmatpush1.msra.mxu0 %v1876
  %1878 = vmatprep.subr.mxu0 0.0
  %v1879 = vand.u32 %v1364, 4294901760
  %v1880 = vsub.f32 %v1364, %v1879
  %1881 = vmatpush1.msra.mxu0 %v1880
  %1882 = vmatprep.subr.mxu0 0.0
  %v1883 = vand.u32 %v1365, 4294901760
  %v1884 = vsub.f32 %v1365, %v1883
  %1885 = vmatpush1.msra.mxu0 %v1884
  %1886 = vmatprep.subr.mxu0 0.0
  %v1887 = vand.u32 %v1366, 4294901760
  %v1888 = vsub.f32 %v1366, %v1887
  %1889 = vmatpush1.msra.mxu0 %v1888
  %1890 = vmatprep.subr.mxu0 0.0
  %v1891 = vand.u32 %v1367, 4294901760
  %v1892 = vsub.f32 %v1367, %v1891
  %1893 = vmatpush1.msra.mxu0 %v1892
  %1894 = vmatprep.subr.mxu0 0.0
  %v1895 = vand.u32 %v1368, 4294901760
  %v1896 = vsub.f32 %v1368, %v1895
  %1897 = vmatpush1.msra.mxu0 %v1896
  %1898 = vmatprep.subr.mxu0 0.0
  %v1899 = vand.u32 %v1369, 4294901760
  %v1900 = vsub.f32 %v1369, %v1899
  %1901 = vmatpush1.msra.mxu0 %v1900
  %1902 = vmatprep.subr.mxu0 0.0
  %v1903 = vand.u32 %v1370, 4294901760
  %v1904 = vsub.f32 %v1370, %v1903
  %1905 = vmatpush1.msra.mxu0 %v1904
  %1906 = vmatprep.subr.mxu0 0.0
  %v1907 = vand.u32 %v1371, 4294901760
  %v1908 = vsub.f32 %v1371, %v1907
  %1909 = vmatpush1.msra.mxu0 %v1908
  %1910 = vmatprep.subr.mxu0 0.0
  %v1911 = vand.u32 %v1372, 4294901760
  %v1912 = vsub.f32 %v1372, %v1911
  %1913 = vmatpush1.msra.mxu0 %v1912
  %1914 = vmatprep.subr.mxu0 0.0
  %v1915 = vand.u32 %v1373, 4294901760
  %v1916 = vsub.f32 %v1373, %v1915
  %1917 = vmatpush1.msra.mxu0 %v1916
  %1918 = vmatprep.subr.mxu0 0.0
  %v1919 = vand.u32 %v1374, 4294901760
  %v1920 = vsub.f32 %v1374, %v1919
  %1921 = vmatpush1.msra.mxu0 %v1920
  %1922 = vmatprep.subr.mxu0 0.0
  %v1923 = vand.u32 %v1375, 4294901760
  %v1924 = vsub.f32 %v1375, %v1923
  %1925 = vmatpush1.msra.mxu0 %v1924
  %1926 = vmatprep.subr.mxu0 0.0
  %v1927 = vand.u32 %v1376, 4294901760
  %v1928 = vsub.f32 %v1376, %v1927
  %1929 = vmatpush1.msra.mxu0 %v1928
  %1930 = vmatprep.subr.mxu0 0.0
  %1931 = vmatpush1.msra.mxu0 0.0
  %1932 = vmatprep.subr.mxu0 0.0
  %1933 = vmatpush1.msra.mxu0 0.0
  %1934 = vmatprep.subr.mxu0 0.0
  %1935 = vmatpush1.msra.mxu0 0.0
  %1936 = vmatprep.subr.mxu0 0.0
  %1937 = vmatpush1.msra.mxu0 0.0
  %1938 = vmatprep.subr.mxu0 0.0
  %1939 = vmatpush1.msra.mxu0 0.0
  %1940 = vmatprep.subr.mxu0 0.0
  %1941 = vmatpush1.msra.mxu0 0.0
  %1942 = vmatprep.subr.mxu0 0.0
  %1943 = vmatpush1.msra.mxu0 0.0
  %1944 = vmatprep.subr.mxu0 0.0
  %1945 = vmatpush1.msra.mxu0 0.0
  %1946 = vmatprep.subr.mxu0 0.0
  %1947 = vmatpush1.msra.mxu0 0.0
  %1948 = vmatprep.subr.mxu0 0.0
  %1949 = vmatpush1.msra.mxu0 0.0
  %1950 = vmatprep.subr.mxu0 0.0
  %1951 = vmatpush1.msra.mxu0 0.0
  %1952 = vmatprep.subr.mxu0 0.0
  %1953 = vmatpush1.msra.mxu0 0.0
  %1954 = vmatprep.subr.mxu0 0.0
  %1955 = vmatpush1.msra.mxu0 0.0
  %1956 = vmatprep.subr.mxu0 0.0
  %1957 = vmatpush1.msra.mxu0 0.0
  %1958 = vmatprep.subr.mxu0 0.0
  %1959 = vmatpush1.msra.mxu0 0.0
  %1960 = vmatprep.subr.mxu0 0.0
  %1961 = vmatpush1.msra.mxu0 0.0
  %1962 = vmatprep.mubr.f32.mxu0 0.0
  %v1963 = vand.u32 %v1345, 4294901760
  %v1964 = vsub.f32 %v1345, %v1963
  %1965 = vmatmul.mubr.f32.gmra.mrb[0].mxu0 %v1964
  %v1966 = vpop.f32.mrb[0].mxu0
  %v1967 = vadd.f32 %v1773, %v1966
  %v1968 = vpop.f32.mrb[0].mxu0
  %1969 = vmatprep.mubr.f32.mxu0 0.0
  %v1970 = vand.u32 %v1346, 4294901760
  %v1971 = vsub.f32 %v1346, %v1970
  %1972 = vmatmul.mubr.f32.gmra.mrb[0].mxu0 %v1971
  %v1973 = vpop.f32.mrb[0].mxu0
  %v1974 = vadd.f32 %v1779, %v1973
  %v1975 = vpop.f32.mrb[0].mxu0
  %1976 = vmatprep.mubr.f32.mxu0 0.0
  %v1977 = vand.u32 %v1347, 4294901760
  %v1978 = vsub.f32 %v1347, %v1977
  %1979 = vmatmul.mubr.f32.gmra.mrb[0].mxu0 %v1978
  %v1980 = vpop.f32.mrb[0].mxu0
  %v1981 = vadd.f32 %v1785, %v1980
  %v1982 = vpop.f32.mrb[0].mxu0
  %1983 = vmatprep.mubr.f32.mxu0 0.0
  %v1984 = vand.u32 %v1348, 4294901760
  %v1985 = vsub.f32 %v1348, %v1984
  %1986 = vmatmul.mubr.f32.gmra.mrb[0].mxu0 %v1985
  %v1987 = vpop.f32.mrb[0].mxu0
  %v1988 = vadd.f32 %v1791, %v1987
  %v1989 = vpop.f32.mrb[0].mxu0
  %1990 = vmatprep.mubr.f32.mxu0 0.0
  %v1991 = vand.u32 %v1349, 4294901760
  %v1992 = vsub.f32 %v1349, %v1991
  %1993 = vmatmul.mubr.f32.gmra.mrb[0].mxu0 %v1992
  %v1994 = vpop.f32.mrb[0].mxu0
  %v1995 = vadd.f32 %v1797, %v1994
  %v1996 = vpop.f32.mrb[0].mxu0
  %1997 = vmatprep.mubr.f32.mxu0 0.0
  %v1998 = vand.u32 %v1350, 4294901760
  %v1999 = vsub.f32 %v1350, %v1998
  %2000 = vmatmul.mubr.f32.gmra.mrb[0].mxu0 %v1999
  %v2001 = vpop.f32.mrb[0].mxu0
  %v2002 = vadd.f32 %v1803, %v2001
  %v2003 = vpop.f32.mrb[0].mxu0
  %2004 = vmatprep.mubr.f32.mxu0 0.0
  %v2005 = vand.u32 %v1351, 4294901760
  %v2006 = vsub.f32 %v1351, %v2005
  %2007 = vmatmul.mubr.f32.gmra.mrb[0].mxu0 %v2006
  %v2008 = vpop.f32.mrb[0].mxu0
  %v2009 = vadd.f32 %v1809, %v2008
  %v2010 = vpop.f32.mrb[0].mxu0
  %2011 = vmatprep.mubr.f32.mxu0 0.0
  %v2012 = vand.u32 %v1352, 4294901760
  %v2013 = vsub.f32 %v1352, %v2012
  %2014 = vmatmul.mubr.f32.gmra.mrb[0].mxu0 %v2013
  %v2015 = vpop.f32.mrb[0].mxu0
  %v2016 = vadd.f32 %v1815, %v2015
  %v2017 = vpop.f32.mrb[0].mxu0
  %2018 = vmatprep.mubr.f32.mxu0 0.0
  %v2019 = vand.u32 %v1353, 4294901760
  %v2020 = vsub.f32 %v1353, %v2019
  %2021 = vmatmul.mubr.f32.gmra.mrb[0].mxu0 %v2020
  %v2022 = vpop.f32.mrb[0].mxu0
  %v2023 = vadd.f32 %v1821, %v2022
  %v2024 = vpop.f32.mrb[0].mxu0
  %2025 = vmatprep.mubr.f32.mxu0 0.0
  %v2026 = vand.u32 %v1354, 4294901760
  %v2027 = vsub.f32 %v1354, %v2026
  %2028 = vmatmul.mubr.f32.gmra.mrb[0].mxu0 %v2027
  %v2029 = vpop.f32.mrb[0].mxu0
  %v2030 = vadd.f32 %v1827, %v2029
  %v2031 = vpop.f32.mrb[0].mxu0
  %2032 = vmatprep.mubr.f32.mxu0 0.0
  %v2033 = vand.u32 %v1355, 4294901760
  %v2034 = vsub.f32 %v1355, %v2033
  %2035 = vmatmul.mubr.f32.gmra.mrb[0].mxu0 %v2034
  %v2036 = vpop.f32.mrb[0].mxu0
  %v2037 = vadd.f32 %v1833, %v2036
  %v2038 = vpop.f32.mrb[0].mxu0
  %2039 = vmatprep.mubr.f32.mxu0 0.0
  %v2040 = vand.u32 %v1356, 4294901760
  %v2041 = vsub.f32 %v1356, %v2040
  %2042 = vmatmul.mubr.f32.gmra.mrb[0].mxu0 %v2041
  %v2043 = vpop.f32.mrb[0].mxu0
  %v2044 = vadd.f32 %v1839, %v2043
  %v2045 = vpop.f32.mrb[0].mxu0
  %2046 = vmatprep.mubr.f32.mxu0 0.0
  %v2047 = vand.u32 %v1357, 4294901760
  %v2048 = vsub.f32 %v1357, %v2047
  %2049 = vmatmul.mubr.f32.gmra.mrb[0].mxu0 %v2048
  %v2050 = vpop.f32.mrb[0].mxu0
  %v2051 = vadd.f32 %v1845, %v2050
  %v2052 = vpop.f32.mrb[0].mxu0
  %2053 = vmatprep.mubr.f32.mxu0 0.0
  %v2054 = vand.u32 %v1358, 4294901760
  %v2055 = vsub.f32 %v1358, %v2054
  %2056 = vmatmul.mubr.f32.gmra.mrb[0].mxu0 %v2055
  %v2057 = vpop.f32.mrb[0].mxu0
  %v2058 = vadd.f32 %v1851, %v2057
  %v2059 = vpop.f32.mrb[0].mxu0
  %2060 = vmatprep.mubr.f32.mxu0 0.0
  %v2061 = vand.u32 %v1359, 4294901760
  %v2062 = vsub.f32 %v1359, %v2061
  %2063 = vmatmul.mubr.f32.gmra.mrb[0].mxu0 %v2062
  %v2064 = vpop.f32.mrb[0].mxu0
  %v2065 = vadd.f32 %v1857, %v2064
  %v2066 = vpop.f32.mrb[0].mxu0
  %2067 = vmatprep.mubr.f32.mxu0 0.0
  %v2068 = vand.u32 %v1360, 4294901760
  %v2069 = vsub.f32 %v1360, %v2068
  %2070 = vmatmul.mubr.f32.gmra.mrb[0].mxu0 %v2069
  %v2071 = vpop.f32.mrb[0].mxu0
  %v2072 = vadd.f32 %v1863, %v2071
  %v2073 = vpop.f32.mrb[0].mxu0
  %2074 = vdwg.mxu0
  %2075 = vmatprep.subr.mxu0 0.0
  %v2076 = vand.u32 %v1361, 4294901760
  %2077 = vmatpush1.msra.mxu0 %v2076
  %2078 = vmatprep.subr.mxu0 0.0
  %v2079 = vand.u32 %v1362, 4294901760
  %2080 = vmatpush1.msra.mxu0 %v2079
  %2081 = vmatprep.subr.mxu0 0.0
  %v2082 = vand.u32 %v1363, 4294901760
  %2083 = vmatpush1.msra.mxu0 %v2082
  %2084 = vmatprep.subr.mxu0 0.0
  %v2085 = vand.u32 %v1364, 4294901760
  %2086 = vmatpush1.msra.mxu0 %v2085
  %2087 = vmatprep.subr.mxu0 0.0
  %v2088 = vand.u32 %v1365, 4294901760
  %2089 = vmatpush1.msra.mxu0 %v2088
  %2090 = vmatprep.subr.mxu0 0.0
  %v2091 = vand.u32 %v1366, 4294901760
  %2092 = vmatpush1.msra.mxu0 %v2091
  %2093 = vmatprep.subr.mxu0 0.0
  %v2094 = vand.u32 %v1367, 4294901760
  %2095 = vmatpush1.msra.mxu0 %v2094
  %2096 = vmatprep.subr.mxu0 0.0
  %v2097 = vand.u32 %v1368, 4294901760
  %2098 = vmatpush1.msra.mxu0 %v2097
  %2099 = vmatprep.subr.mxu0 0.0
  %v2100 = vand.u32 %v1369, 4294901760
  %2101 = vmatpush1.msra.mxu0 %v2100
  %2102 = vmatprep.subr.mxu0 0.0
  %v2103 = vand.u32 %v1370, 4294901760
  %2104 = vmatpush1.msra.mxu0 %v2103
  %2105 = vmatprep.subr.mxu0 0.0
  %v2106 = vand.u32 %v1371, 4294901760
  %2107 = vmatpush1.msra.mxu0 %v2106
  %2108 = vmatprep.subr.mxu0 0.0
  %v2109 = vand.u32 %v1372, 4294901760
  %2110 = vmatpush1.msra.mxu0 %v2109
  %2111 = vmatprep.subr.mxu0 0.0
  %v2112 = vand.u32 %v1373, 4294901760
  %2113 = vmatpush1.msra.mxu0 %v2112
  %2114 = vmatprep.subr.mxu0 0.0
  %v2115 = vand.u32 %v1374, 4294901760
  %2116 = vmatpush1.msra.mxu0 %v2115
  %2117 = vmatprep.subr.mxu0 0.0
  %v2118 = vand.u32 %v1375, 4294901760
  %2119 = vmatpush1.msra.mxu0 %v2118
  %2120 = vmatprep.subr.mxu0 0.0
  %v2121 = vand.u32 %v1376, 4294901760
  %2122 = vmatpush1.msra.mxu0 %v2121
  %2123 = vmatprep.subr.mxu0 0.0
  %2124 = vmatpush1.msra.mxu0 0.0
  %2125 = vmatprep.subr.mxu0 0.0
  %2126 = vmatpush1.msra.mxu0 0.0
  %2127 = vmatprep.subr.mxu0 0.0
  %2128 = vmatpush1.msra.mxu0 0.0
  %2129 = vmatprep.subr.mxu0 0.0
  %2130 = vmatpush1.msra.mxu0 0.0
  %2131 = vmatprep.subr.mxu0 0.0
  %2132 = vmatpush1.msra.mxu0 0.0
  %2133 = vmatprep.subr.mxu0 0.0
  %2134 = vmatpush1.msra.mxu0 0.0
  %2135 = vmatprep.subr.mxu0 0.0
  %2136 = vmatpush1.msra.mxu0 0.0
  %2137 = vmatprep.subr.mxu0 0.0
  %2138 = vmatpush1.msra.mxu0 0.0
  %2139 = vmatprep.subr.mxu0 0.0
  %2140 = vmatpush1.msra.mxu0 0.0
  %2141 = vmatprep.subr.mxu0 0.0
  %2142 = vmatpush1.msra.mxu0 0.0
  %2143 = vmatprep.subr.mxu0 0.0
  %2144 = vmatpush1.msra.mxu0 0.0
  %2145 = vmatprep.subr.mxu0 0.0
  %2146 = vmatpush1.msra.mxu0 0.0
  %2147 = vmatprep.subr.mxu0 0.0
  %2148 = vmatpush1.msra.mxu0 0.0
  %2149 = vmatprep.subr.mxu0 0.0
  %2150 = vmatpush1.msra.mxu0 0.0
  %2151 = vmatprep.subr.mxu0 0.0
  %2152 = vmatpush1.msra.mxu0 0.0
  %2153 = vmatprep.subr.mxu0 0.0
  %2154 = vmatpush1.msra.mxu0 0.0
  %2155 = vmatprep.mubr.f32.mxu0 0.0
  %v2156 = vand.u32 %v1345, 4294901760
  %v2157 = vsub.f32 %v1345, %v2156
  %v2158 = vand.u32 %v2157, 4294901760
  %2159 = vmatmul.mubr.f32.gmra.mrb[0].mxu0 %v2158
  %v2160 = vpop.f32.mrb[0].mxu0
  %v2161 = vadd.f32 %v1967, %v2160
  %v2162 = vpop.f32.mrb[0].mxu0
  %2163 = vmatprep.mubr.f32.mxu0 0.0
  %v2164 = vand.u32 %v1346, 4294901760
  %v2165 = vsub.f32 %v1346, %v2164
  %v2166 = vand.u32 %v2165, 4294901760
  %2167 = vmatmul.mubr.f32.gmra.mrb[0].mxu0 %v2166
  %v2168 = vpop.f32.mrb[0].mxu0
  %v2169 = vadd.f32 %v1974, %v2168
  %v2170 = vpop.f32.mrb[0].mxu0
  %2171 = vmatprep.mubr.f32.mxu0 0.0
  %v2172 = vand.u32 %v1347, 4294901760
  %v2173 = vsub.f32 %v1347, %v2172
  %v2174 = vand.u32 %v2173, 4294901760
  %2175 = vmatmul.mubr.f32.gmra.mrb[0].mxu0 %v2174
  %v2176 = vpop.f32.mrb[0].mxu0
  %v2177 = vadd.f32 %v1981, %v2176
  %v2178 = vpop.f32.mrb[0].mxu0
  %2179 = vmatprep.mubr.f32.mxu0 0.0
  %v2180 = vand.u32 %v1348, 4294901760
  %v2181 = vsub.f32 %v1348, %v2180
  %v2182 = vand.u32 %v2181, 4294901760
  %2183 = vmatmul.mubr.f32.gmra.mrb[0].mxu0 %v2182
  %v2184 = vpop.f32.mrb[0].mxu0
  %v2185 = vadd.f32 %v1988, %v2184
  %v2186 = vpop.f32.mrb[0].mxu0
  %2187 = vmatprep.mubr.f32.mxu0 0.0
  %v2188 = vand.u32 %v1349, 4294901760
  %v2189 = vsub.f32 %v1349, %v2188
  %v2190 = vand.u32 %v2189, 4294901760
  %2191 = vmatmul.mubr.f32.gmra.mrb[0].mxu0 %v2190
  %v2192 = vpop.f32.mrb[0].mxu0
  %v2193 = vadd.f32 %v1995, %v2192
  %v2194 = vpop.f32.mrb[0].mxu0
  %2195 = vmatprep.mubr.f32.mxu0 0.0
  %v2196 = vand.u32 %v1350, 4294901760
  %v2197 = vsub.f32 %v1350, %v2196
  %v2198 = vand.u32 %v2197, 4294901760
  %2199 = vmatmul.mubr.f32.gmra.mrb[0].mxu0 %v2198
  %v2200 = vpop.f32.mrb[0].mxu0
  %v2201 = vadd.f32 %v2002, %v2200
  %v2202 = vpop.f32.mrb[0].mxu0
  %2203 = vmatprep.mubr.f32.mxu0 0.0
  %v2204 = vand.u32 %v1351, 4294901760
  %v2205 = vsub.f32 %v1351, %v2204
  %v2206 = vand.u32 %v2205, 4294901760
  %2207 = vmatmul.mubr.f32.gmra.mrb[0].mxu0 %v2206
  %v2208 = vpop.f32.mrb[0].mxu0
  %v2209 = vadd.f32 %v2009, %v2208
  %v2210 = vpop.f32.mrb[0].mxu0
  %2211 = vmatprep.mubr.f32.mxu0 0.0
  %v2212 = vand.u32 %v1352, 4294901760
  %v2213 = vsub.f32 %v1352, %v2212
  %v2214 = vand.u32 %v2213, 4294901760
  %2215 = vmatmul.mubr.f32.gmra.mrb[0].mxu0 %v2214
  %v2216 = vpop.f32.mrb[0].mxu0
  %v2217 = vadd.f32 %v2016, %v2216
  %v2218 = vpop.f32.mrb[0].mxu0
  %2219 = vmatprep.mubr.f32.mxu0 0.0
  %v2220 = vand.u32 %v1353, 4294901760
  %v2221 = vsub.f32 %v1353, %v2220
  %v2222 = vand.u32 %v2221, 4294901760
  %2223 = vmatmul.mubr.f32.gmra.mrb[0].mxu0 %v2222
  %v2224 = vpop.f32.mrb[0].mxu0
  %v2225 = vadd.f32 %v2023, %v2224
  %v2226 = vpop.f32.mrb[0].mxu0
  %2227 = vmatprep.mubr.f32.mxu0 0.0
  %v2228 = vand.u32 %v1354, 4294901760
  %v2229 = vsub.f32 %v1354, %v2228
  %v2230 = vand.u32 %v2229, 4294901760
  %2231 = vmatmul.mubr.f32.gmra.mrb[0].mxu0 %v2230
  %v2232 = vpop.f32.mrb[0].mxu0
  %v2233 = vadd.f32 %v2030, %v2232
  %v2234 = vpop.f32.mrb[0].mxu0
  %2235 = vmatprep.mubr.f32.mxu0 0.0
  %v2236 = vand.u32 %v1355, 4294901760
  %v2237 = vsub.f32 %v1355, %v2236
  %v2238 = vand.u32 %v2237, 4294901760
  %2239 = vmatmul.mubr.f32.gmra.mrb[0].mxu0 %v2238
  %v2240 = vpop.f32.mrb[0].mxu0
  %v2241 = vadd.f32 %v2037, %v2240
  %v2242 = vpop.f32.mrb[0].mxu0
  %2243 = vmatprep.mubr.f32.mxu0 0.0
  %v2244 = vand.u32 %v1356, 4294901760
  %v2245 = vsub.f32 %v1356, %v2244
  %v2246 = vand.u32 %v2245, 4294901760
  %2247 = vmatmul.mubr.f32.gmra.mrb[0].mxu0 %v2246
  %v2248 = vpop.f32.mrb[0].mxu0
  %v2249 = vadd.f32 %v2044, %v2248
  %v2250 = vpop.f32.mrb[0].mxu0
  %2251 = vmatprep.mubr.f32.mxu0 0.0
  %v2252 = vand.u32 %v1357, 4294901760
  %v2253 = vsub.f32 %v1357, %v2252
  %v2254 = vand.u32 %v2253, 4294901760
  %2255 = vmatmul.mubr.f32.gmra.mrb[0].mxu0 %v2254
  %v2256 = vpop.f32.mrb[0].mxu0
  %v2257 = vadd.f32 %v2051, %v2256
  %v2258 = vpop.f32.mrb[0].mxu0
  %2259 = vmatprep.mubr.f32.mxu0 0.0
  %v2260 = vand.u32 %v1358, 4294901760
  %v2261 = vsub.f32 %v1358, %v2260
  %v2262 = vand.u32 %v2261, 4294901760
  %2263 = vmatmul.mubr.f32.gmra.mrb[0].mxu0 %v2262
  %v2264 = vpop.f32.mrb[0].mxu0
  %v2265 = vadd.f32 %v2058, %v2264
  %v2266 = vpop.f32.mrb[0].mxu0
  %2267 = vmatprep.mubr.f32.mxu0 0.0
  %v2268 = vand.u32 %v1359, 4294901760
  %v2269 = vsub.f32 %v1359, %v2268
  %v2270 = vand.u32 %v2269, 4294901760
  %2271 = vmatmul.mubr.f32.gmra.mrb[0].mxu0 %v2270
  %v2272 = vpop.f32.mrb[0].mxu0
  %v2273 = vadd.f32 %v2065, %v2272
  %v2274 = vpop.f32.mrb[0].mxu0
  %2275 = vmatprep.mubr.f32.mxu0 0.0
  %v2276 = vand.u32 %v1360, 4294901760
  %v2277 = vsub.f32 %v1360, %v2276
  %v2278 = vand.u32 %v2277, 4294901760
  %2279 = vmatmul.mubr.f32.gmra.mrb[0].mxu0 %v2278
  %v2280 = vpop.f32.mrb[0].mxu0
  %v2281 = vadd.f32 %v2072, %v2280
  %v2282 = vpop.f32.mrb[0].mxu0
  %2283 = vdwg.mxu0
  %2284 = vmatprep.subr.mxu0 0.0
  %v2285 = vand.u32 %v1361, 4294901760
  %v2286 = vsub.f32 %v1361, %v2285
  %v2287 = vand.u32 %v2286, 4294901760
  %2288 = vmatpush1.msra.mxu0 %v2287
  %2289 = vmatprep.subr.mxu0 0.0
  %v2290 = vand.u32 %v1362, 4294901760
  %v2291 = vsub.f32 %v1362, %v2290
  %v2292 = vand.u32 %v2291, 4294901760
  %2293 = vmatpush1.msra.mxu0 %v2292
  %2294 = vmatprep.subr.mxu0 0.0
  %v2295 = vand.u32 %v1363, 4294901760
  %v2296 = vsub.f32 %v1363, %v2295
  %v2297 = vand.u32 %v2296, 4294901760
  %2298 = vmatpush1.msra.mxu0 %v2297
  %2299 = vmatprep.subr.mxu0 0.0
  %v2300 = vand.u32 %v1364, 4294901760
  %v2301 = vsub.f32 %v1364, %v2300
  %v2302 = vand.u32 %v2301, 4294901760
  %2303 = vmatpush1.msra.mxu0 %v2302
  %2304 = vmatprep.subr.mxu0 0.0
  %v2305 = vand.u32 %v1365, 4294901760
  %v2306 = vsub.f32 %v1365, %v2305
  %v2307 = vand.u32 %v2306, 4294901760
  %2308 = vmatpush1.msra.mxu0 %v2307
  %2309 = vmatprep.subr.mxu0 0.0
  %v2310 = vand.u32 %v1366, 4294901760
  %v2311 = vsub.f32 %v1366, %v2310
  %v2312 = vand.u32 %v2311, 4294901760
  %2313 = vmatpush1.msra.mxu0 %v2312
  %2314 = vmatprep.subr.mxu0 0.0
  %v2315 = vand.u32 %v1367, 4294901760
  %v2316 = vsub.f32 %v1367, %v2315
  %v2317 = vand.u32 %v2316, 4294901760
  %2318 = vmatpush1.msra.mxu0 %v2317
  %2319 = vmatprep.subr.mxu0 0.0
  %v2320 = vand.u32 %v1368, 4294901760
  %v2321 = vsub.f32 %v1368, %v2320
  %v2322 = vand.u32 %v2321, 4294901760
  %2323 = vmatpush1.msra.mxu0 %v2322
  %2324 = vmatprep.subr.mxu0 0.0
  %v2325 = vand.u32 %v1369, 4294901760
  %v2326 = vsub.f32 %v1369, %v2325
  %v2327 = vand.u32 %v2326, 4294901760
  %2328 = vmatpush1.msra.mxu0 %v2327
  %2329 = vmatprep.subr.mxu0 0.0
  %v2330 = vand.u32 %v1370, 4294901760
  %v2331 = vsub.f32 %v1370, %v2330
  %v2332 = vand.u32 %v2331, 4294901760
  %2333 = vmatpush1.msra.mxu0 %v2332
  %2334 = vmatprep.subr.mxu0 0.0
  %v2335 = vand.u32 %v1371, 4294901760
  %v2336 = vsub.f32 %v1371, %v2335
  %v2337 = vand.u32 %v2336, 4294901760
  %2338 = vmatpush1.msra.mxu0 %v2337
  %2339 = vmatprep.subr.mxu0 0.0
  %v2340 = vand.u32 %v1372, 4294901760
  %v2341 = vsub.f32 %v1372, %v2340
  %v2342 = vand.u32 %v2341, 4294901760
  %2343 = vmatpush1.msra.mxu0 %v2342
  %2344 = vmatprep.subr.mxu0 0.0
  %v2345 = vand.u32 %v1373, 4294901760
  %v2346 = vsub.f32 %v1373, %v2345
  %v2347 = vand.u32 %v2346, 4294901760
  %2348 = vmatpush1.msra.mxu0 %v2347
  %2349 = vmatprep.subr.mxu0 0.0
  %v2350 = vand.u32 %v1374, 4294901760
  %v2351 = vsub.f32 %v1374, %v2350
  %v2352 = vand.u32 %v2351, 4294901760
  %2353 = vmatpush1.msra.mxu0 %v2352
  %2354 = vmatprep.subr.mxu0 0.0
  %v2355 = vand.u32 %v1375, 4294901760
  %v2356 = vsub.f32 %v1375, %v2355
  %v2357 = vand.u32 %v2356, 4294901760
  %2358 = vmatpush1.msra.mxu0 %v2357
  %2359 = vmatprep.subr.mxu0 0.0
  %v2360 = vand.u32 %v1376, 4294901760
  %v2361 = vsub.f32 %v1376, %v2360
  %v2362 = vand.u32 %v2361, 4294901760
  %2363 = vmatpush1.msra.mxu0 %v2362
  %2364 = vmatprep.subr.mxu0 0.0
  %2365 = vmatpush1.msra.mxu0 0.0
  %2366 = vmatprep.subr.mxu0 0.0
  %2367 = vmatpush1.msra.mxu0 0.0
  %2368 = vmatprep.subr.mxu0 0.0
  %2369 = vmatpush1.msra.mxu0 0.0
  %2370 = vmatprep.subr.mxu0 0.0
  %2371 = vmatpush1.msra.mxu0 0.0
  %2372 = vmatprep.subr.mxu0 0.0
  %2373 = vmatpush1.msra.mxu0 0.0
  %2374 = vmatprep.subr.mxu0 0.0
  %2375 = vmatpush1.msra.mxu0 0.0
  %2376 = vmatprep.subr.mxu0 0.0
  %2377 = vmatpush1.msra.mxu0 0.0
  %2378 = vmatprep.subr.mxu0 0.0
  %2379 = vmatpush1.msra.mxu0 0.0
  %2380 = vmatprep.subr.mxu0 0.0
  %2381 = vmatpush1.msra.mxu0 0.0
  %2382 = vmatprep.subr.mxu0 0.0
  %2383 = vmatpush1.msra.mxu0 0.0
  %2384 = vmatprep.subr.mxu0 0.0
  %2385 = vmatpush1.msra.mxu0 0.0
  %2386 = vmatprep.subr.mxu0 0.0
  %2387 = vmatpush1.msra.mxu0 0.0
  %2388 = vmatprep.subr.mxu0 0.0
  %2389 = vmatpush1.msra.mxu0 0.0
  %2390 = vmatprep.subr.mxu0 0.0
  %2391 = vmatpush1.msra.mxu0 0.0
  %2392 = vmatprep.subr.mxu0 0.0
  %2393 = vmatpush1.msra.mxu0 0.0
  %2394 = vmatprep.subr.mxu0 0.0
  %2395 = vmatpush1.msra.mxu0 0.0
  %2396 = vmatprep.mubr.f32.mxu0 0.0
  %v2397 = vand.u32 %v1345, 4294901760
  %2398 = vmatmul.mubr.f32.gmra.mrb[0].mxu0 %v2397
  %v2399 = vpop.f32.mrb[0].mxu0
  %v2400 = vadd.f32 %v2161, %v2399
  %v2401 = vpop.f32.mrb[0].mxu0
  %2402 = vmatprep.mubr.f32.mxu0 0.0
  %v2403 = vand.u32 %v1346, 4294901760
  %2404 = vmatmul.mubr.f32.gmra.mrb[0].mxu0 %v2403
  %v2405 = vpop.f32.mrb[0].mxu0
  %v2406 = vadd.f32 %v2169, %v2405
  %v2407 = vpop.f32.mrb[0].mxu0
  %2408 = vmatprep.mubr.f32.mxu0 0.0
  %v2409 = vand.u32 %v1347, 4294901760
  %2410 = vmatmul.mubr.f32.gmra.mrb[0].mxu0 %v2409
  %v2411 = vpop.f32.mrb[0].mxu0
  %v2412 = vadd.f32 %v2177, %v2411
  %v2413 = vpop.f32.mrb[0].mxu0
  %2414 = vmatprep.mubr.f32.mxu0 0.0
  %v2415 = vand.u32 %v1348, 4294901760
  %2416 = vmatmul.mubr.f32.gmra.mrb[0].mxu0 %v2415
  %v2417 = vpop.f32.mrb[0].mxu0
  %v2418 = vadd.f32 %v2185, %v2417
  %v2419 = vpop.f32.mrb[0].mxu0
  %2420 = vmatprep.mubr.f32.mxu0 0.0
  %v2421 = vand.u32 %v1349, 4294901760
  %2422 = vmatmul.mubr.f32.gmra.mrb[0].mxu0 %v2421
  %v2423 = vpop.f32.mrb[0].mxu0
  %v2424 = vadd.f32 %v2193, %v2423
  %v2425 = vpop.f32.mrb[0].mxu0
  %2426 = vmatprep.mubr.f32.mxu0 0.0
  %v2427 = vand.u32 %v1350, 4294901760
  %2428 = vmatmul.mubr.f32.gmra.mrb[0].mxu0 %v2427
  %v2429 = vpop.f32.mrb[0].mxu0
  %v2430 = vadd.f32 %v2201, %v2429
  %v2431 = vpop.f32.mrb[0].mxu0
  %2432 = vmatprep.mubr.f32.mxu0 0.0
  %v2433 = vand.u32 %v1351, 4294901760
  %2434 = vmatmul.mubr.f32.gmra.mrb[0].mxu0 %v2433
  %v2435 = vpop.f32.mrb[0].mxu0
  %v2436 = vadd.f32 %v2209, %v2435
  %v2437 = vpop.f32.mrb[0].mxu0
  %2438 = vmatprep.mubr.f32.mxu0 0.0
  %v2439 = vand.u32 %v1352, 4294901760
  %2440 = vmatmul.mubr.f32.gmra.mrb[0].mxu0 %v2439
  %v2441 = vpop.f32.mrb[0].mxu0
  %v2442 = vadd.f32 %v2217, %v2441
  %v2443 = vpop.f32.mrb[0].mxu0
  %2444 = vmatprep.mubr.f32.mxu0 0.0
  %v2445 = vand.u32 %v1353, 4294901760
  %2446 = vmatmul.mubr.f32.gmra.mrb[0].mxu0 %v2445
  %v2447 = vpop.f32.mrb[0].mxu0
  %v2448 = vadd.f32 %v2225, %v2447
  %v2449 = vpop.f32.mrb[0].mxu0
  %2450 = vmatprep.mubr.f32.mxu0 0.0
  %v2451 = vand.u32 %v1354, 4294901760
  %2452 = vmatmul.mubr.f32.gmra.mrb[0].mxu0 %v2451
  %v2453 = vpop.f32.mrb[0].mxu0
  %v2454 = vadd.f32 %v2233, %v2453
  %v2455 = vpop.f32.mrb[0].mxu0
  %2456 = vmatprep.mubr.f32.mxu0 0.0
  %v2457 = vand.u32 %v1355, 4294901760
  %2458 = vmatmul.mubr.f32.gmra.mrb[0].mxu0 %v2457
  %v2459 = vpop.f32.mrb[0].mxu0
  %v2460 = vadd.f32 %v2241, %v2459
  %v2461 = vpop.f32.mrb[0].mxu0
  %2462 = vmatprep.mubr.f32.mxu0 0.0
  %v2463 = vand.u32 %v1356, 4294901760
  %2464 = vmatmul.mubr.f32.gmra.mrb[0].mxu0 %v2463
  %v2465 = vpop.f32.mrb[0].mxu0
  %v2466 = vadd.f32 %v2249, %v2465
  %v2467 = vpop.f32.mrb[0].mxu0
  %2468 = vmatprep.mubr.f32.mxu0 0.0
  %v2469 = vand.u32 %v1357, 4294901760
  %2470 = vmatmul.mubr.f32.gmra.mrb[0].mxu0 %v2469
  %v2471 = vpop.f32.mrb[0].mxu0
  %v2472 = vadd.f32 %v2257, %v2471
  %v2473 = vpop.f32.mrb[0].mxu0
  %2474 = vmatprep.mubr.f32.mxu0 0.0
  %v2475 = vand.u32 %v1358, 4294901760
  %2476 = vmatmul.mubr.f32.gmra.mrb[0].mxu0 %v2475
  %v2477 = vpop.f32.mrb[0].mxu0
  %v2478 = vadd.f32 %v2265, %v2477
  %v2479 = vpop.f32.mrb[0].mxu0
  %2480 = vmatprep.mubr.f32.mxu0 0.0
  %v2481 = vand.u32 %v1359, 4294901760
  %2482 = vmatmul.mubr.f32.gmra.mrb[0].mxu0 %v2481
  %v2483 = vpop.f32.mrb[0].mxu0
  %v2484 = vadd.f32 %v2273, %v2483
  %v2485 = vpop.f32.mrb[0].mxu0
  %2486 = vmatprep.mubr.f32.mxu0 0.0
  %v2487 = vand.u32 %v1360, 4294901760
  %2488 = vmatmul.mubr.f32.gmra.mrb[0].mxu0 %v2487
  %v2489 = vpop.f32.mrb[0].mxu0
  %v2490 = vadd.f32 %v2281, %v2489
  %v2491 = vpop.f32.mrb[0].mxu0
  %2492 = vdwg.mxu0
  %2493 = vmatprep.subr.mxu0 0.0
  %v2494 = vand.u32 %v1361, 4294901760
  %2495 = vmatpush1.msra.mxu0 %v2494
  %2496 = vmatprep.subr.mxu0 0.0
  %v2497 = vand.u32 %v1362, 4294901760
  %2498 = vmatpush1.msra.mxu0 %v2497
  %2499 = vmatprep.subr.mxu0 0.0
  %v2500 = vand.u32 %v1363, 4294901760
  %2501 = vmatpush1.msra.mxu0 %v2500
  %2502 = vmatprep.subr.mxu0 0.0
  %v2503 = vand.u32 %v1364, 4294901760
  %2504 = vmatpush1.msra.mxu0 %v2503
  %2505 = vmatprep.subr.mxu0 0.0
  %v2506 = vand.u32 %v1365, 4294901760
  %2507 = vmatpush1.msra.mxu0 %v2506
  %2508 = vmatprep.subr.mxu0 0.0
  %v2509 = vand.u32 %v1366, 4294901760
  %2510 = vmatpush1.msra.mxu0 %v2509
  %2511 = vmatprep.subr.mxu0 0.0
  %v2512 = vand.u32 %v1367, 4294901760
  %2513 = vmatpush1.msra.mxu0 %v2512
  %2514 = vmatprep.subr.mxu0 0.0
  %v2515 = vand.u32 %v1368, 4294901760
  %2516 = vmatpush1.msra.mxu0 %v2515
  %2517 = vmatprep.subr.mxu0 0.0
  %v2518 = vand.u32 %v1369, 4294901760
  %2519 = vmatpush1.msra.mxu0 %v2518
  %2520 = vmatprep.subr.mxu0 0.0
  %v2521 = vand.u32 %v1370, 4294901760
  %2522 = vmatpush1.msra.mxu0 %v2521
  %2523 = vmatprep.subr.mxu0 0.0
  %v2524 = vand.u32 %v1371, 4294901760
  %2525 = vmatpush1.msra.mxu0 %v2524
  %2526 = vmatprep.subr.mxu0 0.0
  %v2527 = vand.u32 %v1372, 4294901760
  %2528 = vmatpush1.msra.mxu0 %v2527
  %2529 = vmatprep.subr.mxu0 0.0
  %v2530 = vand.u32 %v1373, 4294901760
  %2531 = vmatpush1.msra.mxu0 %v2530
  %2532 = vmatprep.subr.mxu0 0.0
  %v2533 = vand.u32 %v1374, 4294901760
  %2534 = vmatpush1.msra.mxu0 %v2533
  %2535 = vmatprep.subr.mxu0 0.0
  %v2536 = vand.u32 %v1375, 4294901760
  %2537 = vmatpush1.msra.mxu0 %v2536
  %2538 = vmatprep.subr.mxu0 0.0
  %v2539 = vand.u32 %v1376, 4294901760
  %2540 = vmatpush1.msra.mxu0 %v2539
  %2541 = vmatprep.subr.mxu0 0.0
  %2542 = vmatpush1.msra.mxu0 0.0
  %2543 = vmatprep.subr.mxu0 0.0
  %2544 = vmatpush1.msra.mxu0 0.0
  %2545 = vmatprep.subr.mxu0 0.0
  %2546 = vmatpush1.msra.mxu0 0.0
  %2547 = vmatprep.subr.mxu0 0.0
  %2548 = vmatpush1.msra.mxu0 0.0
  %2549 = vmatprep.subr.mxu0 0.0
  %2550 = vmatpush1.msra.mxu0 0.0
  %2551 = vmatprep.subr.mxu0 0.0
  %2552 = vmatpush1.msra.mxu0 0.0
  %2553 = vmatprep.subr.mxu0 0.0
  %2554 = vmatpush1.msra.mxu0 0.0
  %2555 = vmatprep.subr.mxu0 0.0
  %2556 = vmatpush1.msra.mxu0 0.0
  %2557 = vmatprep.subr.mxu0 0.0
  %2558 = vmatpush1.msra.mxu0 0.0
  %2559 = vmatprep.subr.mxu0 0.0
  %2560 = vmatpush1.msra.mxu0 0.0
  %2561 = vmatprep.subr.mxu0 0.0
  %2562 = vmatpush1.msra.mxu0 0.0
  %2563 = vmatprep.subr.mxu0 0.0
  %2564 = vmatpush1.msra.mxu0 0.0
  %2565 = vmatprep.subr.mxu0 0.0
  %2566 = vmatpush1.msra.mxu0 0.0
  %2567 = vmatprep.subr.mxu0 0.0
  %2568 = vmatpush1.msra.mxu0 0.0
  %2569 = vmatprep.subr.mxu0 0.0
  %2570 = vmatpush1.msra.mxu0 0.0
  %2571 = vmatprep.subr.mxu0 0.0
  %2572 = vmatpush1.msra.mxu0 0.0
  %2573 = vmatprep.mubr.f32.mxu0 0.0
  %v2574 = vand.u32 %v1345, 4294901760
  %2575 = vmatmul.mubr.f32.gmra.mrb[0].mxu0 %v2574
  %v2576 = vpop.f32.mrb[0].mxu0
  %v2577 = vadd.f32 %v2400, %v2576
  %v2578 = vpop.f32.mrb[0].mxu0
  %2579 = vmatprep.mubr.f32.mxu0 0.0
  %v2580 = vand.u32 %v1346, 4294901760
  %2581 = vmatmul.mubr.f32.gmra.mrb[0].mxu0 %v2580
  %v2582 = vpop.f32.mrb[0].mxu0
  %v2583 = vadd.f32 %v2406, %v2582
  %v2584 = vpop.f32.mrb[0].mxu0
  %2585 = vmatprep.mubr.f32.mxu0 0.0
  %v2586 = vand.u32 %v1347, 4294901760
  %2587 = vmatmul.mubr.f32.gmra.mrb[0].mxu0 %v2586
  %v2588 = vpop.f32.mrb[0].mxu0
  %v2589 = vadd.f32 %v2412, %v2588
  %v2590 = vpop.f32.mrb[0].mxu0
  %2591 = vmatprep.mubr.f32.mxu0 0.0
  %v2592 = vand.u32 %v1348, 4294901760
  %2593 = vmatmul.mubr.f32.gmra.mrb[0].mxu0 %v2592
  %v2594 = vpop.f32.mrb[0].mxu0
  %v2595 = vadd.f32 %v2418, %v2594
  %v2596 = vpop.f32.mrb[0].mxu0
  %2597 = vmatprep.mubr.f32.mxu0 0.0
  %v2598 = vand.u32 %v1349, 4294901760
  %2599 = vmatmul.mubr.f32.gmra.mrb[0].mxu0 %v2598
  %v2600 = vpop.f32.mrb[0].mxu0
  %v2601 = vadd.f32 %v2424, %v2600
  %v2602 = vpop.f32.mrb[0].mxu0
  %2603 = vmatprep.mubr.f32.mxu0 0.0
  %v2604 = vand.u32 %v1350, 4294901760
  %2605 = vmatmul.mubr.f32.gmra.mrb[0].mxu0 %v2604
  %v2606 = vpop.f32.mrb[0].mxu0
  %v2607 = vadd.f32 %v2430, %v2606
  %v2608 = vpop.f32.mrb[0].mxu0
  %2609 = vmatprep.mubr.f32.mxu0 0.0
  %v2610 = vand.u32 %v1351, 4294901760
  %2611 = vmatmul.mubr.f32.gmra.mrb[0].mxu0 %v2610
  %v2612 = vpop.f32.mrb[0].mxu0
  %v2613 = vadd.f32 %v2436, %v2612
  %v2614 = vpop.f32.mrb[0].mxu0
  %2615 = vmatprep.mubr.f32.mxu0 0.0
  %v2616 = vand.u32 %v1352, 4294901760
  %2617 = vmatmul.mubr.f32.gmra.mrb[0].mxu0 %v2616
  %v2618 = vpop.f32.mrb[0].mxu0
  %v2619 = vadd.f32 %v2442, %v2618
  %v2620 = vpop.f32.mrb[0].mxu0
  %2621 = vmatprep.mubr.f32.mxu0 0.0
  %v2622 = vand.u32 %v1353, 4294901760
  %2623 = vmatmul.mubr.f32.gmra.mrb[0].mxu0 %v2622
  %v2624 = vpop.f32.mrb[0].mxu0
  %v2625 = vadd.f32 %v2448, %v2624
  %v2626 = vpop.f32.mrb[0].mxu0
  %2627 = vmatprep.mubr.f32.mxu0 0.0
  %v2628 = vand.u32 %v1354, 4294901760
  %2629 = vmatmul.mubr.f32.gmra.mrb[0].mxu0 %v2628
  %v2630 = vpop.f32.mrb[0].mxu0
  %v2631 = vadd.f32 %v2454, %v2630
  %v2632 = vpop.f32.mrb[0].mxu0
  %2633 = vmatprep.mubr.f32.mxu0 0.0
  %v2634 = vand.u32 %v1355, 4294901760
  %2635 = vmatmul.mubr.f32.gmra.mrb[0].mxu0 %v2634
  %v2636 = vpop.f32.mrb[0].mxu0
  %v2637 = vadd.f32 %v2460, %v2636
  %v2638 = vpop.f32.mrb[0].mxu0
  %2639 = vmatprep.mubr.f32.mxu0 0.0
  %v2640 = vand.u32 %v1356, 4294901760
  %2641 = vmatmul.mubr.f32.gmra.mrb[0].mxu0 %v2640
  %v2642 = vpop.f32.mrb[0].mxu0
  %v2643 = vadd.f32 %v2466, %v2642
  %v2644 = vpop.f32.mrb[0].mxu0
  %2645 = vmatprep.mubr.f32.mxu0 0.0
  %v2646 = vand.u32 %v1357, 4294901760
  %2647 = vmatmul.mubr.f32.gmra.mrb[0].mxu0 %v2646
  %v2648 = vpop.f32.mrb[0].mxu0
  %v2649 = vadd.f32 %v2472, %v2648
  %v2650 = vpop.f32.mrb[0].mxu0
  %2651 = vmatprep.mubr.f32.mxu0 0.0
  %v2652 = vand.u32 %v1358, 4294901760
  %2653 = vmatmul.mubr.f32.gmra.mrb[0].mxu0 %v2652
  %v2654 = vpop.f32.mrb[0].mxu0
  %v2655 = vadd.f32 %v2478, %v2654
  %v2656 = vpop.f32.mrb[0].mxu0
  %2657 = vmatprep.mubr.f32.mxu0 0.0
  %v2658 = vand.u32 %v1359, 4294901760
  %2659 = vmatmul.mubr.f32.gmra.mrb[0].mxu0 %v2658
  %v2660 = vpop.f32.mrb[0].mxu0
  %v2661 = vadd.f32 %v2484, %v2660
  %v2662 = vpop.f32.mrb[0].mxu0
  %2663 = vmatprep.mubr.f32.mxu0 0.0
  %v2664 = vand.u32 %v1360, 4294901760
  %2665 = vmatmul.mubr.f32.gmra.mrb[0].mxu0 %v2664
  %v2666 = vpop.f32.mrb[0].mxu0
  %v2667 = vadd.f32 %v2490, %v2666
  %v2668 = vpop.f32.mrb[0].mxu0
  %2669 = vdwg.mxu0
  %v2670 = vmax.f32 %v2577, 0.0
  %v2671 = vmax.f32 %v2583, 0.0
  %v2672 = vmax.f32 %v2589, 0.0
  %v2673 = vmax.f32 %v2595, 0.0
  %v2674 = vmax.f32 %v2601, 0.0
  %v2675 = vmax.f32 %v2607, 0.0
  %v2676 = vmax.f32 %v2613, 0.0
  %v2677 = vmax.f32 %v2619, 0.0
  %v2678 = vmax.f32 %v2625, 0.0
  %v2679 = vmax.f32 %v2631, 0.0
  %v2680 = vmax.f32 %v2637, 0.0
  %v2681 = vmax.f32 %v2643, 0.0
  %v2682 = vmax.f32 %v2649, 0.0
  %v2683 = vmax.f32 %v2655, 0.0
  %v2684 = vmax.f32 %v2661, 0.0
  %v2685 = vmax.f32 %v2667, 0.0
  %2686 = vst [vmem:[%s5] sm:$0xff] %v2670
  %2687 = vst [vmem:[%s5 + $0x8] sm:$0xff] %v2671
  %2688 = vst [vmem:[%s5 + $0x10] sm:$0xff] %v2672
  %2689 = vst [vmem:[%s5 + $0x18] sm:$0xff] %v2673
  %2690 = vst [vmem:[%s5 + $0x20] sm:$0xff] %v2674
  %2691 = vst [vmem:[%s5 + $0x28] sm:$0xff] %v2675
  %2692 = vst [vmem:[%s5 + $0x30] sm:$0xff] %v2676
  %2693 = vst [vmem:[%s5 + $0x38] sm:$0xff] %v2677
  %2694 = vst [vmem:[%s5 + $0x40] sm:$0xff] %v2678
  %2695 = vst [vmem:[%s5 + $0x48] sm:$0xff] %v2679
  %2696 = vst [vmem:[%s5 + $0x50] sm:$0xff] %v2680
  %2697 = vst [vmem:[%s5 + $0x58] sm:$0xff] %v2681
  %2698 = vst [vmem:[%s5 + $0x60] sm:$0xff] %v2682
  %2699 = vst [vmem:[%s5 + $0x68] sm:$0xff] %v2683
  %2700 = vst [vmem:[%s5 + $0x70] sm:$0xff] %v2684
  %2701 = vst [vmem:[%s5 + $0x78] sm:$0xff] %v2685
  // Predicated region
  $region22: #{custom_stellar_encoder_forward.4} parent=0 // pred_check
    _
  $region23: #{custom_stellar_encoder_forward.4} parent=0 // pred_check_branch
    %2703 = sbr.rel (0) target = $region25
  $region24: #{custom_stellar_encoder_forward.4} parent=0 // pred_region
    _
  $region25: #{custom_stellar_encoder_forward.4} parent=0 // pred_fallthru
    _
  // Predicated region
  $region26: #{custom_stellar_encoder_forward.4} parent=0 // pred_check
    _
  $region27: #{custom_stellar_encoder_forward.4} parent=0 // pred_check_branch
    %2705 = sbr.rel (0) target = $region29
  $region28: #{custom_stellar_encoder_forward.4} parent=0 // pred_region
    _
  $region29: #{custom_stellar_encoder_forward.4} parent=0 // pred_fallthru
    _

// kernel: custom_stellar_encoder_forward.5
$region0: #{custom_stellar_encoder_forward.5}
  #allocation0 [shape = 'u32[]', space=smem, size = 0x4, offset = 0x4, fixed_abs, tag = 'smem constant byte address 0x4 - core index']
  #allocation1 [shape = 'u32[144,128]{1,0:T(1,128)}', space=vmem, size = 0x12000, scoped, tag = 'internal scratch']
  #allocation2 [shape = 'f32[128,128]{1,0:T(8,128)}', space=vmem, size = 0x10000, scoped, tag = 'scratch operand']
  %s0 = inlined_call_operand.vmem [shape: f32[128,128], index: 0, kind: input, shape index: {}]
  %s1 = inlined_call_operand.vmem [shape: f32[128,128], index: 1, kind: input, shape index: {}]
  %s2 = inlined_call_operand.vmem [shape: f32[128,128], index: 2, kind: input, shape index: {}]
  %s3 = inlined_call_operand.vmem [shape: f32[1,128], index: 3, kind: input, shape index: {}]
  %s4 = inlined_call_operand.vmem [shape: f32[1,128], index: 4, kind: input, shape index: {}]
  %s5 = inlined_call_operand.vmem [shape: f32[1,128], index: 5, kind: input, shape index: {}]
  %s6 = inlined_call_operand.vmem [shape: f32[128,128], index: 6, kind: output, shape index: {0}]
  %s7 = inlined_call_operand.vmem [shape: f32[1,2,128], index: 7, kind: output, shape index: {1}]
  %8 = xla_tuple %s6, %s7
  %s9 = sld [smem:[#allocation0]]
  $region50: #{custom_stellar_encoder_forward.5} parent=0
    _
  %s11 = ssub.s32 1, %s9
  %s12 = scalar_select 0, %s11, %s9
  // Predicated region
  $region2: #{custom_stellar_encoder_forward.5} parent=0 // pred_check
    _
  $region3: #{custom_stellar_encoder_forward.5} parent=0 // pred_check_branch
    %14 = sbr.rel (0) target = $region5
  $region4: #{custom_stellar_encoder_forward.5} parent=0 // pred_region
    _
  $region5: #{custom_stellar_encoder_forward.5} parent=0 // pred_fallthru
    _
  // Predicated region
  $region6: #{custom_stellar_encoder_forward.5} parent=0 // pred_check
    _
  $region7: #{custom_stellar_encoder_forward.5} parent=0 // pred_check_branch
    %16 = sbr.rel (0) target = $region9
  $region8: #{custom_stellar_encoder_forward.5} parent=0 // pred_region
    _
  $region9: #{custom_stellar_encoder_forward.5} parent=0 // pred_fallthru
    _
  // Predicated region
  $region10: #{custom_stellar_encoder_forward.5} parent=0 // pred_check
    _
  $region11: #{custom_stellar_encoder_forward.5} parent=0 // pred_check_branch
    %18 = sbr.rel (0) target = $region13
  $region12: #{custom_stellar_encoder_forward.5} parent=0 // pred_region
    _
  $region13: #{custom_stellar_encoder_forward.5} parent=0 // pred_fallthru
    _
  // Predicated region
  $region14: #{custom_stellar_encoder_forward.5} parent=0 // pred_check
    _
  $region15: #{custom_stellar_encoder_forward.5} parent=0 // pred_check_branch
    %20 = sbr.rel (0) target = $region17
  $region16: #{custom_stellar_encoder_forward.5} parent=0 // pred_region
    _
  $region17: #{custom_stellar_encoder_forward.5} parent=0 // pred_fallthru
    _
  // Predicated region
  $region18: #{custom_stellar_encoder_forward.5} parent=0 // pred_check
    _
  $region19: #{custom_stellar_encoder_forward.5} parent=0 // pred_check_branch
    %22 = sbr.rel (0) target = $region21
  $region20: #{custom_stellar_encoder_forward.5} parent=0 // pred_region
    _
  $region21: #{custom_stellar_encoder_forward.5} parent=0 // pred_fallthru
    _
  // Predicated region
  $region22: #{custom_stellar_encoder_forward.5} parent=0 // pred_check
    _
  $region23: #{custom_stellar_encoder_forward.5} parent=0 // pred_check_branch
    %24 = sbr.rel (0) target = $region25
  $region24: #{custom_stellar_encoder_forward.5} parent=0 // pred_region
    _
  $region25: #{custom_stellar_encoder_forward.5} parent=0 // pred_fallthru
    _
  %s25 = smul.u32 0, 128
  %v26 = vlaneseq
  %v27 = vshrl.u32 %v26, 7
  %v28 = vadd.s32 %v27, 8
  %v29 = vadd.s32 %v27, 16
  %v30 = vadd.s32 %v27, 24
  %v31 = vadd.s32 %v27, 32
  %v32 = vadd.s32 %v27, 40
  %v33 = vadd.s32 %v27, 48
  %v34 = vadd.s32 %v27, 56
  %v35 = vadd.s32 %v27, 64
  %v36 = vadd.s32 %v27, 72
  %v37 = vadd.s32 %v27, 80
  %v38 = vadd.s32 %v27, 88
  %v39 = vadd.s32 %v27, 96
  %v40 = vadd.s32 %v27, 104
  %v41 = vadd.s32 %v27, 112
  %v42 = vadd.s32 %v27, 120
  %v43 = vstv %s25
  %v44 = vadd.s32 %v43, %v27
  %v45 = vadd.s32 %v43, %v28
  %v46 = vadd.s32 %v43, %v29
  %v47 = vadd.s32 %v43, %v30
  %v48 = vadd.s32 %v43, %v31
  %v49 = vadd.s32 %v43, %v32
  %v50 = vadd.s32 %v43, %v33
  %v51 = vadd.s32 %v43, %v34
  %v52 = vadd.s32 %v43, %v35
  %v53 = vadd.s32 %v43, %v36
  %v54 = vadd.s32 %v43, %v37
  %v55 = vadd.s32 %v43, %v38
  %v56 = vadd.s32 %v43, %v39
  %v57 = vadd.s32 %v43, %v40
  %v58 = vadd.s32 %v43, %v41
  %v59 = vadd.s32 %v43, %v42
  %vm60 = vcmp.lt.s32.totalorder %v44, 16
  %vm61 = vcmp.lt.s32.totalorder %v45, 16
  %vm62 = vcmp.lt.s32.totalorder %v46, 16
  %vm63 = vcmp.lt.s32.totalorder %v47, 16
  %vm64 = vcmp.lt.s32.totalorder %v48, 16
  %vm65 = vcmp.lt.s32.totalorder %v49, 16
  %vm66 = vcmp.lt.s32.totalorder %v50, 16
  %vm67 = vcmp.lt.s32.totalorder %v51, 16
  %vm68 = vcmp.lt.s32.totalorder %v52, 16
  %vm69 = vcmp.lt.s32.totalorder %v53, 16
  %vm70 = vcmp.lt.s32.totalorder %v54, 16
  %vm71 = vcmp.lt.s32.totalorder %v55, 16
  %vm72 = vcmp.lt.s32.totalorder %v56, 16
  %vm73 = vcmp.lt.s32.totalorder %v57, 16
  %vm74 = vcmp.lt.s32.totalorder %v58, 16
  %vm75 = vcmp.lt.s32.totalorder %v59, 16
  %v76 = vsel %vm60, 1, 0
  %v77 = vsel %vm61, 1, 0
  %v78 = vsel %vm62, 1, 0
  %v79 = vsel %vm63, 1, 0
  %v80 = vsel %vm64, 1, 0
  %v81 = vsel %vm65, 1, 0
  %v82 = vsel %vm66, 1, 0
  %v83 = vsel %vm67, 1, 0
  %v84 = vsel %vm68, 1, 0
  %v85 = vsel %vm69, 1, 0
  %v86 = vsel %vm70, 1, 0
  %v87 = vsel %vm71, 1, 0
  %v88 = vsel %vm72, 1, 0
  %v89 = vsel %vm73, 1, 0
  %v90 = vsel %vm74, 1, 0
  %v91 = vsel %vm75, 1, 0
  %v92 = vcvt.s32.f32 %v76
  %v93 = vcvt.s32.f32 %v77
  %v94 = vcvt.s32.f32 %v78
  %v95 = vcvt.s32.f32 %v79
  %v96 = vcvt.s32.f32 %v80
  %v97 = vcvt.s32.f32 %v81
  %v98 = vcvt.s32.f32 %v82
  %v99 = vcvt.s32.f32 %v83
  %v100 = vcvt.s32.f32 %v84
  %v101 = vcvt.s32.f32 %v85
  %v102 = vcvt.s32.f32 %v86
  %v103 = vcvt.s32.f32 %v87
  %v104 = vcvt.s32.f32 %v88
  %v105 = vcvt.s32.f32 %v89
  %v106 = vcvt.s32.f32 %v90
  %v107 = vcvt.s32.f32 %v91
  %p108 = scmp.eq.s32.totalorder 0, 0
  // Predicated region
  $region26: #{custom_stellar_encoder_forward.5} parent=0 // pred_check
    %p109 = pneg %p108
  $region27: #{custom_stellar_encoder_forward.5} parent=0 // pred_check_branch
    %111 = sbr.rel (%p109) target = $region29
  $region28: #{custom_stellar_encoder_forward.5} parent=0 // pred_region
    %112 = vst [vmem:[#allocation2] sm:$0xff] 0.0
    %113 = vst [vmem:[#allocation2 + $0x8] sm:$0xff] 0.0
    %114 = vst [vmem:[#allocation2 + $0x10] sm:$0xff] 0.0
    %115 = vst [vmem:[#allocation2 + $0x18] sm:$0xff] 0.0
    %116 = vst [vmem:[#allocation2 + $0x20] sm:$0xff] 0.0
    %117 = vst [vmem:[#allocation2 + $0x28] sm:$0xff] 0.0
    %118 = vst [vmem:[#allocation2 + $0x30] sm:$0xff] 0.0
    %119 = vst [vmem:[#allocation2 + $0x38] sm:$0xff] 0.0
    %120 = vst [vmem:[#allocation2 + $0x40] sm:$0xff] 0.0
    %121 = vst [vmem:[#allocation2 + $0x48] sm:$0xff] 0.0
    %122 = vst [vmem:[#allocation2 + $0x50] sm:$0xff] 0.0
    %123 = vst [vmem:[#allocation2 + $0x58] sm:$0xff] 0.0
    %124 = vst [vmem:[#allocation2 + $0x60] sm:$0xff] 0.0
    %125 = vst [vmem:[#allocation2 + $0x68] sm:$0xff] 0.0
    %126 = vst [vmem:[#allocation2 + $0x70] sm:$0xff] 0.0
    %127 = vst [vmem:[#allocation2 + $0x78] sm:$0xff] 0.0
  $region29: #{custom_stellar_encoder_forward.5} parent=0 // pred_fallthru
    _
  %v128 = vld [vmem:[%s1] sm:$0xff]
  %v129 = vld [vmem:[%s1 + $0x8] sm:$0xff]
  %v130 = vld [vmem:[%s1 + $0x10] sm:$0xff]
  %v131 = vld [vmem:[%s1 + $0x18] sm:$0xff]
  %v132 = vld [vmem:[%s1 + $0x20] sm:$0xff]
  %v133 = vld [vmem:[%s1 + $0x28] sm:$0xff]
  %v134 = vld [vmem:[%s1 + $0x30] sm:$0xff]
  %v135 = vld [vmem:[%s1 + $0x38] sm:$0xff]
  %v136 = vld [vmem:[%s1 + $0x40] sm:$0xff]
  %v137 = vld [vmem:[%s1 + $0x48] sm:$0xff]
  %v138 = vld [vmem:[%s1 + $0x50] sm:$0xff]
  %v139 = vld [vmem:[%s1 + $0x58] sm:$0xff]
  %v140 = vld [vmem:[%s1 + $0x60] sm:$0xff]
  %v141 = vld [vmem:[%s1 + $0x68] sm:$0xff]
  %v142 = vld [vmem:[%s1 + $0x70] sm:$0xff]
  %v143 = vld [vmem:[%s1 + $0x78] sm:$0xff]
  %v144 = vld [vmem:[%s4] sm:$0x1]
  %v146 = vlaneseq
  %v147 = vshrl.u32 %v146, 7
  %v148 = vsub.s32 0, %v147
  %v149 = vrot.slane %v144, %v148
  %v151 = vmul.f32 %v128, %v149
  %v152 = vmul.f32 %v129, %v149
  %v153 = vmul.f32 %v130, %v149
  %v154 = vmul.f32 %v131, %v149
  %v155 = vmul.f32 %v132, %v149
  %v156 = vmul.f32 %v133, %v149
  %v157 = vmul.f32 %v134, %v149
  %v158 = vmul.f32 %v135, %v149
  %v159 = vmul.f32 %v136, %v149
  %v160 = vmul.f32 %v137, %v149
  %v161 = vmul.f32 %v138, %v149
  %v162 = vmul.f32 %v139, %v149
  %v163 = vmul.f32 %v140, %v149
  %v164 = vmul.f32 %v141, %v149
  %v165 = vmul.f32 %v142, %v149
  %v166 = vmul.f32 %v143, %v149
  %v167 = vld [vmem:[%s5] sm:$0x1]
  %v169 = vlaneseq
  %v170 = vshrl.u32 %v169, 7
  %v171 = vsub.s32 0, %v170
  %v172 = vrot.slane %v167, %v171
  %v174 = vadd.f32 %v151, %v172
  %v175 = vadd.f32 %v152, %v172
  %v176 = vadd.f32 %v153, %v172
  %v177 = vadd.f32 %v154, %v172
  %v178 = vadd.f32 %v155, %v172
  %v179 = vadd.f32 %v156, %v172
  %v180 = vadd.f32 %v157, %v172
  %v181 = vadd.f32 %v158, %v172
  %v182 = vadd.f32 %v159, %v172
  %v183 = vadd.f32 %v160, %v172
  %v184 = vadd.f32 %v161, %v172
  %v185 = vadd.f32 %v162, %v172
  %v186 = vadd.f32 %v163, %v172
  %v187 = vadd.f32 %v164, %v172
  %v188 = vadd.f32 %v165, %v172
  %v189 = vadd.f32 %v166, %v172
  %v190 = vld [vmem:[%s2] sm:$0xff]
  %v191 = vld [vmem:[%s2 + $0x8] sm:$0xff]
  %v192 = vld [vmem:[%s2 + $0x10] sm:$0xff]
  %v193 = vld [vmem:[%s2 + $0x18] sm:$0xff]
  %v194 = vld [vmem:[%s2 + $0x20] sm:$0xff]
  %v195 = vld [vmem:[%s2 + $0x28] sm:$0xff]
  %v196 = vld [vmem:[%s2 + $0x30] sm:$0xff]
  %v197 = vld [vmem:[%s2 + $0x38] sm:$0xff]
  %v198 = vld [vmem:[%s2 + $0x40] sm:$0xff]
  %v199 = vld [vmem:[%s2 + $0x48] sm:$0xff]
  %v200 = vld [vmem:[%s2 + $0x50] sm:$0xff]
  %v201 = vld [vmem:[%s2 + $0x58] sm:$0xff]
  %v202 = vld [vmem:[%s2 + $0x60] sm:$0xff]
  %v203 = vld [vmem:[%s2 + $0x68] sm:$0xff]
  %v204 = vld [vmem:[%s2 + $0x70] sm:$0xff]
  %v205 = vld [vmem:[%s2 + $0x78] sm:$0xff]
  %206 = vmatprep.subr.mxu0 0.0
  %v207 = vand.u32 %v190, 4294901760
  %208 = vmatpush1.msra.mxu0 %v207
  %209 = vmatprep.subr.mxu0 0.0
  %v210 = vand.u32 %v191, 4294901760
  %211 = vmatpush1.msra.mxu0 %v210
  %212 = vmatprep.subr.mxu0 0.0
  %v213 = vand.u32 %v192, 4294901760
  %214 = vmatpush1.msra.mxu0 %v213
  %215 = vmatprep.subr.mxu0 0.0
  %v216 = vand.u32 %v193, 4294901760
  %217 = vmatpush1.msra.mxu0 %v216
  %218 = vmatprep.subr.mxu0 0.0
  %v219 = vand.u32 %v194, 4294901760
  %220 = vmatpush1.msra.mxu0 %v219
  %221 = vmatprep.subr.mxu0 0.0
  %v222 = vand.u32 %v195, 4294901760
  %223 = vmatpush1.msra.mxu0 %v222
  %224 = vmatprep.subr.mxu0 0.0
  %v225 = vand.u32 %v196, 4294901760
  %226 = vmatpush1.msra.mxu0 %v225
  %227 = vmatprep.subr.mxu0 0.0
  %v228 = vand.u32 %v197, 4294901760
  %229 = vmatpush1.msra.mxu0 %v228
  %230 = vmatprep.subr.mxu0 0.0
  %v231 = vand.u32 %v198, 4294901760
  %232 = vmatpush1.msra.mxu0 %v231
  %233 = vmatprep.subr.mxu0 0.0
  %v234 = vand.u32 %v199, 4294901760
  %235 = vmatpush1.msra.mxu0 %v234
  %236 = vmatprep.subr.mxu0 0.0
  %v237 = vand.u32 %v200, 4294901760
  %238 = vmatpush1.msra.mxu0 %v237
  %239 = vmatprep.subr.mxu0 0.0
  %v240 = vand.u32 %v201, 4294901760
  %241 = vmatpush1.msra.mxu0 %v240
  %242 = vmatprep.subr.mxu0 0.0
  %v243 = vand.u32 %v202, 4294901760
  %244 = vmatpush1.msra.mxu0 %v243
  %245 = vmatprep.subr.mxu0 0.0
  %v246 = vand.u32 %v203, 4294901760
  %247 = vmatpush1.msra.mxu0 %v246
  %248 = vmatprep.subr.mxu0 0.0
  %v249 = vand.u32 %v204, 4294901760
  %250 = vmatpush1.msra.mxu0 %v249
  %251 = vmatprep.subr.mxu0 0.0
  %v252 = vand.u32 %v205, 4294901760
  %253 = vmatpush1.msra.mxu0 %v252
  %254 = vmatprep.subr.mxu0 0.0
  %255 = vmatpush1.msra.mxu0 0.0
  %256 = vmatprep.subr.mxu0 0.0
  %257 = vmatpush1.msra.mxu0 0.0
  %258 = vmatprep.subr.mxu0 0.0
  %259 = vmatpush1.msra.mxu0 0.0
  %260 = vmatprep.subr.mxu0 0.0
  %261 = vmatpush1.msra.mxu0 0.0
  %262 = vmatprep.subr.mxu0 0.0
  %263 = vmatpush1.msra.mxu0 0.0
  %264 = vmatprep.subr.mxu0 0.0
  %265 = vmatpush1.msra.mxu0 0.0
  %266 = vmatprep.subr.mxu0 0.0
  %267 = vmatpush1.msra.mxu0 0.0
  %268 = vmatprep.subr.mxu0 0.0
  %269 = vmatpush1.msra.mxu0 0.0
  %270 = vmatprep.subr.mxu0 0.0
  %271 = vmatpush1.msra.mxu0 0.0
  %272 = vmatprep.subr.mxu0 0.0
  %273 = vmatpush1.msra.mxu0 0.0
  %274 = vmatprep.subr.mxu0 0.0
  %275 = vmatpush1.msra.mxu0 0.0
  %276 = vmatprep.subr.mxu0 0.0
  %277 = vmatpush1.msra.mxu0 0.0
  %278 = vmatprep.subr.mxu0 0.0
  %279 = vmatpush1.msra.mxu0 0.0
  %280 = vmatprep.subr.mxu0 0.0
  %281 = vmatpush1.msra.mxu0 0.0
  %282 = vmatprep.subr.mxu0 0.0
  %283 = vmatpush1.msra.mxu0 0.0
  %284 = vmatprep.subr.mxu0 0.0
  %285 = vmatpush1.msra.mxu0 0.0
  %286 = vmatprep.mubr.f32.mxu0 0.0
  %v287 = vand.u32 %v174, 4294901760
  %v288 = vsub.f32 %v174, %v287
  %v289 = vand.u32 %v288, 4294901760
  %v290 = vsub.f32 %v288, %v289
  %v291 = vand.u32 %v290, 4294901760
  %292 = vmatmul.mubr.f32.gmra.mrb[0].mxu0 %v291
  %v293 = vpop.f32.mrb[0].mxu0
  %v294 = vadd.f32 0.0, %v293
  %v295 = vpop.f32.mrb[0].mxu0
  %296 = vmatprep.mubr.f32.mxu0 0.0
  %v297 = vand.u32 %v175, 4294901760
  %v298 = vsub.f32 %v175, %v297
  %v299 = vand.u32 %v298, 4294901760
  %v300 = vsub.f32 %v298, %v299
  %v301 = vand.u32 %v300, 4294901760
  %302 = vmatmul.mubr.f32.gmra.mrb[0].mxu0 %v301
  %v303 = vpop.f32.mrb[0].mxu0
  %v304 = vadd.f32 0.0, %v303
  %v305 = vpop.f32.mrb[0].mxu0
  %306 = vmatprep.mubr.f32.mxu0 0.0
  %v307 = vand.u32 %v176, 4294901760
  %v308 = vsub.f32 %v176, %v307
  %v309 = vand.u32 %v308, 4294901760
  %v310 = vsub.f32 %v308, %v309
  %v311 = vand.u32 %v310, 4294901760
  %312 = vmatmul.mubr.f32.gmra.mrb[0].mxu0 %v311
  %v313 = vpop.f32.mrb[0].mxu0
  %v314 = vadd.f32 0.0, %v313
  %v315 = vpop.f32.mrb[0].mxu0
  %316 = vmatprep.mubr.f32.mxu0 0.0
  %v317 = vand.u32 %v177, 4294901760
  %v318 = vsub.f32 %v177, %v317
  %v319 = vand.u32 %v318, 4294901760
  %v320 = vsub.f32 %v318, %v319
  %v321 = vand.u32 %v320, 4294901760
  %322 = vmatmul.mubr.f32.gmra.mrb[0].mxu0 %v321
  %v323 = vpop.f32.mrb[0].mxu0
  %v324 = vadd.f32 0.0, %v323
  %v325 = vpop.f32.mrb[0].mxu0
  %326 = vmatprep.mubr.f32.mxu0 0.0
  %v327 = vand.u32 %v178, 4294901760
  %v328 = vsub.f32 %v178, %v327
  %v329 = vand.u32 %v328, 4294901760
  %v330 = vsub.f32 %v328, %v329
  %v331 = vand.u32 %v330, 4294901760
  %332 = vmatmul.mubr.f32.gmra.mrb[0].mxu0 %v331
  %v333 = vpop.f32.mrb[0].mxu0
  %v334 = vadd.f32 0.0, %v333
  %v335 = vpop.f32.mrb[0].mxu0
  %336 = vmatprep.mubr.f32.mxu0 0.0
  %v337 = vand.u32 %v179, 4294901760
  %v338 = vsub.f32 %v179, %v337
  %v339 = vand.u32 %v338, 4294901760
  %v340 = vsub.f32 %v338, %v339
  %v341 = vand.u32 %v340, 4294901760
  %342 = vmatmul.mubr.f32.gmra.mrb[0].mxu0 %v341
  %v343 = vpop.f32.mrb[0].mxu0
  %v344 = vadd.f32 0.0, %v343
  %v345 = vpop.f32.mrb[0].mxu0
  %346 = vmatprep.mubr.f32.mxu0 0.0
  %v347 = vand.u32 %v180, 4294901760
  %v348 = vsub.f32 %v180, %v347
  %v349 = vand.u32 %v348, 4294901760
  %v350 = vsub.f32 %v348, %v349
  %v351 = vand.u32 %v350, 4294901760
  %352 = vmatmul.mubr.f32.gmra.mrb[0].mxu0 %v351
  %v353 = vpop.f32.mrb[0].mxu0
  %v354 = vadd.f32 0.0, %v353
  %v355 = vpop.f32.mrb[0].mxu0
  %356 = vmatprep.mubr.f32.mxu0 0.0
  %v357 = vand.u32 %v181, 4294901760
  %v358 = vsub.f32 %v181, %v357
  %v359 = vand.u32 %v358, 4294901760
  %v360 = vsub.f32 %v358, %v359
  %v361 = vand.u32 %v360, 4294901760
  %362 = vmatmul.mubr.f32.gmra.mrb[0].mxu0 %v361
  %v363 = vpop.f32.mrb[0].mxu0
  %v364 = vadd.f32 0.0, %v363
  %v365 = vpop.f32.mrb[0].mxu0
  %366 = vmatprep.mubr.f32.mxu0 0.0
  %v367 = vand.u32 %v182, 4294901760
  %v368 = vsub.f32 %v182, %v367
  %v369 = vand.u32 %v368, 4294901760
  %v370 = vsub.f32 %v368, %v369
  %v371 = vand.u32 %v370, 4294901760
  %372 = vmatmul.mubr.f32.gmra.mrb[0].mxu0 %v371
  %v373 = vpop.f32.mrb[0].mxu0
  %v374 = vadd.f32 0.0, %v373
  %v375 = vpop.f32.mrb[0].mxu0
  %376 = vmatprep.mubr.f32.mxu0 0.0
  %v377 = vand.u32 %v183, 4294901760
  %v378 = vsub.f32 %v183, %v377
  %v379 = vand.u32 %v378, 4294901760
  %v380 = vsub.f32 %v378, %v379
  %v381 = vand.u32 %v380, 4294901760
  %382 = vmatmul.mubr.f32.gmra.mrb[0].mxu0 %v381
  %v383 = vpop.f32.mrb[0].mxu0
  %v384 = vadd.f32 0.0, %v383
  %v385 = vpop.f32.mrb[0].mxu0
  %386 = vmatprep.mubr.f32.mxu0 0.0
  %v387 = vand.u32 %v184, 4294901760
  %v388 = vsub.f32 %v184, %v387
  %v389 = vand.u32 %v388, 4294901760
  %v390 = vsub.f32 %v388, %v389
  %v391 = vand.u32 %v390, 4294901760
  %392 = vmatmul.mubr.f32.gmra.mrb[0].mxu0 %v391
  %v393 = vpop.f32.mrb[0].mxu0
  %v394 = vadd.f32 0.0, %v393
  %v395 = vpop.f32.mrb[0].mxu0
  %396 = vmatprep.mubr.f32.mxu0 0.0
  %v397 = vand.u32 %v185, 4294901760
  %v398 = vsub.f32 %v185, %v397
  %v399 = vand.u32 %v398, 4294901760
  %v400 = vsub.f32 %v398, %v399
  %v401 = vand.u32 %v400, 4294901760
  %402 = vmatmul.mubr.f32.gmra.mrb[0].mxu0 %v401
  %v403 = vpop.f32.mrb[0].mxu0
  %v404 = vadd.f32 0.0, %v403
  %v405 = vpop.f32.mrb[0].mxu0
  %406 = vmatprep.mubr.f32.mxu0 0.0
  %v407 = vand.u32 %v186, 4294901760
  %v408 = vsub.f32 %v186, %v407
  %v409 = vand.u32 %v408, 4294901760
  %v410 = vsub.f32 %v408, %v409
  %v411 = vand.u32 %v410, 4294901760
  %412 = vmatmul.mubr.f32.gmra.mrb[0].mxu0 %v411
  %v413 = vpop.f32.mrb[0].mxu0
  %v414 = vadd.f32 0.0, %v413
  %v415 = vpop.f32.mrb[0].mxu0
  %416 = vmatprep.mubr.f32.mxu0 0.0
  %v417 = vand.u32 %v187, 4294901760
  %v418 = vsub.f32 %v187, %v417
  %v419 = vand.u32 %v418, 4294901760
  %v420 = vsub.f32 %v418, %v419
  %v421 = vand.u32 %v420, 4294901760
  %422 = vmatmul.mubr.f32.gmra.mrb[0].mxu0 %v421
  %v423 = vpop.f32.mrb[0].mxu0
  %v424 = vadd.f32 0.0, %v423
  %v425 = vpop.f32.mrb[0].mxu0
  %426 = vmatprep.mubr.f32.mxu0 0.0
  %v427 = vand.u32 %v188, 4294901760
  %v428 = vsub.f32 %v188, %v427
  %v429 = vand.u32 %v428, 4294901760
  %v430 = vsub.f32 %v428, %v429
  %v431 = vand.u32 %v430, 4294901760
  %432 = vmatmul.mubr.f32.gmra.mrb[0].mxu0 %v431
  %v433 = vpop.f32.mrb[0].mxu0
  %v434 = vadd.f32 0.0, %v433
  %v435 = vpop.f32.mrb[0].mxu0
  %436 = vmatprep.mubr.f32.mxu0 0.0
  %v437 = vand.u32 %v189, 4294901760
  %v438 = vsub.f32 %v189, %v437
  %v439 = vand.u32 %v438, 4294901760
  %v440 = vsub.f32 %v438, %v439
  %v441 = vand.u32 %v440, 4294901760
  %442 = vmatmul.mubr.f32.gmra.mrb[0].mxu0 %v441
  %v443 = vpop.f32.mrb[0].mxu0
  %v444 = vadd.f32 0.0, %v443
  %v445 = vpop.f32.mrb[0].mxu0
  %446 = vdwg.mxu0
  %447 = vmatprep.subr.mxu0 0.0
  %v448 = vand.u32 %v190, 4294901760
  %v449 = vsub.f32 %v190, %v448
  %v450 = vand.u32 %v449, 4294901760
  %v451 = vsub.f32 %v449, %v450
  %v452 = vand.u32 %v451, 4294901760
  %453 = vmatpush1.msra.mxu0 %v452
  %454 = vmatprep.subr.mxu0 0.0
  %v455 = vand.u32 %v191, 4294901760
  %v456 = vsub.f32 %v191, %v455
  %v457 = vand.u32 %v456, 4294901760
  %v458 = vsub.f32 %v456, %v457
  %v459 = vand.u32 %v458, 4294901760
  %460 = vmatpush1.msra.mxu0 %v459
  %461 = vmatprep.subr.mxu0 0.0
  %v462 = vand.u32 %v192, 4294901760
  %v463 = vsub.f32 %v192, %v462
  %v464 = vand.u32 %v463, 4294901760
  %v465 = vsub.f32 %v463, %v464
  %v466 = vand.u32 %v465, 4294901760
  %467 = vmatpush1.msra.mxu0 %v466
  %468 = vmatprep.subr.mxu0 0.0
  %v469 = vand.u32 %v193, 4294901760
  %v470 = vsub.f32 %v193, %v469
  %v471 = vand.u32 %v470, 4294901760
  %v472 = vsub.f32 %v470, %v471
  %v473 = vand.u32 %v472, 4294901760
  %474 = vmatpush1.msra.mxu0 %v473
  %475 = vmatprep.subr.mxu0 0.0
  %v476 = vand.u32 %v194, 4294901760
  %v477 = vsub.f32 %v194, %v476
  %v478 = vand.u32 %v477, 4294901760
  %v479 = vsub.f32 %v477, %v478
  %v480 = vand.u32 %v479, 4294901760
  %481 = vmatpush1.msra.mxu0 %v480
  %482 = vmatprep.subr.mxu0 0.0
  %v483 = vand.u32 %v195, 4294901760
  %v484 = vsub.f32 %v195, %v483
  %v485 = vand.u32 %v484, 4294901760
  %v486 = vsub.f32 %v484, %v485
  %v487 = vand.u32 %v486, 4294901760
  %488 = vmatpush1.msra.mxu0 %v487
  %489 = vmatprep.subr.mxu0 0.0
  %v490 = vand.u32 %v196, 4294901760
  %v491 = vsub.f32 %v196, %v490
  %v492 = vand.u32 %v491, 4294901760
  %v493 = vsub.f32 %v491, %v492
  %v494 = vand.u32 %v493, 4294901760
  %495 = vmatpush1.msra.mxu0 %v494
  %496 = vmatprep.subr.mxu0 0.0
  %v497 = vand.u32 %v197, 4294901760
  %v498 = vsub.f32 %v197, %v497
  %v499 = vand.u32 %v498, 4294901760
  %v500 = vsub.f32 %v498, %v499
  %v501 = vand.u32 %v500, 4294901760
  %502 = vmatpush1.msra.mxu0 %v501
  %503 = vmatprep.subr.mxu0 0.0
  %v504 = vand.u32 %v198, 4294901760
  %v505 = vsub.f32 %v198, %v504
  %v506 = vand.u32 %v505, 4294901760
  %v507 = vsub.f32 %v505, %v506
  %v508 = vand.u32 %v507, 4294901760
  %509 = vmatpush1.msra.mxu0 %v508
  %510 = vmatprep.subr.mxu0 0.0
  %v511 = vand.u32 %v199, 4294901760
  %v512 = vsub.f32 %v199, %v511
  %v513 = vand.u32 %v512, 4294901760
  %v514 = vsub.f32 %v512, %v513
  %v515 = vand.u32 %v514, 4294901760
  %516 = vmatpush1.msra.mxu0 %v515
  %517 = vmatprep.subr.mxu0 0.0
  %v518 = vand.u32 %v200, 4294901760
  %v519 = vsub.f32 %v200, %v518
  %v520 = vand.u32 %v519, 4294901760
  %v521 = vsub.f32 %v519, %v520
  %v522 = vand.u32 %v521, 4294901760
  %523 = vmatpush1.msra.mxu0 %v522
  %524 = vmatprep.subr.mxu0 0.0
  %v525 = vand.u32 %v201, 4294901760
  %v526 = vsub.f32 %v201, %v525
  %v527 = vand.u32 %v526, 4294901760
  %v528 = vsub.f32 %v526, %v527
  %v529 = vand.u32 %v528, 4294901760
  %530 = vmatpush1.msra.mxu0 %v529
  %531 = vmatprep.subr.mxu0 0.0
  %v532 = vand.u32 %v202, 4294901760
  %v533 = vsub.f32 %v202, %v532
  %v534 = vand.u32 %v533, 4294901760
  %v535 = vsub.f32 %v533, %v534
  %v536 = vand.u32 %v535, 4294901760
  %537 = vmatpush1.msra.mxu0 %v536
  %538 = vmatprep.subr.mxu0 0.0
  %v539 = vand.u32 %v203, 4294901760
  %v540 = vsub.f32 %v203, %v539
  %v541 = vand.u32 %v540, 4294901760
  %v542 = vsub.f32 %v540, %v541
  %v543 = vand.u32 %v542, 4294901760
  %544 = vmatpush1.msra.mxu0 %v543
  %545 = vmatprep.subr.mxu0 0.0
  %v546 = vand.u32 %v204, 4294901760
  %v547 = vsub.f32 %v204, %v546
  %v548 = vand.u32 %v547, 4294901760
  %v549 = vsub.f32 %v547, %v548
  %v550 = vand.u32 %v549, 4294901760
  %551 = vmatpush1.msra.mxu0 %v550
  %552 = vmatprep.subr.mxu0 0.0
  %v553 = vand.u32 %v205, 4294901760
  %v554 = vsub.f32 %v205, %v553
  %v555 = vand.u32 %v554, 4294901760
  %v556 = vsub.f32 %v554, %v555
  %v557 = vand.u32 %v556, 4294901760
  %558 = vmatpush1.msra.mxu0 %v557
  %559 = vmatprep.subr.mxu0 0.0
  %560 = vmatpush1.msra.mxu0 0.0
  %561 = vmatprep.subr.mxu0 0.0
  %562 = vmatpush1.msra.mxu0 0.0
  %563 = vmatprep.subr.mxu0 0.0
  %564 = vmatpush1.msra.mxu0 0.0
  %565 = vmatprep.subr.mxu0 0.0
  %566 = vmatpush1.msra.mxu0 0.0
  %567 = vmatprep.subr.mxu0 0.0
  %568 = vmatpush1.msra.mxu0 0.0
  %569 = vmatprep.subr.mxu0 0.0
  %570 = vmatpush1.msra.mxu0 0.0
  %571 = vmatprep.subr.mxu0 0.0
  %572 = vmatpush1.msra.mxu0 0.0
  %573 = vmatprep.subr.mxu0 0.0
  %574 = vmatpush1.msra.mxu0 0.0
  %575 = vmatprep.subr.mxu0 0.0
  %576 = vmatpush1.msra.mxu0 0.0
  %577 = vmatprep.subr.mxu0 0.0
  %578 = vmatpush1.msra.mxu0 0.0
  %579 = vmatprep.subr.mxu0 0.0
  %580 = vmatpush1.msra.mxu0 0.0
  %581 = vmatprep.subr.mxu0 0.0
  %582 = vmatpush1.msra.mxu0 0.0
  %583 = vmatprep.subr.mxu0 0.0
  %584 = vmatpush1.msra.mxu0 0.0
  %585 = vmatprep.subr.mxu0 0.0
  %586 = vmatpush1.msra.mxu0 0.0
  %587 = vmatprep.subr.mxu0 0.0
  %588 = vmatpush1.msra.mxu0 0.0
  %589 = vmatprep.subr.mxu0 0.0
  %590 = vmatpush1.msra.mxu0 0.0
  %591 = vmatprep.mubr.f32.mxu0 0.0
  %v592 = vand.u32 %v174, 4294901760
  %593 = vmatmul.mubr.f32.gmra.mrb[0].mxu0 %v592
  %v594 = vpop.f32.mrb[0].mxu0
  %v595 = vadd.f32 %v294, %v594
  %v596 = vpop.f32.mrb[0].mxu0
  %597 = vmatprep.mubr.f32.mxu0 0.0
  %v598 = vand.u32 %v175, 4294901760
  %599 = vmatmul.mubr.f32.gmra.mrb[0].mxu0 %v598
  %v600 = vpop.f32.mrb[0].mxu0
  %v601 = vadd.f32 %v304, %v600
  %v602 = vpop.f32.mrb[0].mxu0
  %603 = vmatprep.mubr.f32.mxu0 0.0
  %v604 = vand.u32 %v176, 4294901760
  %605 = vmatmul.mubr.f32.gmra.mrb[0].mxu0 %v604
  %v606 = vpop.f32.mrb[0].mxu0
  %v607 = vadd.f32 %v314, %v606
  %v608 = vpop.f32.mrb[0].mxu0
  %609 = vmatprep.mubr.f32.mxu0 0.0
  %v610 = vand.u32 %v177, 4294901760
  %611 = vmatmul.mubr.f32.gmra.mrb[0].mxu0 %v610
  %v612 = vpop.f32.mrb[0].mxu0
  %v613 = vadd.f32 %v324, %v612
  %v614 = vpop.f32.mrb[0].mxu0
  %615 = vmatprep.mubr.f32.mxu0 0.0
  %v616 = vand.u32 %v178, 4294901760
  %617 = vmatmul.mubr.f32.gmra.mrb[0].mxu0 %v616
  %v618 = vpop.f32.mrb[0].mxu0
  %v619 = vadd.f32 %v334, %v618
  %v620 = vpop.f32.mrb[0].mxu0
  %621 = vmatprep.mubr.f32.mxu0 0.0
  %v622 = vand.u32 %v179, 4294901760
  %623 = vmatmul.mubr.f32.gmra.mrb[0].mxu0 %v622
  %v624 = vpop.f32.mrb[0].mxu0
  %v625 = vadd.f32 %v344, %v624
  %v626 = vpop.f32.mrb[0].mxu0
  %627 = vmatprep.mubr.f32.mxu0 0.0
  %v628 = vand.u32 %v180, 4294901760
  %629 = vmatmul.mubr.f32.gmra.mrb[0].mxu0 %v628
  %v630 = vpop.f32.mrb[0].mxu0
  %v631 = vadd.f32 %v354, %v630
  %v632 = vpop.f32.mrb[0].mxu0
  %633 = vmatprep.mubr.f32.mxu0 0.0
  %v634 = vand.u32 %v181, 4294901760
  %635 = vmatmul.mubr.f32.gmra.mrb[0].mxu0 %v634
  %v636 = vpop.f32.mrb[0].mxu0
  %v637 = vadd.f32 %v364, %v636
  %v638 = vpop.f32.mrb[0].mxu0
  %639 = vmatprep.mubr.f32.mxu0 0.0
  %v640 = vand.u32 %v182, 4294901760
  %641 = vmatmul.mubr.f32.gmra.mrb[0].mxu0 %v640
  %v642 = vpop.f32.mrb[0].mxu0
  %v643 = vadd.f32 %v374, %v642
  %v644 = vpop.f32.mrb[0].mxu0
  %645 = vmatprep.mubr.f32.mxu0 0.0
  %v646 = vand.u32 %v183, 4294901760
  %647 = vmatmul.mubr.f32.gmra.mrb[0].mxu0 %v646
  %v648 = vpop.f32.mrb[0].mxu0
  %v649 = vadd.f32 %v384, %v648
  %v650 = vpop.f32.mrb[0].mxu0
  %651 = vmatprep.mubr.f32.mxu0 0.0
  %v652 = vand.u32 %v184, 4294901760
  %653 = vmatmul.mubr.f32.gmra.mrb[0].mxu0 %v652
  %v654 = vpop.f32.mrb[0].mxu0
  %v655 = vadd.f32 %v394, %v654
  %v656 = vpop.f32.mrb[0].mxu0
  %657 = vmatprep.mubr.f32.mxu0 0.0
  %v658 = vand.u32 %v185, 4294901760
  %659 = vmatmul.mubr.f32.gmra.mrb[0].mxu0 %v658
  %v660 = vpop.f32.mrb[0].mxu0
  %v661 = vadd.f32 %v404, %v660
  %v662 = vpop.f32.mrb[0].mxu0
  %663 = vmatprep.mubr.f32.mxu0 0.0
  %v664 = vand.u32 %v186, 4294901760
  %665 = vmatmul.mubr.f32.gmra.mrb[0].mxu0 %v664
  %v666 = vpop.f32.mrb[0].mxu0
  %v667 = vadd.f32 %v414, %v666
  %v668 = vpop.f32.mrb[0].mxu0
  %669 = vmatprep.mubr.f32.mxu0 0.0
  %v670 = vand.u32 %v187, 4294901760
  %671 = vmatmul.mubr.f32.gmra.mrb[0].mxu0 %v670
  %v672 = vpop.f32.mrb[0].mxu0
  %v673 = vadd.f32 %v424, %v672
  %v674 = vpop.f32.mrb[0].mxu0
  %675 = vmatprep.mubr.f32.mxu0 0.0
  %v676 = vand.u32 %v188, 4294901760
  %677 = vmatmul.mubr.f32.gmra.mrb[0].mxu0 %v676
  %v678 = vpop.f32.mrb[0].mxu0
  %v679 = vadd.f32 %v434, %v678
  %v680 = vpop.f32.mrb[0].mxu0
  %681 = vmatprep.mubr.f32.mxu0 0.0
  %v682 = vand.u32 %v189, 4294901760
  %683 = vmatmul.mubr.f32.gmra.mrb[0].mxu0 %v682
  %v684 = vpop.f32.mrb[0].mxu0
  %v685 = vadd.f32 %v444, %v684
  %v686 = vpop.f32.mrb[0].mxu0
  %687 = vdwg.mxu0
  %688 = vmatprep.subr.mxu0 0.0
  %v689 = vand.u32 %v190, 4294901760
  %v690 = vsub.f32 %v190, %v689
  %691 = vmatpush1.msra.mxu0 %v690
  %692 = vmatprep.subr.mxu0 0.0
  %v693 = vand.u32 %v191, 4294901760
  %v694 = vsub.f32 %v191, %v693
  %695 = vmatpush1.msra.mxu0 %v694
  %696 = vmatprep.subr.mxu0 0.0
  %v697 = vand.u32 %v192, 4294901760
  %v698 = vsub.f32 %v192, %v697
  %699 = vmatpush1.msra.mxu0 %v698
  %700 = vmatprep.subr.mxu0 0.0
  %v701 = vand.u32 %v193, 4294901760
  %v702 = vsub.f32 %v193, %v701
  %703 = vmatpush1.msra.mxu0 %v702
  %704 = vmatprep.subr.mxu0 0.0
  %v705 = vand.u32 %v194, 4294901760
  %v706 = vsub.f32 %v194, %v705
  %707 = vmatpush1.msra.mxu0 %v706
  %708 = vmatprep.subr.mxu0 0.0
  %v709 = vand.u32 %v195, 4294901760
  %v710 = vsub.f32 %v195, %v709
  %711 = vmatpush1.msra.mxu0 %v710
  %712 = vmatprep.subr.mxu0 0.0
  %v713 = vand.u32 %v196, 4294901760
  %v714 = vsub.f32 %v196, %v713
  %715 = vmatpush1.msra.mxu0 %v714
  %716 = vmatprep.subr.mxu0 0.0
  %v717 = vand.u32 %v197, 4294901760
  %v718 = vsub.f32 %v197, %v717
  %719 = vmatpush1.msra.mxu0 %v718
  %720 = vmatprep.subr.mxu0 0.0
  %v721 = vand.u32 %v198, 4294901760
  %v722 = vsub.f32 %v198, %v721
  %723 = vmatpush1.msra.mxu0 %v722
  %724 = vmatprep.subr.mxu0 0.0
  %v725 = vand.u32 %v199, 4294901760
  %v726 = vsub.f32 %v199, %v725
  %727 = vmatpush1.msra.mxu0 %v726
  %728 = vmatprep.subr.mxu0 0.0
  %v729 = vand.u32 %v200, 4294901760
  %v730 = vsub.f32 %v200, %v729
  %731 = vmatpush1.msra.mxu0 %v730
  %732 = vmatprep.subr.mxu0 0.0
  %v733 = vand.u32 %v201, 4294901760
  %v734 = vsub.f32 %v201, %v733
  %735 = vmatpush1.msra.mxu0 %v734
  %736 = vmatprep.subr.mxu0 0.0
  %v737 = vand.u32 %v202, 4294901760
  %v738 = vsub.f32 %v202, %v737
  %739 = vmatpush1.msra.mxu0 %v738
  %740 = vmatprep.subr.mxu0 0.0
  %v741 = vand.u32 %v203, 4294901760
  %v742 = vsub.f32 %v203, %v741
  %743 = vmatpush1.msra.mxu0 %v742
  %744 = vmatprep.subr.mxu0 0.0
  %v745 = vand.u32 %v204, 4294901760
  %v746 = vsub.f32 %v204, %v745
  %747 = vmatpush1.msra.mxu0 %v746
  %748 = vmatprep.subr.mxu0 0.0
  %v749 = vand.u32 %v205, 4294901760
  %v750 = vsub.f32 %v205, %v749
  %751 = vmatpush1.msra.mxu0 %v750
  %752 = vmatprep.subr.mxu0 0.0
  %753 = vmatpush1.msra.mxu0 0.0
  %754 = vmatprep.subr.mxu0 0.0
  %755 = vmatpush1.msra.mxu0 0.0
  %756 = vmatprep.subr.mxu0 0.0
  %757 = vmatpush1.msra.mxu0 0.0
  %758 = vmatprep.subr.mxu0 0.0
  %759 = vmatpush1.msra.mxu0 0.0
  %760 = vmatprep.subr.mxu0 0.0
  %761 = vmatpush1.msra.mxu0 0.0
  %762 = vmatprep.subr.mxu0 0.0
  %763 = vmatpush1.msra.mxu0 0.0
  %764 = vmatprep.subr.mxu0 0.0
  %765 = vmatpush1.msra.mxu0 0.0
  %766 = vmatprep.subr.mxu0 0.0
  %767 = vmatpush1.msra.mxu0 0.0
  %768 = vmatprep.subr.mxu0 0.0
  %769 = vmatpush1.msra.mxu0 0.0
  %770 = vmatprep.subr.mxu0 0.0
  %771 = vmatpush1.msra.mxu0 0.0
  %772 = vmatprep.subr.mxu0 0.0
  %773 = vmatpush1.msra.mxu0 0.0
  %774 = vmatprep.subr.mxu0 0.0
  %775 = vmatpush1.msra.mxu0 0.0
  %776 = vmatprep.subr.mxu0 0.0
  %777 = vmatpush1.msra.mxu0 0.0
  %778 = vmatprep.subr.mxu0 0.0
  %779 = vmatpush1.msra.mxu0 0.0
  %780 = vmatprep.subr.mxu0 0.0
  %781 = vmatpush1.msra.mxu0 0.0
  %782 = vmatprep.subr.mxu0 0.0
  %783 = vmatpush1.msra.mxu0 0.0
  %784 = vmatprep.mubr.f32.mxu0 0.0
  %v785 = vand.u32 %v174, 4294901760
  %v786 = vsub.f32 %v174, %v785
  %787 = vmatmul.mubr.f32.gmra.mrb[0].mxu0 %v786
  %v788 = vpop.f32.mrb[0].mxu0
  %v789 = vadd.f32 %v595, %v788
  %v790 = vpop.f32.mrb[0].mxu0
  %791 = vmatprep.mubr.f32.mxu0 0.0
  %v792 = vand.u32 %v175, 4294901760
  %v793 = vsub.f32 %v175, %v792
  %794 = vmatmul.mubr.f32.gmra.mrb[0].mxu0 %v793
  %v795 = vpop.f32.mrb[0].mxu0
  %v796 = vadd.f32 %v601, %v795
  %v797 = vpop.f32.mrb[0].mxu0
  %798 = vmatprep.mubr.f32.mxu0 0.0
  %v799 = vand.u32 %v176, 4294901760
  %v800 = vsub.f32 %v176, %v799
  %801 = vmatmul.mubr.f32.gmra.mrb[0].mxu0 %v800
  %v802 = vpop.f32.mrb[0].mxu0
  %v803 = vadd.f32 %v607, %v802
  %v804 = vpop.f32.mrb[0].mxu0
  %805 = vmatprep.mubr.f32.mxu0 0.0
  %v806 = vand.u32 %v177, 4294901760
  %v807 = vsub.f32 %v177, %v806
  %808 = vmatmul.mubr.f32.gmra.mrb[0].mxu0 %v807
  %v809 = vpop.f32.mrb[0].mxu0
  %v810 = vadd.f32 %v613, %v809
  %v811 = vpop.f32.mrb[0].mxu0
  %812 = vmatprep.mubr.f32.mxu0 0.0
  %v813 = vand.u32 %v178, 4294901760
  %v814 = vsub.f32 %v178, %v813
  %815 = vmatmul.mubr.f32.gmra.mrb[0].mxu0 %v814
  %v816 = vpop.f32.mrb[0].mxu0
  %v817 = vadd.f32 %v619, %v816
  %v818 = vpop.f32.mrb[0].mxu0
  %819 = vmatprep.mubr.f32.mxu0 0.0
  %v820 = vand.u32 %v179, 4294901760
  %v821 = vsub.f32 %v179, %v820
  %822 = vmatmul.mubr.f32.gmra.mrb[0].mxu0 %v821
  %v823 = vpop.f32.mrb[0].mxu0
  %v824 = vadd.f32 %v625, %v823
  %v825 = vpop.f32.mrb[0].mxu0
  %826 = vmatprep.mubr.f32.mxu0 0.0
  %v827 = vand.u32 %v180, 4294901760
  %v828 = vsub.f32 %v180, %v827
  %829 = vmatmul.mubr.f32.gmra.mrb[0].mxu0 %v828
  %v830 = vpop.f32.mrb[0].mxu0
  %v831 = vadd.f32 %v631, %v830
  %v832 = vpop.f32.mrb[0].mxu0
  %833 = vmatprep.mubr.f32.mxu0 0.0
  %v834 = vand.u32 %v181, 4294901760
  %v835 = vsub.f32 %v181, %v834
  %836 = vmatmul.mubr.f32.gmra.mrb[0].mxu0 %v835
  %v837 = vpop.f32.mrb[0].mxu0
  %v838 = vadd.f32 %v637, %v837
  %v839 = vpop.f32.mrb[0].mxu0
  %840 = vmatprep.mubr.f32.mxu0 0.0
  %v841 = vand.u32 %v182, 4294901760
  %v842 = vsub.f32 %v182, %v841
  %843 = vmatmul.mubr.f32.gmra.mrb[0].mxu0 %v842
  %v844 = vpop.f32.mrb[0].mxu0
  %v845 = vadd.f32 %v643, %v844
  %v846 = vpop.f32.mrb[0].mxu0
  %847 = vmatprep.mubr.f32.mxu0 0.0
  %v848 = vand.u32 %v183, 4294901760
  %v849 = vsub.f32 %v183, %v848
  %850 = vmatmul.mubr.f32.gmra.mrb[0].mxu0 %v849
  %v851 = vpop.f32.mrb[0].mxu0
  %v852 = vadd.f32 %v649, %v851
  %v853 = vpop.f32.mrb[0].mxu0
  %854 = vmatprep.mubr.f32.mxu0 0.0
  %v855 = vand.u32 %v184, 4294901760
  %v856 = vsub.f32 %v184, %v855
  %857 = vmatmul.mubr.f32.gmra.mrb[0].mxu0 %v856
  %v858 = vpop.f32.mrb[0].mxu0
  %v859 = vadd.f32 %v655, %v858
  %v860 = vpop.f32.mrb[0].mxu0
  %861 = vmatprep.mubr.f32.mxu0 0.0
  %v862 = vand.u32 %v185, 4294901760
  %v863 = vsub.f32 %v185, %v862
  %864 = vmatmul.mubr.f32.gmra.mrb[0].mxu0 %v863
  %v865 = vpop.f32.mrb[0].mxu0
  %v866 = vadd.f32 %v661, %v865
  %v867 = vpop.f32.mrb[0].mxu0
  %868 = vmatprep.mubr.f32.mxu0 0.0
  %v869 = vand.u32 %v186, 4294901760
  %v870 = vsub.f32 %v186, %v869
  %871 = vmatmul.mubr.f32.gmra.mrb[0].mxu0 %v870
  %v872 = vpop.f32.mrb[0].mxu0
  %v873 = vadd.f32 %v667, %v872
  %v874 = vpop.f32.mrb[0].mxu0
  %875 = vmatprep.mubr.f32.mxu0 0.0
  %v876 = vand.u32 %v187, 4294901760
  %v877 = vsub.f32 %v187, %v876
  %878 = vmatmul.mubr.f32.gmra.mrb[0].mxu0 %v877
  %v879 = vpop.f32.mrb[0].mxu0
  %v880 = vadd.f32 %v673, %v879
  %v881 = vpop.f32.mrb[0].mxu0
  %882 = vmatprep.mubr.f32.mxu0 0.0
  %v883 = vand.u32 %v188, 4294901760
  %v884 = vsub.f32 %v188, %v883
  %885 = vmatmul.mubr.f32.gmra.mrb[0].mxu0 %v884
  %v886 = vpop.f32.mrb[0].mxu0
  %v887 = vadd.f32 %v679, %v886
  %v888 = vpop.f32.mrb[0].mxu0
  %889 = vmatprep.mubr.f32.mxu0 0.0
  %v890 = vand.u32 %v189, 4294901760
  %v891 = vsub.f32 %v189, %v890
  %892 = vmatmul.mubr.f32.gmra.mrb[0].mxu0 %v891
  %v893 = vpop.f32.mrb[0].mxu0
  %v894 = vadd.f32 %v685, %v893
  %v895 = vpop.f32.mrb[0].mxu0
  %896 = vdwg.mxu0
  %897 = vmatprep.subr.mxu0 0.0
  %v898 = vand.u32 %v190, 4294901760
  %899 = vmatpush1.msra.mxu0 %v898
  %900 = vmatprep.subr.mxu0 0.0
  %v901 = vand.u32 %v191, 4294901760
  %902 = vmatpush1.msra.mxu0 %v901
  %903 = vmatprep.subr.mxu0 0.0
  %v904 = vand.u32 %v192, 4294901760
  %905 = vmatpush1.msra.mxu0 %v904
  %906 = vmatprep.subr.mxu0 0.0
  %v907 = vand.u32 %v193, 4294901760
  %908 = vmatpush1.msra.mxu0 %v907
  %909 = vmatprep.subr.mxu0 0.0
  %v910 = vand.u32 %v194, 4294901760
  %911 = vmatpush1.msra.mxu0 %v910
  %912 = vmatprep.subr.mxu0 0.0
  %v913 = vand.u32 %v195, 4294901760
  %914 = vmatpush1.msra.mxu0 %v913
  %915 = vmatprep.subr.mxu0 0.0
  %v916 = vand.u32 %v196, 4294901760
  %917 = vmatpush1.msra.mxu0 %v916
  %918 = vmatprep.subr.mxu0 0.0
  %v919 = vand.u32 %v197, 4294901760
  %920 = vmatpush1.msra.mxu0 %v919
  %921 = vmatprep.subr.mxu0 0.0
  %v922 = vand.u32 %v198, 4294901760
  %923 = vmatpush1.msra.mxu0 %v922
  %924 = vmatprep.subr.mxu0 0.0
  %v925 = vand.u32 %v199, 4294901760
  %926 = vmatpush1.msra.mxu0 %v925
  %927 = vmatprep.subr.mxu0 0.0
  %v928 = vand.u32 %v200, 4294901760
  %929 = vmatpush1.msra.mxu0 %v928
  %930 = vmatprep.subr.mxu0 0.0
  %v931 = vand.u32 %v201, 4294901760
  %932 = vmatpush1.msra.mxu0 %v931
  %933 = vmatprep.subr.mxu0 0.0
  %v934 = vand.u32 %v202, 4294901760
  %935 = vmatpush1.msra.mxu0 %v934
  %936 = vmatprep.subr.mxu0 0.0
  %v937 = vand.u32 %v203, 4294901760
  %938 = vmatpush1.msra.mxu0 %v937
  %939 = vmatprep.subr.mxu0 0.0
  %v940 = vand.u32 %v204, 4294901760
  %941 = vmatpush1.msra.mxu0 %v940
  %942 = vmatprep.subr.mxu0 0.0
  %v943 = vand.u32 %v205, 4294901760
  %944 = vmatpush1.msra.mxu0 %v943
  %945 = vmatprep.subr.mxu0 0.0
  %946 = vmatpush1.msra.mxu0 0.0
  %947 = vmatprep.subr.mxu0 0.0
  %948 = vmatpush1.msra.mxu0 0.0
  %949 = vmatprep.subr.mxu0 0.0
  %950 = vmatpush1.msra.mxu0 0.0
  %951 = vmatprep.subr.mxu0 0.0
  %952 = vmatpush1.msra.mxu0 0.0
  %953 = vmatprep.subr.mxu0 0.0
  %954 = vmatpush1.msra.mxu0 0.0
  %955 = vmatprep.subr.mxu0 0.0
  %956 = vmatpush1.msra.mxu0 0.0
  %957 = vmatprep.subr.mxu0 0.0
  %958 = vmatpush1.msra.mxu0 0.0
  %959 = vmatprep.subr.mxu0 0.0
  %960 = vmatpush1.msra.mxu0 0.0
  %961 = vmatprep.subr.mxu0 0.0
  %962 = vmatpush1.msra.mxu0 0.0
  %963 = vmatprep.subr.mxu0 0.0
  %964 = vmatpush1.msra.mxu0 0.0
  %965 = vmatprep.subr.mxu0 0.0
  %966 = vmatpush1.msra.mxu0 0.0
  %967 = vmatprep.subr.mxu0 0.0
  %968 = vmatpush1.msra.mxu0 0.0
  %969 = vmatprep.subr.mxu0 0.0
  %970 = vmatpush1.msra.mxu0 0.0
  %971 = vmatprep.subr.mxu0 0.0
  %972 = vmatpush1.msra.mxu0 0.0
  %973 = vmatprep.subr.mxu0 0.0
  %974 = vmatpush1.msra.mxu0 0.0
  %975 = vmatprep.subr.mxu0 0.0
  %976 = vmatpush1.msra.mxu0 0.0
  %977 = vmatprep.mubr.f32.mxu0 0.0
  %v978 = vand.u32 %v174, 4294901760
  %v979 = vsub.f32 %v174, %v978
  %v980 = vand.u32 %v979, 4294901760
  %981 = vmatmul.mubr.f32.gmra.mrb[0].mxu0 %v980
  %v982 = vpop.f32.mrb[0].mxu0
  %v983 = vadd.f32 %v789, %v982
  %v984 = vpop.f32.mrb[0].mxu0
  %985 = vmatprep.mubr.f32.mxu0 0.0
  %v986 = vand.u32 %v175, 4294901760
  %v987 = vsub.f32 %v175, %v986
  %v988 = vand.u32 %v987, 4294901760
  %989 = vmatmul.mubr.f32.gmra.mrb[0].mxu0 %v988
  %v990 = vpop.f32.mrb[0].mxu0
  %v991 = vadd.f32 %v796, %v990
  %v992 = vpop.f32.mrb[0].mxu0
  %993 = vmatprep.mubr.f32.mxu0 0.0
  %v994 = vand.u32 %v176, 4294901760
  %v995 = vsub.f32 %v176, %v994
  %v996 = vand.u32 %v995, 4294901760
  %997 = vmatmul.mubr.f32.gmra.mrb[0].mxu0 %v996
  %v998 = vpop.f32.mrb[0].mxu0
  %v999 = vadd.f32 %v803, %v998
  %v1000 = vpop.f32.mrb[0].mxu0
  %1001 = vmatprep.mubr.f32.mxu0 0.0
  %v1002 = vand.u32 %v177, 4294901760
  %v1003 = vsub.f32 %v177, %v1002
  %v1004 = vand.u32 %v1003, 4294901760
  %1005 = vmatmul.mubr.f32.gmra.mrb[0].mxu0 %v1004
  %v1006 = vpop.f32.mrb[0].mxu0
  %v1007 = vadd.f32 %v810, %v1006
  %v1008 = vpop.f32.mrb[0].mxu0
  %1009 = vmatprep.mubr.f32.mxu0 0.0
  %v1010 = vand.u32 %v178, 4294901760
  %v1011 = vsub.f32 %v178, %v1010
  %v1012 = vand.u32 %v1011, 4294901760
  %1013 = vmatmul.mubr.f32.gmra.mrb[0].mxu0 %v1012
  %v1014 = vpop.f32.mrb[0].mxu0
  %v1015 = vadd.f32 %v817, %v1014
  %v1016 = vpop.f32.mrb[0].mxu0
  %1017 = vmatprep.mubr.f32.mxu0 0.0
  %v1018 = vand.u32 %v179, 4294901760
  %v1019 = vsub.f32 %v179, %v1018
  %v1020 = vand.u32 %v1019, 4294901760
  %1021 = vmatmul.mubr.f32.gmra.mrb[0].mxu0 %v1020
  %v1022 = vpop.f32.mrb[0].mxu0
  %v1023 = vadd.f32 %v824, %v1022
  %v1024 = vpop.f32.mrb[0].mxu0
  %1025 = vmatprep.mubr.f32.mxu0 0.0
  %v1026 = vand.u32 %v180, 4294901760
  %v1027 = vsub.f32 %v180, %v1026
  %v1028 = vand.u32 %v1027, 4294901760
  %1029 = vmatmul.mubr.f32.gmra.mrb[0].mxu0 %v1028
  %v1030 = vpop.f32.mrb[0].mxu0
  %v1031 = vadd.f32 %v831, %v1030
  %v1032 = vpop.f32.mrb[0].mxu0
  %1033 = vmatprep.mubr.f32.mxu0 0.0
  %v1034 = vand.u32 %v181, 4294901760
  %v1035 = vsub.f32 %v181, %v1034
  %v1036 = vand.u32 %v1035, 4294901760
  %1037 = vmatmul.mubr.f32.gmra.mrb[0].mxu0 %v1036
  %v1038 = vpop.f32.mrb[0].mxu0
  %v1039 = vadd.f32 %v838, %v1038
  %v1040 = vpop.f32.mrb[0].mxu0
  %1041 = vmatprep.mubr.f32.mxu0 0.0
  %v1042 = vand.u32 %v182, 4294901760
  %v1043 = vsub.f32 %v182, %v1042
  %v1044 = vand.u32 %v1043, 4294901760
  %1045 = vmatmul.mubr.f32.gmra.mrb[0].mxu0 %v1044
  %v1046 = vpop.f32.mrb[0].mxu0
  %v1047 = vadd.f32 %v845, %v1046
  %v1048 = vpop.f32.mrb[0].mxu0
  %1049 = vmatprep.mubr.f32.mxu0 0.0
  %v1050 = vand.u32 %v183, 4294901760
  %v1051 = vsub.f32 %v183, %v1050
  %v1052 = vand.u32 %v1051, 4294901760
  %1053 = vmatmul.mubr.f32.gmra.mrb[0].mxu0 %v1052
  %v1054 = vpop.f32.mrb[0].mxu0
  %v1055 = vadd.f32 %v852, %v1054
  %v1056 = vpop.f32.mrb[0].mxu0
  %1057 = vmatprep.mubr.f32.mxu0 0.0
  %v1058 = vand.u32 %v184, 4294901760
  %v1059 = vsub.f32 %v184, %v1058
  %v1060 = vand.u32 %v1059, 4294901760
  %1061 = vmatmul.mubr.f32.gmra.mrb[0].mxu0 %v1060
  %v1062 = vpop.f32.mrb[0].mxu0
  %v1063 = vadd.f32 %v859, %v1062
  %v1064 = vpop.f32.mrb[0].mxu0
  %1065 = vmatprep.mubr.f32.mxu0 0.0
  %v1066 = vand.u32 %v185, 4294901760
  %v1067 = vsub.f32 %v185, %v1066
  %v1068 = vand.u32 %v1067, 4294901760
  %1069 = vmatmul.mubr.f32.gmra.mrb[0].mxu0 %v1068
  %v1070 = vpop.f32.mrb[0].mxu0
  %v1071 = vadd.f32 %v866, %v1070
  %v1072 = vpop.f32.mrb[0].mxu0
  %1073 = vmatprep.mubr.f32.mxu0 0.0
  %v1074 = vand.u32 %v186, 4294901760
  %v1075 = vsub.f32 %v186, %v1074
  %v1076 = vand.u32 %v1075, 4294901760
  %1077 = vmatmul.mubr.f32.gmra.mrb[0].mxu0 %v1076
  %v1078 = vpop.f32.mrb[0].mxu0
  %v1079 = vadd.f32 %v873, %v1078
  %v1080 = vpop.f32.mrb[0].mxu0
  %1081 = vmatprep.mubr.f32.mxu0 0.0
  %v1082 = vand.u32 %v187, 4294901760
  %v1083 = vsub.f32 %v187, %v1082
  %v1084 = vand.u32 %v1083, 4294901760
  %1085 = vmatmul.mubr.f32.gmra.mrb[0].mxu0 %v1084
  %v1086 = vpop.f32.mrb[0].mxu0
  %v1087 = vadd.f32 %v880, %v1086
  %v1088 = vpop.f32.mrb[0].mxu0
  %1089 = vmatprep.mubr.f32.mxu0 0.0
  %v1090 = vand.u32 %v188, 4294901760
  %v1091 = vsub.f32 %v188, %v1090
  %v1092 = vand.u32 %v1091, 4294901760
  %1093 = vmatmul.mubr.f32.gmra.mrb[0].mxu0 %v1092
  %v1094 = vpop.f32.mrb[0].mxu0
  %v1095 = vadd.f32 %v887, %v1094
  %v1096 = vpop.f32.mrb[0].mxu0
  %1097 = vmatprep.mubr.f32.mxu0 0.0
  %v1098 = vand.u32 %v189, 4294901760
  %v1099 = vsub.f32 %v189, %v1098
  %v1100 = vand.u32 %v1099, 4294901760
  %1101 = vmatmul.mubr.f32.gmra.mrb[0].mxu0 %v1100
  %v1102 = vpop.f32.mrb[0].mxu0
  %v1103 = vadd.f32 %v894, %v1102
  %v1104 = vpop.f32.mrb[0].mxu0
  %1105 = vdwg.mxu0
  %1106 = vmatprep.subr.mxu0 0.0
  %v1107 = vand.u32 %v190, 4294901760
  %v1108 = vsub.f32 %v190, %v1107
  %v1109 = vand.u32 %v1108, 4294901760
  %1110 = vmatpush1.msra.mxu0 %v1109
  %1111 = vmatprep.subr.mxu0 0.0
  %v1112 = vand.u32 %v191, 4294901760
  %v1113 = vsub.f32 %v191, %v1112
  %v1114 = vand.u32 %v1113, 4294901760
  %1115 = vmatpush1.msra.mxu0 %v1114
  %1116 = vmatprep.subr.mxu0 0.0
  %v1117 = vand.u32 %v192, 4294901760
  %v1118 = vsub.f32 %v192, %v1117
  %v1119 = vand.u32 %v1118, 4294901760
  %1120 = vmatpush1.msra.mxu0 %v1119
  %1121 = vmatprep.subr.mxu0 0.0
  %v1122 = vand.u32 %v193, 4294901760
  %v1123 = vsub.f32 %v193, %v1122
  %v1124 = vand.u32 %v1123, 4294901760
  %1125 = vmatpush1.msra.mxu0 %v1124
  %1126 = vmatprep.subr.mxu0 0.0
  %v1127 = vand.u32 %v194, 4294901760
  %v1128 = vsub.f32 %v194, %v1127
  %v1129 = vand.u32 %v1128, 4294901760
  %1130 = vmatpush1.msra.mxu0 %v1129
  %1131 = vmatprep.subr.mxu0 0.0
  %v1132 = vand.u32 %v195, 4294901760
  %v1133 = vsub.f32 %v195, %v1132
  %v1134 = vand.u32 %v1133, 4294901760
  %1135 = vmatpush1.msra.mxu0 %v1134
  %1136 = vmatprep.subr.mxu0 0.0
  %v1137 = vand.u32 %v196, 4294901760
  %v1138 = vsub.f32 %v196, %v1137
  %v1139 = vand.u32 %v1138, 4294901760
  %1140 = vmatpush1.msra.mxu0 %v1139
  %1141 = vmatprep.subr.mxu0 0.0
  %v1142 = vand.u32 %v197, 4294901760
  %v1143 = vsub.f32 %v197, %v1142
  %v1144 = vand.u32 %v1143, 4294901760
  %1145 = vmatpush1.msra.mxu0 %v1144
  %1146 = vmatprep.subr.mxu0 0.0
  %v1147 = vand.u32 %v198, 4294901760
  %v1148 = vsub.f32 %v198, %v1147
  %v1149 = vand.u32 %v1148, 4294901760
  %1150 = vmatpush1.msra.mxu0 %v1149
  %1151 = vmatprep.subr.mxu0 0.0
  %v1152 = vand.u32 %v199, 4294901760
  %v1153 = vsub.f32 %v199, %v1152
  %v1154 = vand.u32 %v1153, 4294901760
  %1155 = vmatpush1.msra.mxu0 %v1154
  %1156 = vmatprep.subr.mxu0 0.0
  %v1157 = vand.u32 %v200, 4294901760
  %v1158 = vsub.f32 %v200, %v1157
  %v1159 = vand.u32 %v1158, 4294901760
  %1160 = vmatpush1.msra.mxu0 %v1159
  %1161 = vmatprep.subr.mxu0 0.0
  %v1162 = vand.u32 %v201, 4294901760
  %v1163 = vsub.f32 %v201, %v1162
  %v1164 = vand.u32 %v1163, 4294901760
  %1165 = vmatpush1.msra.mxu0 %v1164
  %1166 = vmatprep.subr.mxu0 0.0
  %v1167 = vand.u32 %v202, 4294901760
  %v1168 = vsub.f32 %v202, %v1167
  %v1169 = vand.u32 %v1168, 4294901760
  %1170 = vmatpush1.msra.mxu0 %v1169
  %1171 = vmatprep.subr.mxu0 0.0
  %v1172 = vand.u32 %v203, 4294901760
  %v1173 = vsub.f32 %v203, %v1172
  %v1174 = vand.u32 %v1173, 4294901760
  %1175 = vmatpush1.msra.mxu0 %v1174
  %1176 = vmatprep.subr.mxu0 0.0
  %v1177 = vand.u32 %v204, 4294901760
  %v1178 = vsub.f32 %v204, %v1177
  %v1179 = vand.u32 %v1178, 4294901760
  %1180 = vmatpush1.msra.mxu0 %v1179
  %1181 = vmatprep.subr.mxu0 0.0
  %v1182 = vand.u32 %v205, 4294901760
  %v1183 = vsub.f32 %v205, %v1182
  %v1184 = vand.u32 %v1183, 4294901760
  %1185 = vmatpush1.msra.mxu0 %v1184
  %1186 = vmatprep.subr.mxu0 0.0
  %1187 = vmatpush1.msra.mxu0 0.0
  %1188 = vmatprep.subr.mxu0 0.0
  %1189 = vmatpush1.msra.mxu0 0.0
  %1190 = vmatprep.subr.mxu0 0.0
  %1191 = vmatpush1.msra.mxu0 0.0
  %1192 = vmatprep.subr.mxu0 0.0
  %1193 = vmatpush1.msra.mxu0 0.0
  %1194 = vmatprep.subr.mxu0 0.0
  %1195 = vmatpush1.msra.mxu0 0.0
  %1196 = vmatprep.subr.mxu0 0.0
  %1197 = vmatpush1.msra.mxu0 0.0
  %1198 = vmatprep.subr.mxu0 0.0
  %1199 = vmatpush1.msra.mxu0 0.0
  %1200 = vmatprep.subr.mxu0 0.0
  %1201 = vmatpush1.msra.mxu0 0.0
  %1202 = vmatprep.subr.mxu0 0.0
  %1203 = vmatpush1.msra.mxu0 0.0
  %1204 = vmatprep.subr.mxu0 0.0
  %1205 = vmatpush1.msra.mxu0 0.0
  %1206 = vmatprep.subr.mxu0 0.0
  %1207 = vmatpush1.msra.mxu0 0.0
  %1208 = vmatprep.subr.mxu0 0.0
  %1209 = vmatpush1.msra.mxu0 0.0
  %1210 = vmatprep.subr.mxu0 0.0
  %1211 = vmatpush1.msra.mxu0 0.0
  %1212 = vmatprep.subr.mxu0 0.0
  %1213 = vmatpush1.msra.mxu0 0.0
  %1214 = vmatprep.subr.mxu0 0.0
  %1215 = vmatpush1.msra.mxu0 0.0
  %1216 = vmatprep.subr.mxu0 0.0
  %1217 = vmatpush1.msra.mxu0 0.0
  %1218 = vmatprep.mubr.f32.mxu0 0.0
  %v1219 = vand.u32 %v174, 4294901760
  %1220 = vmatmul.mubr.f32.gmra.mrb[0].mxu0 %v1219
  %v1221 = vpop.f32.mrb[0].mxu0
  %v1222 = vadd.f32 %v983, %v1221
  %v1223 = vpop.f32.mrb[0].mxu0
  %1224 = vmatprep.mubr.f32.mxu0 0.0
  %v1225 = vand.u32 %v175, 4294901760
  %1226 = vmatmul.mubr.f32.gmra.mrb[0].mxu0 %v1225
  %v1227 = vpop.f32.mrb[0].mxu0
  %v1228 = vadd.f32 %v991, %v1227
  %v1229 = vpop.f32.mrb[0].mxu0
  %1230 = vmatprep.mubr.f32.mxu0 0.0
  %v1231 = vand.u32 %v176, 4294901760
  %1232 = vmatmul.mubr.f32.gmra.mrb[0].mxu0 %v1231
  %v1233 = vpop.f32.mrb[0].mxu0
  %v1234 = vadd.f32 %v999, %v1233
  %v1235 = vpop.f32.mrb[0].mxu0
  %1236 = vmatprep.mubr.f32.mxu0 0.0
  %v1237 = vand.u32 %v177, 4294901760
  %1238 = vmatmul.mubr.f32.gmra.mrb[0].mxu0 %v1237
  %v1239 = vpop.f32.mrb[0].mxu0
  %v1240 = vadd.f32 %v1007, %v1239
  %v1241 = vpop.f32.mrb[0].mxu0
  %1242 = vmatprep.mubr.f32.mxu0 0.0
  %v1243 = vand.u32 %v178, 4294901760
  %1244 = vmatmul.mubr.f32.gmra.mrb[0].mxu0 %v1243
  %v1245 = vpop.f32.mrb[0].mxu0
  %v1246 = vadd.f32 %v1015, %v1245
  %v1247 = vpop.f32.mrb[0].mxu0
  %1248 = vmatprep.mubr.f32.mxu0 0.0
  %v1249 = vand.u32 %v179, 4294901760
  %1250 = vmatmul.mubr.f32.gmra.mrb[0].mxu0 %v1249
  %v1251 = vpop.f32.mrb[0].mxu0
  %v1252 = vadd.f32 %v1023, %v1251
  %v1253 = vpop.f32.mrb[0].mxu0
  %1254 = vmatprep.mubr.f32.mxu0 0.0
  %v1255 = vand.u32 %v180, 4294901760
  %1256 = vmatmul.mubr.f32.gmra.mrb[0].mxu0 %v1255
  %v1257 = vpop.f32.mrb[0].mxu0
  %v1258 = vadd.f32 %v1031, %v1257
  %v1259 = vpop.f32.mrb[0].mxu0
  %1260 = vmatprep.mubr.f32.mxu0 0.0
  %v1261 = vand.u32 %v181, 4294901760
  %1262 = vmatmul.mubr.f32.gmra.mrb[0].mxu0 %v1261
  %v1263 = vpop.f32.mrb[0].mxu0
  %v1264 = vadd.f32 %v1039, %v1263
  %v1265 = vpop.f32.mrb[0].mxu0
  %1266 = vmatprep.mubr.f32.mxu0 0.0
  %v1267 = vand.u32 %v182, 4294901760
  %1268 = vmatmul.mubr.f32.gmra.mrb[0].mxu0 %v1267
  %v1269 = vpop.f32.mrb[0].mxu0
  %v1270 = vadd.f32 %v1047, %v1269
  %v1271 = vpop.f32.mrb[0].mxu0
  %1272 = vmatprep.mubr.f32.mxu0 0.0
  %v1273 = vand.u32 %v183, 4294901760
  %1274 = vmatmul.mubr.f32.gmra.mrb[0].mxu0 %v1273
  %v1275 = vpop.f32.mrb[0].mxu0
  %v1276 = vadd.f32 %v1055, %v1275
  %v1277 = vpop.f32.mrb[0].mxu0
  %1278 = vmatprep.mubr.f32.mxu0 0.0
  %v1279 = vand.u32 %v184, 4294901760
  %1280 = vmatmul.mubr.f32.gmra.mrb[0].mxu0 %v1279
  %v1281 = vpop.f32.mrb[0].mxu0
  %v1282 = vadd.f32 %v1063, %v1281
  %v1283 = vpop.f32.mrb[0].mxu0
  %1284 = vmatprep.mubr.f32.mxu0 0.0
  %v1285 = vand.u32 %v185, 4294901760
  %1286 = vmatmul.mubr.f32.gmra.mrb[0].mxu0 %v1285
  %v1287 = vpop.f32.mrb[0].mxu0
  %v1288 = vadd.f32 %v1071, %v1287
  %v1289 = vpop.f32.mrb[0].mxu0
  %1290 = vmatprep.mubr.f32.mxu0 0.0
  %v1291 = vand.u32 %v186, 4294901760
  %1292 = vmatmul.mubr.f32.gmra.mrb[0].mxu0 %v1291
  %v1293 = vpop.f32.mrb[0].mxu0
  %v1294 = vadd.f32 %v1079, %v1293
  %v1295 = vpop.f32.mrb[0].mxu0
  %1296 = vmatprep.mubr.f32.mxu0 0.0
  %v1297 = vand.u32 %v187, 4294901760
  %1298 = vmatmul.mubr.f32.gmra.mrb[0].mxu0 %v1297
  %v1299 = vpop.f32.mrb[0].mxu0
  %v1300 = vadd.f32 %v1087, %v1299
  %v1301 = vpop.f32.mrb[0].mxu0
  %1302 = vmatprep.mubr.f32.mxu0 0.0
  %v1303 = vand.u32 %v188, 4294901760
  %1304 = vmatmul.mubr.f32.gmra.mrb[0].mxu0 %v1303
  %v1305 = vpop.f32.mrb[0].mxu0
  %v1306 = vadd.f32 %v1095, %v1305
  %v1307 = vpop.f32.mrb[0].mxu0
  %1308 = vmatprep.mubr.f32.mxu0 0.0
  %v1309 = vand.u32 %v189, 4294901760
  %1310 = vmatmul.mubr.f32.gmra.mrb[0].mxu0 %v1309
  %v1311 = vpop.f32.mrb[0].mxu0
  %v1312 = vadd.f32 %v1103, %v1311
  %v1313 = vpop.f32.mrb[0].mxu0
  %1314 = vdwg.mxu0
  %1315 = vmatprep.subr.mxu0 0.0
  %v1316 = vand.u32 %v190, 4294901760
  %1317 = vmatpush1.msra.mxu0 %v1316
  %1318 = vmatprep.subr.mxu0 0.0
  %v1319 = vand.u32 %v191, 4294901760
  %1320 = vmatpush1.msra.mxu0 %v1319
  %1321 = vmatprep.subr.mxu0 0.0
  %v1322 = vand.u32 %v192, 4294901760
  %1323 = vmatpush1.msra.mxu0 %v1322
  %1324 = vmatprep.subr.mxu0 0.0
  %v1325 = vand.u32 %v193, 4294901760
  %1326 = vmatpush1.msra.mxu0 %v1325
  %1327 = vmatprep.subr.mxu0 0.0
  %v1328 = vand.u32 %v194, 4294901760
  %1329 = vmatpush1.msra.mxu0 %v1328
  %1330 = vmatprep.subr.mxu0 0.0
  %v1331 = vand.u32 %v195, 4294901760
  %1332 = vmatpush1.msra.mxu0 %v1331
  %1333 = vmatprep.subr.mxu0 0.0
  %v1334 = vand.u32 %v196, 4294901760
  %1335 = vmatpush1.msra.mxu0 %v1334
  %1336 = vmatprep.subr.mxu0 0.0
  %v1337 = vand.u32 %v197, 4294901760
  %1338 = vmatpush1.msra.mxu0 %v1337
  %1339 = vmatprep.subr.mxu0 0.0
  %v1340 = vand.u32 %v198, 4294901760
  %1341 = vmatpush1.msra.mxu0 %v1340
  %1342 = vmatprep.subr.mxu0 0.0
  %v1343 = vand.u32 %v199, 4294901760
  %1344 = vmatpush1.msra.mxu0 %v1343
  %1345 = vmatprep.subr.mxu0 0.0
  %v1346 = vand.u32 %v200, 4294901760
  %1347 = vmatpush1.msra.mxu0 %v1346
  %1348 = vmatprep.subr.mxu0 0.0
  %v1349 = vand.u32 %v201, 4294901760
  %1350 = vmatpush1.msra.mxu0 %v1349
  %1351 = vmatprep.subr.mxu0 0.0
  %v1352 = vand.u32 %v202, 4294901760
  %1353 = vmatpush1.msra.mxu0 %v1352
  %1354 = vmatprep.subr.mxu0 0.0
  %v1355 = vand.u32 %v203, 4294901760
  %1356 = vmatpush1.msra.mxu0 %v1355
  %1357 = vmatprep.subr.mxu0 0.0
  %v1358 = vand.u32 %v204, 4294901760
  %1359 = vmatpush1.msra.mxu0 %v1358
  %1360 = vmatprep.subr.mxu0 0.0
  %v1361 = vand.u32 %v205, 4294901760
  %1362 = vmatpush1.msra.mxu0 %v1361
  %1363 = vmatprep.subr.mxu0 0.0
  %1364 = vmatpush1.msra.mxu0 0.0
  %1365 = vmatprep.subr.mxu0 0.0
  %1366 = vmatpush1.msra.mxu0 0.0
  %1367 = vmatprep.subr.mxu0 0.0
  %1368 = vmatpush1.msra.mxu0 0.0
  %1369 = vmatprep.subr.mxu0 0.0
  %1370 = vmatpush1.msra.mxu0 0.0
  %1371 = vmatprep.subr.mxu0 0.0
  %1372 = vmatpush1.msra.mxu0 0.0
  %1373 = vmatprep.subr.mxu0 0.0
  %1374 = vmatpush1.msra.mxu0 0.0
  %1375 = vmatprep.subr.mxu0 0.0
  %1376 = vmatpush1.msra.mxu0 0.0
  %1377 = vmatprep.subr.mxu0 0.0
  %1378 = vmatpush1.msra.mxu0 0.0
  %1379 = vmatprep.subr.mxu0 0.0
  %1380 = vmatpush1.msra.mxu0 0.0
  %1381 = vmatprep.subr.mxu0 0.0
  %1382 = vmatpush1.msra.mxu0 0.0
  %1383 = vmatprep.subr.mxu0 0.0
  %1384 = vmatpush1.msra.mxu0 0.0
  %1385 = vmatprep.subr.mxu0 0.0
  %1386 = vmatpush1.msra.mxu0 0.0
  %1387 = vmatprep.subr.mxu0 0.0
  %1388 = vmatpush1.msra.mxu0 0.0
  %1389 = vmatprep.subr.mxu0 0.0
  %1390 = vmatpush1.msra.mxu0 0.0
  %1391 = vmatprep.subr.mxu0 0.0
  %1392 = vmatpush1.msra.mxu0 0.0
  %1393 = vmatprep.subr.mxu0 0.0
  %1394 = vmatpush1.msra.mxu0 0.0
  %1395 = vmatprep.mubr.f32.mxu0 0.0
  %v1396 = vand.u32 %v174, 4294901760
  %1397 = vmatmul.mubr.f32.gmra.mrb[0].mxu0 %v1396
  %v1398 = vpop.f32.mrb[0].mxu0
  %v1399 = vadd.f32 %v1222, %v1398
  %v1400 = vpop.f32.mrb[0].mxu0
  %1401 = vmatprep.mubr.f32.mxu0 0.0
  %v1402 = vand.u32 %v175, 4294901760
  %1403 = vmatmul.mubr.f32.gmra.mrb[0].mxu0 %v1402
  %v1404 = vpop.f32.mrb[0].mxu0
  %v1405 = vadd.f32 %v1228, %v1404
  %v1406 = vpop.f32.mrb[0].mxu0
  %1407 = vmatprep.mubr.f32.mxu0 0.0
  %v1408 = vand.u32 %v176, 4294901760
  %1409 = vmatmul.mubr.f32.gmra.mrb[0].mxu0 %v1408
  %v1410 = vpop.f32.mrb[0].mxu0
  %v1411 = vadd.f32 %v1234, %v1410
  %v1412 = vpop.f32.mrb[0].mxu0
  %1413 = vmatprep.mubr.f32.mxu0 0.0
  %v1414 = vand.u32 %v177, 4294901760
  %1415 = vmatmul.mubr.f32.gmra.mrb[0].mxu0 %v1414
  %v1416 = vpop.f32.mrb[0].mxu0
  %v1417 = vadd.f32 %v1240, %v1416
  %v1418 = vpop.f32.mrb[0].mxu0
  %1419 = vmatprep.mubr.f32.mxu0 0.0
  %v1420 = vand.u32 %v178, 4294901760
  %1421 = vmatmul.mubr.f32.gmra.mrb[0].mxu0 %v1420
  %v1422 = vpop.f32.mrb[0].mxu0
  %v1423 = vadd.f32 %v1246, %v1422
  %v1424 = vpop.f32.mrb[0].mxu0
  %1425 = vmatprep.mubr.f32.mxu0 0.0
  %v1426 = vand.u32 %v179, 4294901760
  %1427 = vmatmul.mubr.f32.gmra.mrb[0].mxu0 %v1426
  %v1428 = vpop.f32.mrb[0].mxu0
  %v1429 = vadd.f32 %v1252, %v1428
  %v1430 = vpop.f32.mrb[0].mxu0
  %1431 = vmatprep.mubr.f32.mxu0 0.0
  %v1432 = vand.u32 %v180, 4294901760
  %1433 = vmatmul.mubr.f32.gmra.mrb[0].mxu0 %v1432
  %v1434 = vpop.f32.mrb[0].mxu0
  %v1435 = vadd.f32 %v1258, %v1434
  %v1436 = vpop.f32.mrb[0].mxu0
  %1437 = vmatprep.mubr.f32.mxu0 0.0
  %v1438 = vand.u32 %v181, 4294901760
  %1439 = vmatmul.mubr.f32.gmra.mrb[0].mxu0 %v1438
  %v1440 = vpop.f32.mrb[0].mxu0
  %v1441 = vadd.f32 %v1264, %v1440
  %v1442 = vpop.f32.mrb[0].mxu0
  %1443 = vmatprep.mubr.f32.mxu0 0.0
  %v1444 = vand.u32 %v182, 4294901760
  %1445 = vmatmul.mubr.f32.gmra.mrb[0].mxu0 %v1444
  %v1446 = vpop.f32.mrb[0].mxu0
  %v1447 = vadd.f32 %v1270, %v1446
  %v1448 = vpop.f32.mrb[0].mxu0
  %1449 = vmatprep.mubr.f32.mxu0 0.0
  %v1450 = vand.u32 %v183, 4294901760
  %1451 = vmatmul.mubr.f32.gmra.mrb[0].mxu0 %v1450
  %v1452 = vpop.f32.mrb[0].mxu0
  %v1453 = vadd.f32 %v1276, %v1452
  %v1454 = vpop.f32.mrb[0].mxu0
  %1455 = vmatprep.mubr.f32.mxu0 0.0
  %v1456 = vand.u32 %v184, 4294901760
  %1457 = vmatmul.mubr.f32.gmra.mrb[0].mxu0 %v1456
  %v1458 = vpop.f32.mrb[0].mxu0
  %v1459 = vadd.f32 %v1282, %v1458
  %v1460 = vpop.f32.mrb[0].mxu0
  %1461 = vmatprep.mubr.f32.mxu0 0.0
  %v1462 = vand.u32 %v185, 4294901760
  %1463 = vmatmul.mubr.f32.gmra.mrb[0].mxu0 %v1462
  %v1464 = vpop.f32.mrb[0].mxu0
  %v1465 = vadd.f32 %v1288, %v1464
  %v1466 = vpop.f32.mrb[0].mxu0
  %1467 = vmatprep.mubr.f32.mxu0 0.0
  %v1468 = vand.u32 %v186, 4294901760
  %1469 = vmatmul.mubr.f32.gmra.mrb[0].mxu0 %v1468
  %v1470 = vpop.f32.mrb[0].mxu0
  %v1471 = vadd.f32 %v1294, %v1470
  %v1472 = vpop.f32.mrb[0].mxu0
  %1473 = vmatprep.mubr.f32.mxu0 0.0
  %v1474 = vand.u32 %v187, 4294901760
  %1475 = vmatmul.mubr.f32.gmra.mrb[0].mxu0 %v1474
  %v1476 = vpop.f32.mrb[0].mxu0
  %v1477 = vadd.f32 %v1300, %v1476
  %v1478 = vpop.f32.mrb[0].mxu0
  %1479 = vmatprep.mubr.f32.mxu0 0.0
  %v1480 = vand.u32 %v188, 4294901760
  %1481 = vmatmul.mubr.f32.gmra.mrb[0].mxu0 %v1480
  %v1482 = vpop.f32.mrb[0].mxu0
  %v1483 = vadd.f32 %v1306, %v1482
  %v1484 = vpop.f32.mrb[0].mxu0
  %1485 = vmatprep.mubr.f32.mxu0 0.0
  %v1486 = vand.u32 %v189, 4294901760
  %1487 = vmatmul.mubr.f32.gmra.mrb[0].mxu0 %v1486
  %v1488 = vpop.f32.mrb[0].mxu0
  %v1489 = vadd.f32 %v1312, %v1488
  %v1490 = vpop.f32.mrb[0].mxu0
  %1491 = vdwg.mxu0
  %v1492 = vld [vmem:[#allocation2] sm:$0xff]
  %v1493 = vld [vmem:[#allocation2 + $0x8] sm:$0xff]
  %v1494 = vld [vmem:[#allocation2 + $0x10] sm:$0xff]
  %v1495 = vld [vmem:[#allocation2 + $0x18] sm:$0xff]
  %v1496 = vld [vmem:[#allocation2 + $0x20] sm:$0xff]
  %v1497 = vld [vmem:[#allocation2 + $0x28] sm:$0xff]
  %v1498 = vld [vmem:[#allocation2 + $0x30] sm:$0xff]
  %v1499 = vld [vmem:[#allocation2 + $0x38] sm:$0xff]
  %v1500 = vld [vmem:[#allocation2 + $0x40] sm:$0xff]
  %v1501 = vld [vmem:[#allocation2 + $0x48] sm:$0xff]
  %v1502 = vld [vmem:[#allocation2 + $0x50] sm:$0xff]
  %v1503 = vld [vmem:[#allocation2 + $0x58] sm:$0xff]
  %v1504 = vld [vmem:[#allocation2 + $0x60] sm:$0xff]
  %v1505 = vld [vmem:[#allocation2 + $0x68] sm:$0xff]
  %v1506 = vld [vmem:[#allocation2 + $0x70] sm:$0xff]
  %v1507 = vld [vmem:[#allocation2 + $0x78] sm:$0xff]
  %v1508 = vld [vmem:[%s0] sm:$0xff]
  %v1509 = vld [vmem:[%s0 + $0x8] sm:$0xff]
  %v1510 = vld [vmem:[%s0 + $0x10] sm:$0xff]
  %v1511 = vld [vmem:[%s0 + $0x18] sm:$0xff]
  %v1512 = vld [vmem:[%s0 + $0x20] sm:$0xff]
  %v1513 = vld [vmem:[%s0 + $0x28] sm:$0xff]
  %v1514 = vld [vmem:[%s0 + $0x30] sm:$0xff]
  %v1515 = vld [vmem:[%s0 + $0x38] sm:$0xff]
  %v1516 = vld [vmem:[%s0 + $0x40] sm:$0xff]
  %v1517 = vld [vmem:[%s0 + $0x48] sm:$0xff]
  %v1518 = vld [vmem:[%s0 + $0x50] sm:$0xff]
  %v1519 = vld [vmem:[%s0 + $0x58] sm:$0xff]
  %v1520 = vld [vmem:[%s0 + $0x60] sm:$0xff]
  %v1521 = vld [vmem:[%s0 + $0x68] sm:$0xff]
  %v1522 = vld [vmem:[%s0 + $0x70] sm:$0xff]
  %v1523 = vld [vmem:[%s0 + $0x78] sm:$0xff]
  %1524 = vmatprep.subr.mxu0 0.0
  %v1525 = vand.u32 %v1399, 4294901760
  %1526 = vmatpush1.msra.mxu0 %v1525
  %1527 = vmatprep.subr.mxu0 0.0
  %v1528 = vand.u32 %v1405, 4294901760
  %1529 = vmatpush1.msra.mxu0 %v1528
  %1530 = vmatprep.subr.mxu0 0.0
  %v1531 = vand.u32 %v1411, 4294901760
  %1532 = vmatpush1.msra.mxu0 %v1531
  %1533 = vmatprep.subr.mxu0 0.0
  %v1534 = vand.u32 %v1417, 4294901760
  %1535 = vmatpush1.msra.mxu0 %v1534
  %1536 = vmatprep.subr.mxu0 0.0
  %v1537 = vand.u32 %v1423, 4294901760
  %1538 = vmatpush1.msra.mxu0 %v1537
  %1539 = vmatprep.subr.mxu0 0.0
  %v1540 = vand.u32 %v1429, 4294901760
  %1541 = vmatpush1.msra.mxu0 %v1540
  %1542 = vmatprep.subr.mxu0 0.0
  %v1543 = vand.u32 %v1435, 4294901760
  %1544 = vmatpush1.msra.mxu0 %v1543
  %1545 = vmatprep.subr.mxu0 0.0
  %v1546 = vand.u32 %v1441, 4294901760
  %1547 = vmatpush1.msra.mxu0 %v1546
  %1548 = vmatprep.subr.mxu0 0.0
  %v1549 = vand.u32 %v1447, 4294901760
  %1550 = vmatpush1.msra.mxu0 %v1549
  %1551 = vmatprep.subr.mxu0 0.0
  %v1552 = vand.u32 %v1453, 4294901760
  %1553 = vmatpush1.msra.mxu0 %v1552
  %1554 = vmatprep.subr.mxu0 0.0
  %v1555 = vand.u32 %v1459, 4294901760
  %1556 = vmatpush1.msra.mxu0 %v1555
  %1557 = vmatprep.subr.mxu0 0.0
  %v1558 = vand.u32 %v1465, 4294901760
  %1559 = vmatpush1.msra.mxu0 %v1558
  %1560 = vmatprep.subr.mxu0 0.0
  %v1561 = vand.u32 %v1471, 4294901760
  %1562 = vmatpush1.msra.mxu0 %v1561
  %1563 = vmatprep.subr.mxu0 0.0
  %v1564 = vand.u32 %v1477, 4294901760
  %1565 = vmatpush1.msra.mxu0 %v1564
  %1566 = vmatprep.subr.mxu0 0.0
  %v1567 = vand.u32 %v1483, 4294901760
  %1568 = vmatpush1.msra.mxu0 %v1567
  %1569 = vmatprep.subr.mxu0 0.0
  %v1570 = vand.u32 %v1489, 4294901760
  %1571 = vmatpush1.msra.mxu0 %v1570
  %1572 = vmatprep.subr.mxu0 0.0
  %1573 = vmatpush1.msra.mxu0 0.0
  %1574 = vmatprep.subr.mxu0 0.0
  %1575 = vmatpush1.msra.mxu0 0.0
  %1576 = vmatprep.subr.mxu0 0.0
  %1577 = vmatpush1.msra.mxu0 0.0
  %1578 = vmatprep.subr.mxu0 0.0
  %1579 = vmatpush1.msra.mxu0 0.0
  %1580 = vmatprep.subr.mxu0 0.0
  %1581 = vmatpush1.msra.mxu0 0.0
  %1582 = vmatprep.subr.mxu0 0.0
  %1583 = vmatpush1.msra.mxu0 0.0
  %1584 = vmatprep.subr.mxu0 0.0
  %1585 = vmatpush1.msra.mxu0 0.0
  %1586 = vmatprep.subr.mxu0 0.0
  %1587 = vmatpush1.msra.mxu0 0.0
  %1588 = vmatprep.subr.mxu0 0.0
  %1589 = vmatpush1.msra.mxu0 0.0
  %1590 = vmatprep.subr.mxu0 0.0
  %1591 = vmatpush1.msra.mxu0 0.0
  %1592 = vmatprep.subr.mxu0 0.0
  %1593 = vmatpush1.msra.mxu0 0.0
  %1594 = vmatprep.subr.mxu0 0.0
  %1595 = vmatpush1.msra.mxu0 0.0
  %1596 = vmatprep.subr.mxu0 0.0
  %1597 = vmatpush1.msra.mxu0 0.0
  %1598 = vmatprep.subr.mxu0 0.0
  %1599 = vmatpush1.msra.mxu0 0.0
  %1600 = vmatprep.subr.mxu0 0.0
  %1601 = vmatpush1.msra.mxu0 0.0
  %1602 = vmatprep.subr.mxu0 0.0
  %1603 = vmatpush1.msra.mxu0 0.0
  %1604 = vmatprep.mubr.f32.mxu0 0.0
  %v1605 = vand.u32 %v1508, 4294901760
  %v1606 = vsub.f32 %v1508, %v1605
  %v1607 = vand.u32 %v1606, 4294901760
  %v1608 = vsub.f32 %v1606, %v1607
  %v1609 = vand.u32 %v1608, 4294901760
  %1610 = vmatmul.mubr.f32.gmra.mrb[0].mxu0 %v1609
  %v1611 = vpop.f32.mrb[0].mxu0
  %v1612 = vadd.f32 0.0, %v1611
  %v1613 = vpop.f32.mrb[0].mxu0
  %1614 = vmatprep.mubr.f32.mxu0 0.0
  %v1615 = vand.u32 %v1509, 4294901760
  %v1616 = vsub.f32 %v1509, %v1615
  %v1617 = vand.u32 %v1616, 4294901760
  %v1618 = vsub.f32 %v1616, %v1617
  %v1619 = vand.u32 %v1618, 4294901760
  %1620 = vmatmul.mubr.f32.gmra.mrb[0].mxu0 %v1619
  %v1621 = vpop.f32.mrb[0].mxu0
  %v1622 = vadd.f32 0.0, %v1621
  %v1623 = vpop.f32.mrb[0].mxu0
  %1624 = vmatprep.mubr.f32.mxu0 0.0
  %v1625 = vand.u32 %v1510, 4294901760
  %v1626 = vsub.f32 %v1510, %v1625
  %v1627 = vand.u32 %v1626, 4294901760
  %v1628 = vsub.f32 %v1626, %v1627
  %v1629 = vand.u32 %v1628, 4294901760
  %1630 = vmatmul.mubr.f32.gmra.mrb[0].mxu0 %v1629
  %v1631 = vpop.f32.mrb[0].mxu0
  %v1632 = vadd.f32 0.0, %v1631
  %v1633 = vpop.f32.mrb[0].mxu0
  %1634 = vmatprep.mubr.f32.mxu0 0.0
  %v1635 = vand.u32 %v1511, 4294901760
  %v1636 = vsub.f32 %v1511, %v1635
  %v1637 = vand.u32 %v1636, 4294901760
  %v1638 = vsub.f32 %v1636, %v1637
  %v1639 = vand.u32 %v1638, 4294901760
  %1640 = vmatmul.mubr.f32.gmra.mrb[0].mxu0 %v1639
  %v1641 = vpop.f32.mrb[0].mxu0
  %v1642 = vadd.f32 0.0, %v1641
  %v1643 = vpop.f32.mrb[0].mxu0
  %1644 = vmatprep.mubr.f32.mxu0 0.0
  %v1645 = vand.u32 %v1512, 4294901760
  %v1646 = vsub.f32 %v1512, %v1645
  %v1647 = vand.u32 %v1646, 4294901760
  %v1648 = vsub.f32 %v1646, %v1647
  %v1649 = vand.u32 %v1648, 4294901760
  %1650 = vmatmul.mubr.f32.gmra.mrb[0].mxu0 %v1649
  %v1651 = vpop.f32.mrb[0].mxu0
  %v1652 = vadd.f32 0.0, %v1651
  %v1653 = vpop.f32.mrb[0].mxu0
  %1654 = vmatprep.mubr.f32.mxu0 0.0
  %v1655 = vand.u32 %v1513, 4294901760
  %v1656 = vsub.f32 %v1513, %v1655
  %v1657 = vand.u32 %v1656, 4294901760
  %v1658 = vsub.f32 %v1656, %v1657
  %v1659 = vand.u32 %v1658, 4294901760
  %1660 = vmatmul.mubr.f32.gmra.mrb[0].mxu0 %v1659
  %v1661 = vpop.f32.mrb[0].mxu0
  %v1662 = vadd.f32 0.0, %v1661
  %v1663 = vpop.f32.mrb[0].mxu0
  %1664 = vmatprep.mubr.f32.mxu0 0.0
  %v1665 = vand.u32 %v1514, 4294901760
  %v1666 = vsub.f32 %v1514, %v1665
  %v1667 = vand.u32 %v1666, 4294901760
  %v1668 = vsub.f32 %v1666, %v1667
  %v1669 = vand.u32 %v1668, 4294901760
  %1670 = vmatmul.mubr.f32.gmra.mrb[0].mxu0 %v1669
  %v1671 = vpop.f32.mrb[0].mxu0
  %v1672 = vadd.f32 0.0, %v1671
  %v1673 = vpop.f32.mrb[0].mxu0
  %1674 = vmatprep.mubr.f32.mxu0 0.0
  %v1675 = vand.u32 %v1515, 4294901760
  %v1676 = vsub.f32 %v1515, %v1675
  %v1677 = vand.u32 %v1676, 4294901760
  %v1678 = vsub.f32 %v1676, %v1677
  %v1679 = vand.u32 %v1678, 4294901760
  %1680 = vmatmul.mubr.f32.gmra.mrb[0].mxu0 %v1679
  %v1681 = vpop.f32.mrb[0].mxu0
  %v1682 = vadd.f32 0.0, %v1681
  %v1683 = vpop.f32.mrb[0].mxu0
  %1684 = vmatprep.mubr.f32.mxu0 0.0
  %v1685 = vand.u32 %v1516, 4294901760
  %v1686 = vsub.f32 %v1516, %v1685
  %v1687 = vand.u32 %v1686, 4294901760
  %v1688 = vsub.f32 %v1686, %v1687
  %v1689 = vand.u32 %v1688, 4294901760
  %1690 = vmatmul.mubr.f32.gmra.mrb[0].mxu0 %v1689
  %v1691 = vpop.f32.mrb[0].mxu0
  %v1692 = vadd.f32 0.0, %v1691
  %v1693 = vpop.f32.mrb[0].mxu0
  %1694 = vmatprep.mubr.f32.mxu0 0.0
  %v1695 = vand.u32 %v1517, 4294901760
  %v1696 = vsub.f32 %v1517, %v1695
  %v1697 = vand.u32 %v1696, 4294901760
  %v1698 = vsub.f32 %v1696, %v1697
  %v1699 = vand.u32 %v1698, 4294901760
  %1700 = vmatmul.mubr.f32.gmra.mrb[0].mxu0 %v1699
  %v1701 = vpop.f32.mrb[0].mxu0
  %v1702 = vadd.f32 0.0, %v1701
  %v1703 = vpop.f32.mrb[0].mxu0
  %1704 = vmatprep.mubr.f32.mxu0 0.0
  %v1705 = vand.u32 %v1518, 4294901760
  %v1706 = vsub.f32 %v1518, %v1705
  %v1707 = vand.u32 %v1706, 4294901760
  %v1708 = vsub.f32 %v1706, %v1707
  %v1709 = vand.u32 %v1708, 4294901760
  %1710 = vmatmul.mubr.f32.gmra.mrb[0].mxu0 %v1709
  %v1711 = vpop.f32.mrb[0].mxu0
  %v1712 = vadd.f32 0.0, %v1711
  %v1713 = vpop.f32.mrb[0].mxu0
  %1714 = vmatprep.mubr.f32.mxu0 0.0
  %v1715 = vand.u32 %v1519, 4294901760
  %v1716 = vsub.f32 %v1519, %v1715
  %v1717 = vand.u32 %v1716, 4294901760
  %v1718 = vsub.f32 %v1716, %v1717
  %v1719 = vand.u32 %v1718, 4294901760
  %1720 = vmatmul.mubr.f32.gmra.mrb[0].mxu0 %v1719
  %v1721 = vpop.f32.mrb[0].mxu0
  %v1722 = vadd.f32 0.0, %v1721
  %v1723 = vpop.f32.mrb[0].mxu0
  %1724 = vmatprep.mubr.f32.mxu0 0.0
  %v1725 = vand.u32 %v1520, 4294901760
  %v1726 = vsub.f32 %v1520, %v1725
  %v1727 = vand.u32 %v1726, 4294901760
  %v1728 = vsub.f32 %v1726, %v1727
  %v1729 = vand.u32 %v1728, 4294901760
  %1730 = vmatmul.mubr.f32.gmra.mrb[0].mxu0 %v1729
  %v1731 = vpop.f32.mrb[0].mxu0
  %v1732 = vadd.f32 0.0, %v1731
  %v1733 = vpop.f32.mrb[0].mxu0
  %1734 = vmatprep.mubr.f32.mxu0 0.0
  %v1735 = vand.u32 %v1521, 4294901760
  %v1736 = vsub.f32 %v1521, %v1735
  %v1737 = vand.u32 %v1736, 4294901760
  %v1738 = vsub.f32 %v1736, %v1737
  %v1739 = vand.u32 %v1738, 4294901760
  %1740 = vmatmul.mubr.f32.gmra.mrb[0].mxu0 %v1739
  %v1741 = vpop.f32.mrb[0].mxu0
  %v1742 = vadd.f32 0.0, %v1741
  %v1743 = vpop.f32.mrb[0].mxu0
  %1744 = vmatprep.mubr.f32.mxu0 0.0
  %v1745 = vand.u32 %v1522, 4294901760
  %v1746 = vsub.f32 %v1522, %v1745
  %v1747 = vand.u32 %v1746, 4294901760
  %v1748 = vsub.f32 %v1746, %v1747
  %v1749 = vand.u32 %v1748, 4294901760
  %1750 = vmatmul.mubr.f32.gmra.mrb[0].mxu0 %v1749
  %v1751 = vpop.f32.mrb[0].mxu0
  %v1752 = vadd.f32 0.0, %v1751
  %v1753 = vpop.f32.mrb[0].mxu0
  %1754 = vmatprep.mubr.f32.mxu0 0.0
  %v1755 = vand.u32 %v1523, 4294901760
  %v1756 = vsub.f32 %v1523, %v1755
  %v1757 = vand.u32 %v1756, 4294901760
  %v1758 = vsub.f32 %v1756, %v1757
  %v1759 = vand.u32 %v1758, 4294901760
  %1760 = vmatmul.mubr.f32.gmra.mrb[0].mxu0 %v1759
  %v1761 = vpop.f32.mrb[0].mxu0
  %v1762 = vadd.f32 0.0, %v1761
  %v1763 = vpop.f32.mrb[0].mxu0
  %1764 = vdwg.mxu0
  %1765 = vmatprep.subr.mxu0 0.0
  %v1766 = vand.u32 %v1399, 4294901760
  %v1767 = vsub.f32 %v1399, %v1766
  %v1768 = vand.u32 %v1767, 4294901760
  %v1769 = vsub.f32 %v1767, %v1768
  %v1770 = vand.u32 %v1769, 4294901760
  %1771 = vmatpush1.msra.mxu0 %v1770
  %1772 = vmatprep.subr.mxu0 0.0
  %v1773 = vand.u32 %v1405, 4294901760
  %v1774 = vsub.f32 %v1405, %v1773
  %v1775 = vand.u32 %v1774, 4294901760
  %v1776 = vsub.f32 %v1774, %v1775
  %v1777 = vand.u32 %v1776, 4294901760
  %1778 = vmatpush1.msra.mxu0 %v1777
  %1779 = vmatprep.subr.mxu0 0.0
  %v1780 = vand.u32 %v1411, 4294901760
  %v1781 = vsub.f32 %v1411, %v1780
  %v1782 = vand.u32 %v1781, 4294901760
  %v1783 = vsub.f32 %v1781, %v1782
  %v1784 = vand.u32 %v1783, 4294901760
  %1785 = vmatpush1.msra.mxu0 %v1784
  %1786 = vmatprep.subr.mxu0 0.0
  %v1787 = vand.u32 %v1417, 4294901760
  %v1788 = vsub.f32 %v1417, %v1787
  %v1789 = vand.u32 %v1788, 4294901760
  %v1790 = vsub.f32 %v1788, %v1789
  %v1791 = vand.u32 %v1790, 4294901760
  %1792 = vmatpush1.msra.mxu0 %v1791
  %1793 = vmatprep.subr.mxu0 0.0
  %v1794 = vand.u32 %v1423, 4294901760
  %v1795 = vsub.f32 %v1423, %v1794
  %v1796 = vand.u32 %v1795, 4294901760
  %v1797 = vsub.f32 %v1795, %v1796
  %v1798 = vand.u32 %v1797, 4294901760
  %1799 = vmatpush1.msra.mxu0 %v1798
  %1800 = vmatprep.subr.mxu0 0.0
  %v1801 = vand.u32 %v1429, 4294901760
  %v1802 = vsub.f32 %v1429, %v1801
  %v1803 = vand.u32 %v1802, 4294901760
  %v1804 = vsub.f32 %v1802, %v1803
  %v1805 = vand.u32 %v1804, 4294901760
  %1806 = vmatpush1.msra.mxu0 %v1805
  %1807 = vmatprep.subr.mxu0 0.0
  %v1808 = vand.u32 %v1435, 4294901760
  %v1809 = vsub.f32 %v1435, %v1808
  %v1810 = vand.u32 %v1809, 4294901760
  %v1811 = vsub.f32 %v1809, %v1810
  %v1812 = vand.u32 %v1811, 4294901760
  %1813 = vmatpush1.msra.mxu0 %v1812
  %1814 = vmatprep.subr.mxu0 0.0
  %v1815 = vand.u32 %v1441, 4294901760
  %v1816 = vsub.f32 %v1441, %v1815
  %v1817 = vand.u32 %v1816, 4294901760
  %v1818 = vsub.f32 %v1816, %v1817
  %v1819 = vand.u32 %v1818, 4294901760
  %1820 = vmatpush1.msra.mxu0 %v1819
  %1821 = vmatprep.subr.mxu0 0.0
  %v1822 = vand.u32 %v1447, 4294901760
  %v1823 = vsub.f32 %v1447, %v1822
  %v1824 = vand.u32 %v1823, 4294901760
  %v1825 = vsub.f32 %v1823, %v1824
  %v1826 = vand.u32 %v1825, 4294901760
  %1827 = vmatpush1.msra.mxu0 %v1826
  %1828 = vmatprep.subr.mxu0 0.0
  %v1829 = vand.u32 %v1453, 4294901760
  %v1830 = vsub.f32 %v1453, %v1829
  %v1831 = vand.u32 %v1830, 4294901760
  %v1832 = vsub.f32 %v1830, %v1831
  %v1833 = vand.u32 %v1832, 4294901760
  %1834 = vmatpush1.msra.mxu0 %v1833
  %1835 = vmatprep.subr.mxu0 0.0
  %v1836 = vand.u32 %v1459, 4294901760
  %v1837 = vsub.f32 %v1459, %v1836
  %v1838 = vand.u32 %v1837, 4294901760
  %v1839 = vsub.f32 %v1837, %v1838
  %v1840 = vand.u32 %v1839, 4294901760
  %1841 = vmatpush1.msra.mxu0 %v1840
  %1842 = vmatprep.subr.mxu0 0.0
  %v1843 = vand.u32 %v1465, 4294901760
  %v1844 = vsub.f32 %v1465, %v1843
  %v1845 = vand.u32 %v1844, 4294901760
  %v1846 = vsub.f32 %v1844, %v1845
  %v1847 = vand.u32 %v1846, 4294901760
  %1848 = vmatpush1.msra.mxu0 %v1847
  %1849 = vmatprep.subr.mxu0 0.0
  %v1850 = vand.u32 %v1471, 4294901760
  %v1851 = vsub.f32 %v1471, %v1850
  %v1852 = vand.u32 %v1851, 4294901760
  %v1853 = vsub.f32 %v1851, %v1852
  %v1854 = vand.u32 %v1853, 4294901760
  %1855 = vmatpush1.msra.mxu0 %v1854
  %1856 = vmatprep.subr.mxu0 0.0
  %v1857 = vand.u32 %v1477, 4294901760
  %v1858 = vsub.f32 %v1477, %v1857
  %v1859 = vand.u32 %v1858, 4294901760
  %v1860 = vsub.f32 %v1858, %v1859
  %v1861 = vand.u32 %v1860, 4294901760
  %1862 = vmatpush1.msra.mxu0 %v1861
  %1863 = vmatprep.subr.mxu0 0.0
  %v1864 = vand.u32 %v1483, 4294901760
  %v1865 = vsub.f32 %v1483, %v1864
  %v1866 = vand.u32 %v1865, 4294901760
  %v1867 = vsub.f32 %v1865, %v1866
  %v1868 = vand.u32 %v1867, 4294901760
  %1869 = vmatpush1.msra.mxu0 %v1868
  %1870 = vmatprep.subr.mxu0 0.0
  %v1871 = vand.u32 %v1489, 4294901760
  %v1872 = vsub.f32 %v1489, %v1871
  %v1873 = vand.u32 %v1872, 4294901760
  %v1874 = vsub.f32 %v1872, %v1873
  %v1875 = vand.u32 %v1874, 4294901760
  %1876 = vmatpush1.msra.mxu0 %v1875
  %1877 = vmatprep.subr.mxu0 0.0
  %1878 = vmatpush1.msra.mxu0 0.0
  %1879 = vmatprep.subr.mxu0 0.0
  %1880 = vmatpush1.msra.mxu0 0.0
  %1881 = vmatprep.subr.mxu0 0.0
  %1882 = vmatpush1.msra.mxu0 0.0
  %1883 = vmatprep.subr.mxu0 0.0
  %1884 = vmatpush1.msra.mxu0 0.0
  %1885 = vmatprep.subr.mxu0 0.0
  %1886 = vmatpush1.msra.mxu0 0.0
  %1887 = vmatprep.subr.mxu0 0.0
  %1888 = vmatpush1.msra.mxu0 0.0
  %1889 = vmatprep.subr.mxu0 0.0
  %1890 = vmatpush1.msra.mxu0 0.0
  %1891 = vmatprep.subr.mxu0 0.0
  %1892 = vmatpush1.msra.mxu0 0.0
  %1893 = vmatprep.subr.mxu0 0.0
  %1894 = vmatpush1.msra.mxu0 0.0
  %1895 = vmatprep.subr.mxu0 0.0
  %1896 = vmatpush1.msra.mxu0 0.0
  %1897 = vmatprep.subr.mxu0 0.0
  %1898 = vmatpush1.msra.mxu0 0.0
  %1899 = vmatprep.subr.mxu0 0.0
  %1900 = vmatpush1.msra.mxu0 0.0
  %1901 = vmatprep.subr.mxu0 0.0
  %1902 = vmatpush1.msra.mxu0 0.0
  %1903 = vmatprep.subr.mxu0 0.0
  %1904 = vmatpush1.msra.mxu0 0.0
  %1905 = vmatprep.subr.mxu0 0.0
  %1906 = vmatpush1.msra.mxu0 0.0
  %1907 = vmatprep.subr.mxu0 0.0
  %1908 = vmatpush1.msra.mxu0 0.0
  %1909 = vmatprep.mubr.f32.mxu0 0.0
  %v1910 = vand.u32 %v1508, 4294901760
  %1911 = vmatmul.mubr.f32.gmra.mrb[0].mxu0 %v1910
  %v1912 = vpop.f32.mrb[0].mxu0
  %v1913 = vadd.f32 %v1612, %v1912
  %v1914 = vpop.f32.mrb[0].mxu0
  %1915 = vmatprep.mubr.f32.mxu0 0.0
  %v1916 = vand.u32 %v1509, 4294901760
  %1917 = vmatmul.mubr.f32.gmra.mrb[0].mxu0 %v1916
  %v1918 = vpop.f32.mrb[0].mxu0
  %v1919 = vadd.f32 %v1622, %v1918
  %v1920 = vpop.f32.mrb[0].mxu0
  %1921 = vmatprep.mubr.f32.mxu0 0.0
  %v1922 = vand.u32 %v1510, 4294901760
  %1923 = vmatmul.mubr.f32.gmra.mrb[0].mxu0 %v1922
  %v1924 = vpop.f32.mrb[0].mxu0
  %v1925 = vadd.f32 %v1632, %v1924
  %v1926 = vpop.f32.mrb[0].mxu0
  %1927 = vmatprep.mubr.f32.mxu0 0.0
  %v1928 = vand.u32 %v1511, 4294901760
  %1929 = vmatmul.mubr.f32.gmra.mrb[0].mxu0 %v1928
  %v1930 = vpop.f32.mrb[0].mxu0
  %v1931 = vadd.f32 %v1642, %v1930
  %v1932 = vpop.f32.mrb[0].mxu0
  %1933 = vmatprep.mubr.f32.mxu0 0.0
  %v1934 = vand.u32 %v1512, 4294901760
  %1935 = vmatmul.mubr.f32.gmra.mrb[0].mxu0 %v1934
  %v1936 = vpop.f32.mrb[0].mxu0
  %v1937 = vadd.f32 %v1652, %v1936
  %v1938 = vpop.f32.mrb[0].mxu0
  %1939 = vmatprep.mubr.f32.mxu0 0.0
  %v1940 = vand.u32 %v1513, 4294901760
  %1941 = vmatmul.mubr.f32.gmra.mrb[0].mxu0 %v1940
  %v1942 = vpop.f32.mrb[0].mxu0
  %v1943 = vadd.f32 %v1662, %v1942
  %v1944 = vpop.f32.mrb[0].mxu0
  %1945 = vmatprep.mubr.f32.mxu0 0.0
  %v1946 = vand.u32 %v1514, 4294901760
  %1947 = vmatmul.mubr.f32.gmra.mrb[0].mxu0 %v1946
  %v1948 = vpop.f32.mrb[0].mxu0
  %v1949 = vadd.f32 %v1672, %v1948
  %v1950 = vpop.f32.mrb[0].mxu0
  %1951 = vmatprep.mubr.f32.mxu0 0.0
  %v1952 = vand.u32 %v1515, 4294901760
  %1953 = vmatmul.mubr.f32.gmra.mrb[0].mxu0 %v1952
  %v1954 = vpop.f32.mrb[0].mxu0
  %v1955 = vadd.f32 %v1682, %v1954
  %v1956 = vpop.f32.mrb[0].mxu0
  %1957 = vmatprep.mubr.f32.mxu0 0.0
  %v1958 = vand.u32 %v1516, 4294901760
  %1959 = vmatmul.mubr.f32.gmra.mrb[0].mxu0 %v1958
  %v1960 = vpop.f32.mrb[0].mxu0
  %v1961 = vadd.f32 %v1692, %v1960
  %v1962 = vpop.f32.mrb[0].mxu0
  %1963 = vmatprep.mubr.f32.mxu0 0.0
  %v1964 = vand.u32 %v1517, 4294901760
  %1965 = vmatmul.mubr.f32.gmra.mrb[0].mxu0 %v1964
  %v1966 = vpop.f32.mrb[0].mxu0
  %v1967 = vadd.f32 %v1702, %v1966
  %v1968 = vpop.f32.mrb[0].mxu0
  %1969 = vmatprep.mubr.f32.mxu0 0.0
  %v1970 = vand.u32 %v1518, 4294901760
  %1971 = vmatmul.mubr.f32.gmra.mrb[0].mxu0 %v1970
  %v1972 = vpop.f32.mrb[0].mxu0
  %v1973 = vadd.f32 %v1712, %v1972
  %v1974 = vpop.f32.mrb[0].mxu0
  %1975 = vmatprep.mubr.f32.mxu0 0.0
  %v1976 = vand.u32 %v1519, 4294901760
  %1977 = vmatmul.mubr.f32.gmra.mrb[0].mxu0 %v1976
  %v1978 = vpop.f32.mrb[0].mxu0
  %v1979 = vadd.f32 %v1722, %v1978
  %v1980 = vpop.f32.mrb[0].mxu0
  %1981 = vmatprep.mubr.f32.mxu0 0.0
  %v1982 = vand.u32 %v1520, 4294901760
  %1983 = vmatmul.mubr.f32.gmra.mrb[0].mxu0 %v1982
  %v1984 = vpop.f32.mrb[0].mxu0
  %v1985 = vadd.f32 %v1732, %v1984
  %v1986 = vpop.f32.mrb[0].mxu0
  %1987 = vmatprep.mubr.f32.mxu0 0.0
  %v1988 = vand.u32 %v1521, 4294901760
  %1989 = vmatmul.mubr.f32.gmra.mrb[0].mxu0 %v1988
  %v1990 = vpop.f32.mrb[0].mxu0
  %v1991 = vadd.f32 %v1742, %v1990
  %v1992 = vpop.f32.mrb[0].mxu0
  %1993 = vmatprep.mubr.f32.mxu0 0.0
  %v1994 = vand.u32 %v1522, 4294901760
  %1995 = vmatmul.mubr.f32.gmra.mrb[0].mxu0 %v1994
  %v1996 = vpop.f32.mrb[0].mxu0
  %v1997 = vadd.f32 %v1752, %v1996
  %v1998 = vpop.f32.mrb[0].mxu0
  %1999 = vmatprep.mubr.f32.mxu0 0.0
  %v2000 = vand.u32 %v1523, 4294901760
  %2001 = vmatmul.mubr.f32.gmra.mrb[0].mxu0 %v2000
  %v2002 = vpop.f32.mrb[0].mxu0
  %v2003 = vadd.f32 %v1762, %v2002
  %v2004 = vpop.f32.mrb[0].mxu0
  %2005 = vdwg.mxu0
  %2006 = vmatprep.subr.mxu0 0.0
  %v2007 = vand.u32 %v1399, 4294901760
  %v2008 = vsub.f32 %v1399, %v2007
  %2009 = vmatpush1.msra.mxu0 %v2008
  %2010 = vmatprep.subr.mxu0 0.0
  %v2011 = vand.u32 %v1405, 4294901760
  %v2012 = vsub.f32 %v1405, %v2011
  %2013 = vmatpush1.msra.mxu0 %v2012
  %2014 = vmatprep.subr.mxu0 0.0
  %v2015 = vand.u32 %v1411, 4294901760
  %v2016 = vsub.f32 %v1411, %v2015
  %2017 = vmatpush1.msra.mxu0 %v2016
  %2018 = vmatprep.subr.mxu0 0.0
  %v2019 = vand.u32 %v1417, 4294901760
  %v2020 = vsub.f32 %v1417, %v2019
  %2021 = vmatpush1.msra.mxu0 %v2020
  %2022 = vmatprep.subr.mxu0 0.0
  %v2023 = vand.u32 %v1423, 4294901760
  %v2024 = vsub.f32 %v1423, %v2023
  %2025 = vmatpush1.msra.mxu0 %v2024
  %2026 = vmatprep.subr.mxu0 0.0
  %v2027 = vand.u32 %v1429, 4294901760
  %v2028 = vsub.f32 %v1429, %v2027
  %2029 = vmatpush1.msra.mxu0 %v2028
  %2030 = vmatprep.subr.mxu0 0.0
  %v2031 = vand.u32 %v1435, 4294901760
  %v2032 = vsub.f32 %v1435, %v2031
  %2033 = vmatpush1.msra.mxu0 %v2032
  %2034 = vmatprep.subr.mxu0 0.0
  %v2035 = vand.u32 %v1441, 4294901760
  %v2036 = vsub.f32 %v1441, %v2035
  %2037 = vmatpush1.msra.mxu0 %v2036
  %2038 = vmatprep.subr.mxu0 0.0
  %v2039 = vand.u32 %v1447, 4294901760
  %v2040 = vsub.f32 %v1447, %v2039
  %2041 = vmatpush1.msra.mxu0 %v2040
  %2042 = vmatprep.subr.mxu0 0.0
  %v2043 = vand.u32 %v1453, 4294901760
  %v2044 = vsub.f32 %v1453, %v2043
  %2045 = vmatpush1.msra.mxu0 %v2044
  %2046 = vmatprep.subr.mxu0 0.0
  %v2047 = vand.u32 %v1459, 4294901760
  %v2048 = vsub.f32 %v1459, %v2047
  %2049 = vmatpush1.msra.mxu0 %v2048
  %2050 = vmatprep.subr.mxu0 0.0
  %v2051 = vand.u32 %v1465, 4294901760
  %v2052 = vsub.f32 %v1465, %v2051
  %2053 = vmatpush1.msra.mxu0 %v2052
  %2054 = vmatprep.subr.mxu0 0.0
  %v2055 = vand.u32 %v1471, 4294901760
  %v2056 = vsub.f32 %v1471, %v2055
  %2057 = vmatpush1.msra.mxu0 %v2056
  %2058 = vmatprep.subr.mxu0 0.0
  %v2059 = vand.u32 %v1477, 4294901760
  %v2060 = vsub.f32 %v1477, %v2059
  %2061 = vmatpush1.msra.mxu0 %v2060
  %2062 = vmatprep.subr.mxu0 0.0
  %v2063 = vand.u32 %v1483, 4294901760
  %v2064 = vsub.f32 %v1483, %v2063
  %2065 = vmatpush1.msra.mxu0 %v2064
  %2066 = vmatprep.subr.mxu0 0.0
  %v2067 = vand.u32 %v1489, 4294901760
  %v2068 = vsub.f32 %v1489, %v2067
  %2069 = vmatpush1.msra.mxu0 %v2068
  %2070 = vmatprep.subr.mxu0 0.0
  %2071 = vmatpush1.msra.mxu0 0.0
  %2072 = vmatprep.subr.mxu0 0.0
  %2073 = vmatpush1.msra.mxu0 0.0
  %2074 = vmatprep.subr.mxu0 0.0
  %2075 = vmatpush1.msra.mxu0 0.0
  %2076 = vmatprep.subr.mxu0 0.0
  %2077 = vmatpush1.msra.mxu0 0.0
  %2078 = vmatprep.subr.mxu0 0.0
  %2079 = vmatpush1.msra.mxu0 0.0
  %2080 = vmatprep.subr.mxu0 0.0
  %2081 = vmatpush1.msra.mxu0 0.0
  %2082 = vmatprep.subr.mxu0 0.0
  %2083 = vmatpush1.msra.mxu0 0.0
  %2084 = vmatprep.subr.mxu0 0.0
  %2085 = vmatpush1.msra.mxu0 0.0
  %2086 = vmatprep.subr.mxu0 0.0
  %2087 = vmatpush1.msra.mxu0 0.0
  %2088 = vmatprep.subr.mxu0 0.0
  %2089 = vmatpush1.msra.mxu0 0.0
  %2090 = vmatprep.subr.mxu0 0.0
  %2091 = vmatpush1.msra.mxu0 0.0
  %2092 = vmatprep.subr.mxu0 0.0
  %2093 = vmatpush1.msra.mxu0 0.0
  %2094 = vmatprep.subr.mxu0 0.0
  %2095 = vmatpush1.msra.mxu0 0.0
  %2096 = vmatprep.subr.mxu0 0.0
  %2097 = vmatpush1.msra.mxu0 0.0
  %2098 = vmatprep.subr.mxu0 0.0
  %2099 = vmatpush1.msra.mxu0 0.0
  %2100 = vmatprep.subr.mxu0 0.0
  %2101 = vmatpush1.msra.mxu0 0.0
  %2102 = vmatprep.mubr.f32.mxu0 0.0
  %v2103 = vand.u32 %v1508, 4294901760
  %v2104 = vsub.f32 %v1508, %v2103
  %2105 = vmatmul.mubr.f32.gmra.mrb[0].mxu0 %v2104
  %v2106 = vpop.f32.mrb[0].mxu0
  %v2107 = vadd.f32 %v1913, %v2106
  %v2108 = vpop.f32.mrb[0].mxu0
  %2109 = vmatprep.mubr.f32.mxu0 0.0
  %v2110 = vand.u32 %v1509, 4294901760
  %v2111 = vsub.f32 %v1509, %v2110
  %2112 = vmatmul.mubr.f32.gmra.mrb[0].mxu0 %v2111
  %v2113 = vpop.f32.mrb[0].mxu0
  %v2114 = vadd.f32 %v1919, %v2113
  %v2115 = vpop.f32.mrb[0].mxu0
  %2116 = vmatprep.mubr.f32.mxu0 0.0
  %v2117 = vand.u32 %v1510, 4294901760
  %v2118 = vsub.f32 %v1510, %v2117
  %2119 = vmatmul.mubr.f32.gmra.mrb[0].mxu0 %v2118
  %v2120 = vpop.f32.mrb[0].mxu0
  %v2121 = vadd.f32 %v1925, %v2120
  %v2122 = vpop.f32.mrb[0].mxu0
  %2123 = vmatprep.mubr.f32.mxu0 0.0
  %v2124 = vand.u32 %v1511, 4294901760
  %v2125 = vsub.f32 %v1511, %v2124
  %2126 = vmatmul.mubr.f32.gmra.mrb[0].mxu0 %v2125
  %v2127 = vpop.f32.mrb[0].mxu0
  %v2128 = vadd.f32 %v1931, %v2127
  %v2129 = vpop.f32.mrb[0].mxu0
  %2130 = vmatprep.mubr.f32.mxu0 0.0
  %v2131 = vand.u32 %v1512, 4294901760
  %v2132 = vsub.f32 %v1512, %v2131
  %2133 = vmatmul.mubr.f32.gmra.mrb[0].mxu0 %v2132
  %v2134 = vpop.f32.mrb[0].mxu0
  %v2135 = vadd.f32 %v1937, %v2134
  %v2136 = vpop.f32.mrb[0].mxu0
  %2137 = vmatprep.mubr.f32.mxu0 0.0
  %v2138 = vand.u32 %v1513, 4294901760
  %v2139 = vsub.f32 %v1513, %v2138
  %2140 = vmatmul.mubr.f32.gmra.mrb[0].mxu0 %v2139
  %v2141 = vpop.f32.mrb[0].mxu0
  %v2142 = vadd.f32 %v1943, %v2141
  %v2143 = vpop.f32.mrb[0].mxu0
  %2144 = vmatprep.mubr.f32.mxu0 0.0
  %v2145 = vand.u32 %v1514, 4294901760
  %v2146 = vsub.f32 %v1514, %v2145
  %2147 = vmatmul.mubr.f32.gmra.mrb[0].mxu0 %v2146
  %v2148 = vpop.f32.mrb[0].mxu0
  %v2149 = vadd.f32 %v1949, %v2148
  %v2150 = vpop.f32.mrb[0].mxu0
  %2151 = vmatprep.mubr.f32.mxu0 0.0
  %v2152 = vand.u32 %v1515, 4294901760
  %v2153 = vsub.f32 %v1515, %v2152
  %2154 = vmatmul.mubr.f32.gmra.mrb[0].mxu0 %v2153
  %v2155 = vpop.f32.mrb[0].mxu0
  %v2156 = vadd.f32 %v1955, %v2155
  %v2157 = vpop.f32.mrb[0].mxu0
  %2158 = vmatprep.mubr.f32.mxu0 0.0
  %v2159 = vand.u32 %v1516, 4294901760
  %v2160 = vsub.f32 %v1516, %v2159
  %2161 = vmatmul.mubr.f32.gmra.mrb[0].mxu0 %v2160
  %v2162 = vpop.f32.mrb[0].mxu0
  %v2163 = vadd.f32 %v1961, %v2162
  %v2164 = vpop.f32.mrb[0].mxu0
  %2165 = vmatprep.mubr.f32.mxu0 0.0
  %v2166 = vand.u32 %v1517, 4294901760
  %v2167 = vsub.f32 %v1517, %v2166
  %2168 = vmatmul.mubr.f32.gmra.mrb[0].mxu0 %v2167
  %v2169 = vpop.f32.mrb[0].mxu0
  %v2170 = vadd.f32 %v1967, %v2169
  %v2171 = vpop.f32.mrb[0].mxu0
  %2172 = vmatprep.mubr.f32.mxu0 0.0
  %v2173 = vand.u32 %v1518, 4294901760
  %v2174 = vsub.f32 %v1518, %v2173
  %2175 = vmatmul.mubr.f32.gmra.mrb[0].mxu0 %v2174
  %v2176 = vpop.f32.mrb[0].mxu0
  %v2177 = vadd.f32 %v1973, %v2176
  %v2178 = vpop.f32.mrb[0].mxu0
  %2179 = vmatprep.mubr.f32.mxu0 0.0
  %v2180 = vand.u32 %v1519, 4294901760
  %v2181 = vsub.f32 %v1519, %v2180
  %2182 = vmatmul.mubr.f32.gmra.mrb[0].mxu0 %v2181
  %v2183 = vpop.f32.mrb[0].mxu0
  %v2184 = vadd.f32 %v1979, %v2183
  %v2185 = vpop.f32.mrb[0].mxu0
  %2186 = vmatprep.mubr.f32.mxu0 0.0
  %v2187 = vand.u32 %v1520, 4294901760
  %v2188 = vsub.f32 %v1520, %v2187
  %2189 = vmatmul.mubr.f32.gmra.mrb[0].mxu0 %v2188
  %v2190 = vpop.f32.mrb[0].mxu0
  %v2191 = vadd.f32 %v1985, %v2190
  %v2192 = vpop.f32.mrb[0].mxu0
  %2193 = vmatprep.mubr.f32.mxu0 0.0
  %v2194 = vand.u32 %v1521, 4294901760
  %v2195 = vsub.f32 %v1521, %v2194
  %2196 = vmatmul.mubr.f32.gmra.mrb[0].mxu0 %v2195
  %v2197 = vpop.f32.mrb[0].mxu0
  %v2198 = vadd.f32 %v1991, %v2197
  %v2199 = vpop.f32.mrb[0].mxu0
  %2200 = vmatprep.mubr.f32.mxu0 0.0
  %v2201 = vand.u32 %v1522, 4294901760
  %v2202 = vsub.f32 %v1522, %v2201
  %2203 = vmatmul.mubr.f32.gmra.mrb[0].mxu0 %v2202
  %v2204 = vpop.f32.mrb[0].mxu0
  %v2205 = vadd.f32 %v1997, %v2204
  %v2206 = vpop.f32.mrb[0].mxu0
  %2207 = vmatprep.mubr.f32.mxu0 0.0
  %v2208 = vand.u32 %v1523, 4294901760
  %v2209 = vsub.f32 %v1523, %v2208
  %2210 = vmatmul.mubr.f32.gmra.mrb[0].mxu0 %v2209
  %v2211 = vpop.f32.mrb[0].mxu0
  %v2212 = vadd.f32 %v2003, %v2211
  %v2213 = vpop.f32.mrb[0].mxu0
  %2214 = vdwg.mxu0
  %2215 = vmatprep.subr.mxu0 0.0
  %v2216 = vand.u32 %v1399, 4294901760
  %2217 = vmatpush1.msra.mxu0 %v2216
  %2218 = vmatprep.subr.mxu0 0.0
  %v2219 = vand.u32 %v1405, 4294901760
  %2220 = vmatpush1.msra.mxu0 %v2219
  %2221 = vmatprep.subr.mxu0 0.0
  %v2222 = vand.u32 %v1411, 4294901760
  %2223 = vmatpush1.msra.mxu0 %v2222
  %2224 = vmatprep.subr.mxu0 0.0
  %v2225 = vand.u32 %v1417, 4294901760
  %2226 = vmatpush1.msra.mxu0 %v2225
  %2227 = vmatprep.subr.mxu0 0.0
  %v2228 = vand.u32 %v1423, 4294901760
  %2229 = vmatpush1.msra.mxu0 %v2228
  %2230 = vmatprep.subr.mxu0 0.0
  %v2231 = vand.u32 %v1429, 4294901760
  %2232 = vmatpush1.msra.mxu0 %v2231
  %2233 = vmatprep.subr.mxu0 0.0
  %v2234 = vand.u32 %v1435, 4294901760
  %2235 = vmatpush1.msra.mxu0 %v2234
  %2236 = vmatprep.subr.mxu0 0.0
  %v2237 = vand.u32 %v1441, 4294901760
  %2238 = vmatpush1.msra.mxu0 %v2237
  %2239 = vmatprep.subr.mxu0 0.0
  %v2240 = vand.u32 %v1447, 4294901760
  %2241 = vmatpush1.msra.mxu0 %v2240
  %2242 = vmatprep.subr.mxu0 0.0
  %v2243 = vand.u32 %v1453, 4294901760
  %2244 = vmatpush1.msra.mxu0 %v2243
  %2245 = vmatprep.subr.mxu0 0.0
  %v2246 = vand.u32 %v1459, 4294901760
  %2247 = vmatpush1.msra.mxu0 %v2246
  %2248 = vmatprep.subr.mxu0 0.0
  %v2249 = vand.u32 %v1465, 4294901760
  %2250 = vmatpush1.msra.mxu0 %v2249
  %2251 = vmatprep.subr.mxu0 0.0
  %v2252 = vand.u32 %v1471, 4294901760
  %2253 = vmatpush1.msra.mxu0 %v2252
  %2254 = vmatprep.subr.mxu0 0.0
  %v2255 = vand.u32 %v1477, 4294901760
  %2256 = vmatpush1.msra.mxu0 %v2255
  %2257 = vmatprep.subr.mxu0 0.0
  %v2258 = vand.u32 %v1483, 4294901760
  %2259 = vmatpush1.msra.mxu0 %v2258
  %2260 = vmatprep.subr.mxu0 0.0
  %v2261 = vand.u32 %v1489, 4294901760
  %2262 = vmatpush1.msra.mxu0 %v2261
  %2263 = vmatprep.subr.mxu0 0.0
  %2264 = vmatpush1.msra.mxu0 0.0
  %2265 = vmatprep.subr.mxu0 0.0
  %2266 = vmatpush1.msra.mxu0 0.0
  %2267 = vmatprep.subr.mxu0 0.0
  %2268 = vmatpush1.msra.mxu0 0.0
  %2269 = vmatprep.subr.mxu0 0.0
  %2270 = vmatpush1.msra.mxu0 0.0
  %2271 = vmatprep.subr.mxu0 0.0
  %2272 = vmatpush1.msra.mxu0 0.0
  %2273 = vmatprep.subr.mxu0 0.0
  %2274 = vmatpush1.msra.mxu0 0.0
  %2275 = vmatprep.subr.mxu0 0.0
  %2276 = vmatpush1.msra.mxu0 0.0
  %2277 = vmatprep.subr.mxu0 0.0
  %2278 = vmatpush1.msra.mxu0 0.0
  %2279 = vmatprep.subr.mxu0 0.0
  %2280 = vmatpush1.msra.mxu0 0.0
  %2281 = vmatprep.subr.mxu0 0.0
  %2282 = vmatpush1.msra.mxu0 0.0
  %2283 = vmatprep.subr.mxu0 0.0
  %2284 = vmatpush1.msra.mxu0 0.0
  %2285 = vmatprep.subr.mxu0 0.0
  %2286 = vmatpush1.msra.mxu0 0.0
  %2287 = vmatprep.subr.mxu0 0.0
  %2288 = vmatpush1.msra.mxu0 0.0
  %2289 = vmatprep.subr.mxu0 0.0
  %2290 = vmatpush1.msra.mxu0 0.0
  %2291 = vmatprep.subr.mxu0 0.0
  %2292 = vmatpush1.msra.mxu0 0.0
  %2293 = vmatprep.subr.mxu0 0.0
  %2294 = vmatpush1.msra.mxu0 0.0
  %2295 = vmatprep.mubr.f32.mxu0 0.0
  %v2296 = vand.u32 %v1508, 4294901760
  %v2297 = vsub.f32 %v1508, %v2296
  %v2298 = vand.u32 %v2297, 4294901760
  %2299 = vmatmul.mubr.f32.gmra.mrb[0].mxu0 %v2298
  %v2300 = vpop.f32.mrb[0].mxu0
  %v2301 = vadd.f32 %v2107, %v2300
  %v2302 = vpop.f32.mrb[0].mxu0
  %2303 = vmatprep.mubr.f32.mxu0 0.0
  %v2304 = vand.u32 %v1509, 4294901760
  %v2305 = vsub.f32 %v1509, %v2304
  %v2306 = vand.u32 %v2305, 4294901760
  %2307 = vmatmul.mubr.f32.gmra.mrb[0].mxu0 %v2306
  %v2308 = vpop.f32.mrb[0].mxu0
  %v2309 = vadd.f32 %v2114, %v2308
  %v2310 = vpop.f32.mrb[0].mxu0
  %2311 = vmatprep.mubr.f32.mxu0 0.0
  %v2312 = vand.u32 %v1510, 4294901760
  %v2313 = vsub.f32 %v1510, %v2312
  %v2314 = vand.u32 %v2313, 4294901760
  %2315 = vmatmul.mubr.f32.gmra.mrb[0].mxu0 %v2314
  %v2316 = vpop.f32.mrb[0].mxu0
  %v2317 = vadd.f32 %v2121, %v2316
  %v2318 = vpop.f32.mrb[0].mxu0
  %2319 = vmatprep.mubr.f32.mxu0 0.0
  %v2320 = vand.u32 %v1511, 4294901760
  %v2321 = vsub.f32 %v1511, %v2320
  %v2322 = vand.u32 %v2321, 4294901760
  %2323 = vmatmul.mubr.f32.gmra.mrb[0].mxu0 %v2322
  %v2324 = vpop.f32.mrb[0].mxu0
  %v2325 = vadd.f32 %v2128, %v2324
  %v2326 = vpop.f32.mrb[0].mxu0
  %2327 = vmatprep.mubr.f32.mxu0 0.0
  %v2328 = vand.u32 %v1512, 4294901760
  %v2329 = vsub.f32 %v1512, %v2328
  %v2330 = vand.u32 %v2329, 4294901760
  %2331 = vmatmul.mubr.f32.gmra.mrb[0].mxu0 %v2330
  %v2332 = vpop.f32.mrb[0].mxu0
  %v2333 = vadd.f32 %v2135, %v2332
  %v2334 = vpop.f32.mrb[0].mxu0
  %2335 = vmatprep.mubr.f32.mxu0 0.0
  %v2336 = vand.u32 %v1513, 4294901760
  %v2337 = vsub.f32 %v1513, %v2336
  %v2338 = vand.u32 %v2337, 4294901760
  %2339 = vmatmul.mubr.f32.gmra.mrb[0].mxu0 %v2338
  %v2340 = vpop.f32.mrb[0].mxu0
  %v2341 = vadd.f32 %v2142, %v2340
  %v2342 = vpop.f32.mrb[0].mxu0
  %2343 = vmatprep.mubr.f32.mxu0 0.0
  %v2344 = vand.u32 %v1514, 4294901760
  %v2345 = vsub.f32 %v1514, %v2344
  %v2346 = vand.u32 %v2345, 4294901760
  %2347 = vmatmul.mubr.f32.gmra.mrb[0].mxu0 %v2346
  %v2348 = vpop.f32.mrb[0].mxu0
  %v2349 = vadd.f32 %v2149, %v2348
  %v2350 = vpop.f32.mrb[0].mxu0
  %2351 = vmatprep.mubr.f32.mxu0 0.0
  %v2352 = vand.u32 %v1515, 4294901760
  %v2353 = vsub.f32 %v1515, %v2352
  %v2354 = vand.u32 %v2353, 4294901760
  %2355 = vmatmul.mubr.f32.gmra.mrb[0].mxu0 %v2354
  %v2356 = vpop.f32.mrb[0].mxu0
  %v2357 = vadd.f32 %v2156, %v2356
  %v2358 = vpop.f32.mrb[0].mxu0
  %2359 = vmatprep.mubr.f32.mxu0 0.0
  %v2360 = vand.u32 %v1516, 4294901760
  %v2361 = vsub.f32 %v1516, %v2360
  %v2362 = vand.u32 %v2361, 4294901760
  %2363 = vmatmul.mubr.f32.gmra.mrb[0].mxu0 %v2362
  %v2364 = vpop.f32.mrb[0].mxu0
  %v2365 = vadd.f32 %v2163, %v2364
  %v2366 = vpop.f32.mrb[0].mxu0
  %2367 = vmatprep.mubr.f32.mxu0 0.0
  %v2368 = vand.u32 %v1517, 4294901760
  %v2369 = vsub.f32 %v1517, %v2368
  %v2370 = vand.u32 %v2369, 4294901760
  %2371 = vmatmul.mubr.f32.gmra.mrb[0].mxu0 %v2370
  %v2372 = vpop.f32.mrb[0].mxu0
  %v2373 = vadd.f32 %v2170, %v2372
  %v2374 = vpop.f32.mrb[0].mxu0
  %2375 = vmatprep.mubr.f32.mxu0 0.0
  %v2376 = vand.u32 %v1518, 4294901760
  %v2377 = vsub.f32 %v1518, %v2376
  %v2378 = vand.u32 %v2377, 4294901760
  %2379 = vmatmul.mubr.f32.gmra.mrb[0].mxu0 %v2378
  %v2380 = vpop.f32.mrb[0].mxu0
  %v2381 = vadd.f32 %v2177, %v2380
  %v2382 = vpop.f32.mrb[0].mxu0
  %2383 = vmatprep.mubr.f32.mxu0 0.0
  %v2384 = vand.u32 %v1519, 4294901760
  %v2385 = vsub.f32 %v1519, %v2384
  %v2386 = vand.u32 %v2385, 4294901760
  %2387 = vmatmul.mubr.f32.gmra.mrb[0].mxu0 %v2386
  %v2388 = vpop.f32.mrb[0].mxu0
  %v2389 = vadd.f32 %v2184, %v2388
  %v2390 = vpop.f32.mrb[0].mxu0
  %2391 = vmatprep.mubr.f32.mxu0 0.0
  %v2392 = vand.u32 %v1520, 4294901760
  %v2393 = vsub.f32 %v1520, %v2392
  %v2394 = vand.u32 %v2393, 4294901760
  %2395 = vmatmul.mubr.f32.gmra.mrb[0].mxu0 %v2394
  %v2396 = vpop.f32.mrb[0].mxu0
  %v2397 = vadd.f32 %v2191, %v2396
  %v2398 = vpop.f32.mrb[0].mxu0
  %2399 = vmatprep.mubr.f32.mxu0 0.0
  %v2400 = vand.u32 %v1521, 4294901760
  %v2401 = vsub.f32 %v1521, %v2400
  %v2402 = vand.u32 %v2401, 4294901760
  %2403 = vmatmul.mubr.f32.gmra.mrb[0].mxu0 %v2402
  %v2404 = vpop.f32.mrb[0].mxu0
  %v2405 = vadd.f32 %v2198, %v2404
  %v2406 = vpop.f32.mrb[0].mxu0
  %2407 = vmatprep.mubr.f32.mxu0 0.0
  %v2408 = vand.u32 %v1522, 4294901760
  %v2409 = vsub.f32 %v1522, %v2408
  %v2410 = vand.u32 %v2409, 4294901760
  %2411 = vmatmul.mubr.f32.gmra.mrb[0].mxu0 %v2410
  %v2412 = vpop.f32.mrb[0].mxu0
  %v2413 = vadd.f32 %v2205, %v2412
  %v2414 = vpop.f32.mrb[0].mxu0
  %2415 = vmatprep.mubr.f32.mxu0 0.0
  %v2416 = vand.u32 %v1523, 4294901760
  %v2417 = vsub.f32 %v1523, %v2416
  %v2418 = vand.u32 %v2417, 4294901760
  %2419 = vmatmul.mubr.f32.gmra.mrb[0].mxu0 %v2418
  %v2420 = vpop.f32.mrb[0].mxu0
  %v2421 = vadd.f32 %v2212, %v2420
  %v2422 = vpop.f32.mrb[0].mxu0
  %2423 = vdwg.mxu0
  %2424 = vmatprep.subr.mxu0 0.0
  %v2425 = vand.u32 %v1399, 4294901760
  %v2426 = vsub.f32 %v1399, %v2425
  %v2427 = vand.u32 %v2426, 4294901760
  %2428 = vmatpush1.msra.mxu0 %v2427
  %2429 = vmatprep.subr.mxu0 0.0
  %v2430 = vand.u32 %v1405, 4294901760
  %v2431 = vsub.f32 %v1405, %v2430
  %v2432 = vand.u32 %v2431, 4294901760
  %2433 = vmatpush1.msra.mxu0 %v2432
  %2434 = vmatprep.subr.mxu0 0.0
  %v2435 = vand.u32 %v1411, 4294901760
  %v2436 = vsub.f32 %v1411, %v2435
  %v2437 = vand.u32 %v2436, 4294901760
  %2438 = vmatpush1.msra.mxu0 %v2437
  %2439 = vmatprep.subr.mxu0 0.0
  %v2440 = vand.u32 %v1417, 4294901760
  %v2441 = vsub.f32 %v1417, %v2440
  %v2442 = vand.u32 %v2441, 4294901760
  %2443 = vmatpush1.msra.mxu0 %v2442
  %2444 = vmatprep.subr.mxu0 0.0
  %v2445 = vand.u32 %v1423, 4294901760
  %v2446 = vsub.f32 %v1423, %v2445
  %v2447 = vand.u32 %v2446, 4294901760
  %2448 = vmatpush1.msra.mxu0 %v2447
  %2449 = vmatprep.subr.mxu0 0.0
  %v2450 = vand.u32 %v1429, 4294901760
  %v2451 = vsub.f32 %v1429, %v2450
  %v2452 = vand.u32 %v2451, 4294901760
  %2453 = vmatpush1.msra.mxu0 %v2452
  %2454 = vmatprep.subr.mxu0 0.0
  %v2455 = vand.u32 %v1435, 4294901760
  %v2456 = vsub.f32 %v1435, %v2455
  %v2457 = vand.u32 %v2456, 4294901760
  %2458 = vmatpush1.msra.mxu0 %v2457
  %2459 = vmatprep.subr.mxu0 0.0
  %v2460 = vand.u32 %v1441, 4294901760
  %v2461 = vsub.f32 %v1441, %v2460
  %v2462 = vand.u32 %v2461, 4294901760
  %2463 = vmatpush1.msra.mxu0 %v2462
  %2464 = vmatprep.subr.mxu0 0.0
  %v2465 = vand.u32 %v1447, 4294901760
  %v2466 = vsub.f32 %v1447, %v2465
  %v2467 = vand.u32 %v2466, 4294901760
  %2468 = vmatpush1.msra.mxu0 %v2467
  %2469 = vmatprep.subr.mxu0 0.0
  %v2470 = vand.u32 %v1453, 4294901760
  %v2471 = vsub.f32 %v1453, %v2470
  %v2472 = vand.u32 %v2471, 4294901760
  %2473 = vmatpush1.msra.mxu0 %v2472
  %2474 = vmatprep.subr.mxu0 0.0
  %v2475 = vand.u32 %v1459, 4294901760
  %v2476 = vsub.f32 %v1459, %v2475
  %v2477 = vand.u32 %v2476, 4294901760
  %2478 = vmatpush1.msra.mxu0 %v2477
  %2479 = vmatprep.subr.mxu0 0.0
  %v2480 = vand.u32 %v1465, 4294901760
  %v2481 = vsub.f32 %v1465, %v2480
  %v2482 = vand.u32 %v2481, 4294901760
  %2483 = vmatpush1.msra.mxu0 %v2482
  %2484 = vmatprep.subr.mxu0 0.0
  %v2485 = vand.u32 %v1471, 4294901760
  %v2486 = vsub.f32 %v1471, %v2485
  %v2487 = vand.u32 %v2486, 4294901760
  %2488 = vmatpush1.msra.mxu0 %v2487
  %2489 = vmatprep.subr.mxu0 0.0
  %v2490 = vand.u32 %v1477, 4294901760
  %v2491 = vsub.f32 %v1477, %v2490
  %v2492 = vand.u32 %v2491, 4294901760
  %2493 = vmatpush1.msra.mxu0 %v2492
  %2494 = vmatprep.subr.mxu0 0.0
  %v2495 = vand.u32 %v1483, 4294901760
  %v2496 = vsub.f32 %v1483, %v2495
  %v2497 = vand.u32 %v2496, 4294901760
  %2498 = vmatpush1.msra.mxu0 %v2497
  %2499 = vmatprep.subr.mxu0 0.0
  %v2500 = vand.u32 %v1489, 4294901760
  %v2501 = vsub.f32 %v1489, %v2500
  %v2502 = vand.u32 %v2501, 4294901760
  %2503 = vmatpush1.msra.mxu0 %v2502
  %2504 = vmatprep.subr.mxu0 0.0
  %2505 = vmatpush1.msra.mxu0 0.0
  %2506 = vmatprep.subr.mxu0 0.0
  %2507 = vmatpush1.msra.mxu0 0.0
  %2508 = vmatprep.subr.mxu0 0.0
  %2509 = vmatpush1.msra.mxu0 0.0
  %2510 = vmatprep.subr.mxu0 0.0
  %2511 = vmatpush1.msra.mxu0 0.0
  %2512 = vmatprep.subr.mxu0 0.0
  %2513 = vmatpush1.msra.mxu0 0.0
  %2514 = vmatprep.subr.mxu0 0.0
  %2515 = vmatpush1.msra.mxu0 0.0
  %2516 = vmatprep.subr.mxu0 0.0
  %2517 = vmatpush1.msra.mxu0 0.0
  %2518 = vmatprep.subr.mxu0 0.0
  %2519 = vmatpush1.msra.mxu0 0.0
  %2520 = vmatprep.subr.mxu0 0.0
  %2521 = vmatpush1.msra.mxu0 0.0
  %2522 = vmatprep.subr.mxu0 0.0
  %2523 = vmatpush1.msra.mxu0 0.0
  %2524 = vmatprep.subr.mxu0 0.0
  %2525 = vmatpush1.msra.mxu0 0.0
  %2526 = vmatprep.subr.mxu0 0.0
  %2527 = vmatpush1.msra.mxu0 0.0
  %2528 = vmatprep.subr.mxu0 0.0
  %2529 = vmatpush1.msra.mxu0 0.0
  %2530 = vmatprep.subr.mxu0 0.0
  %2531 = vmatpush1.msra.mxu0 0.0
  %2532 = vmatprep.subr.mxu0 0.0
  %2533 = vmatpush1.msra.mxu0 0.0
  %2534 = vmatprep.subr.mxu0 0.0
  %2535 = vmatpush1.msra.mxu0 0.0
  %2536 = vmatprep.mubr.f32.mxu0 0.0
  %v2537 = vand.u32 %v1508, 4294901760
  %2538 = vmatmul.mubr.f32.gmra.mrb[0].mxu0 %v2537
  %v2539 = vpop.f32.mrb[0].mxu0
  %v2540 = vadd.f32 %v2301, %v2539
  %v2541 = vpop.f32.mrb[0].mxu0
  %2542 = vmatprep.mubr.f32.mxu0 0.0
  %v2543 = vand.u32 %v1509, 4294901760
  %2544 = vmatmul.mubr.f32.gmra.mrb[0].mxu0 %v2543
  %v2545 = vpop.f32.mrb[0].mxu0
  %v2546 = vadd.f32 %v2309, %v2545
  %v2547 = vpop.f32.mrb[0].mxu0
  %2548 = vmatprep.mubr.f32.mxu0 0.0
  %v2549 = vand.u32 %v1510, 4294901760
  %2550 = vmatmul.mubr.f32.gmra.mrb[0].mxu0 %v2549
  %v2551 = vpop.f32.mrb[0].mxu0
  %v2552 = vadd.f32 %v2317, %v2551
  %v2553 = vpop.f32.mrb[0].mxu0
  %2554 = vmatprep.mubr.f32.mxu0 0.0
  %v2555 = vand.u32 %v1511, 4294901760
  %2556 = vmatmul.mubr.f32.gmra.mrb[0].mxu0 %v2555
  %v2557 = vpop.f32.mrb[0].mxu0
  %v2558 = vadd.f32 %v2325, %v2557
  %v2559 = vpop.f32.mrb[0].mxu0
  %2560 = vmatprep.mubr.f32.mxu0 0.0
  %v2561 = vand.u32 %v1512, 4294901760
  %2562 = vmatmul.mubr.f32.gmra.mrb[0].mxu0 %v2561
  %v2563 = vpop.f32.mrb[0].mxu0
  %v2564 = vadd.f32 %v2333, %v2563
  %v2565 = vpop.f32.mrb[0].mxu0
  %2566 = vmatprep.mubr.f32.mxu0 0.0
  %v2567 = vand.u32 %v1513, 4294901760
  %2568 = vmatmul.mubr.f32.gmra.mrb[0].mxu0 %v2567
  %v2569 = vpop.f32.mrb[0].mxu0
  %v2570 = vadd.f32 %v2341, %v2569
  %v2571 = vpop.f32.mrb[0].mxu0
  %2572 = vmatprep.mubr.f32.mxu0 0.0
  %v2573 = vand.u32 %v1514, 4294901760
  %2574 = vmatmul.mubr.f32.gmra.mrb[0].mxu0 %v2573
  %v2575 = vpop.f32.mrb[0].mxu0
  %v2576 = vadd.f32 %v2349, %v2575
  %v2577 = vpop.f32.mrb[0].mxu0
  %2578 = vmatprep.mubr.f32.mxu0 0.0
  %v2579 = vand.u32 %v1515, 4294901760
  %2580 = vmatmul.mubr.f32.gmra.mrb[0].mxu0 %v2579
  %v2581 = vpop.f32.mrb[0].mxu0
  %v2582 = vadd.f32 %v2357, %v2581
  %v2583 = vpop.f32.mrb[0].mxu0
  %2584 = vmatprep.mubr.f32.mxu0 0.0
  %v2585 = vand.u32 %v1516, 4294901760
  %2586 = vmatmul.mubr.f32.gmra.mrb[0].mxu0 %v2585
  %v2587 = vpop.f32.mrb[0].mxu0
  %v2588 = vadd.f32 %v2365, %v2587
  %v2589 = vpop.f32.mrb[0].mxu0
  %2590 = vmatprep.mubr.f32.mxu0 0.0
  %v2591 = vand.u32 %v1517, 4294901760
  %2592 = vmatmul.mubr.f32.gmra.mrb[0].mxu0 %v2591
  %v2593 = vpop.f32.mrb[0].mxu0
  %v2594 = vadd.f32 %v2373, %v2593
  %v2595 = vpop.f32.mrb[0].mxu0
  %2596 = vmatprep.mubr.f32.mxu0 0.0
  %v2597 = vand.u32 %v1518, 4294901760
  %2598 = vmatmul.mubr.f32.gmra.mrb[0].mxu0 %v2597
  %v2599 = vpop.f32.mrb[0].mxu0
  %v2600 = vadd.f32 %v2381, %v2599
  %v2601 = vpop.f32.mrb[0].mxu0
  %2602 = vmatprep.mubr.f32.mxu0 0.0
  %v2603 = vand.u32 %v1519, 4294901760
  %2604 = vmatmul.mubr.f32.gmra.mrb[0].mxu0 %v2603
  %v2605 = vpop.f32.mrb[0].mxu0
  %v2606 = vadd.f32 %v2389, %v2605
  %v2607 = vpop.f32.mrb[0].mxu0
  %2608 = vmatprep.mubr.f32.mxu0 0.0
  %v2609 = vand.u32 %v1520, 4294901760
  %2610 = vmatmul.mubr.f32.gmra.mrb[0].mxu0 %v2609
  %v2611 = vpop.f32.mrb[0].mxu0
  %v2612 = vadd.f32 %v2397, %v2611
  %v2613 = vpop.f32.mrb[0].mxu0
  %2614 = vmatprep.mubr.f32.mxu0 0.0
  %v2615 = vand.u32 %v1521, 4294901760
  %2616 = vmatmul.mubr.f32.gmra.mrb[0].mxu0 %v2615
  %v2617 = vpop.f32.mrb[0].mxu0
  %v2618 = vadd.f32 %v2405, %v2617
  %v2619 = vpop.f32.mrb[0].mxu0
  %2620 = vmatprep.mubr.f32.mxu0 0.0
  %v2621 = vand.u32 %v1522, 4294901760
  %2622 = vmatmul.mubr.f32.gmra.mrb[0].mxu0 %v2621
  %v2623 = vpop.f32.mrb[0].mxu0
  %v2624 = vadd.f32 %v2413, %v2623
  %v2625 = vpop.f32.mrb[0].mxu0
  %2626 = vmatprep.mubr.f32.mxu0 0.0
  %v2627 = vand.u32 %v1523, 4294901760
  %2628 = vmatmul.mubr.f32.gmra.mrb[0].mxu0 %v2627
  %v2629 = vpop.f32.mrb[0].mxu0
  %v2630 = vadd.f32 %v2421, %v2629
  %v2631 = vpop.f32.mrb[0].mxu0
  %2632 = vdwg.mxu0
  %2633 = vmatprep.subr.mxu0 0.0
  %v2634 = vand.u32 %v1399, 4294901760
  %2635 = vmatpush1.msra.mxu0 %v2634
  %2636 = vmatprep.subr.mxu0 0.0
  %v2637 = vand.u32 %v1405, 4294901760
  %2638 = vmatpush1.msra.mxu0 %v2637
  %2639 = vmatprep.subr.mxu0 0.0
  %v2640 = vand.u32 %v1411, 4294901760
  %2641 = vmatpush1.msra.mxu0 %v2640
  %2642 = vmatprep.subr.mxu0 0.0
  %v2643 = vand.u32 %v1417, 4294901760
  %2644 = vmatpush1.msra.mxu0 %v2643
  %2645 = vmatprep.subr.mxu0 0.0
  %v2646 = vand.u32 %v1423, 4294901760
  %2647 = vmatpush1.msra.mxu0 %v2646
  %2648 = vmatprep.subr.mxu0 0.0
  %v2649 = vand.u32 %v1429, 4294901760
  %2650 = vmatpush1.msra.mxu0 %v2649
  %2651 = vmatprep.subr.mxu0 0.0
  %v2652 = vand.u32 %v1435, 4294901760
  %2653 = vmatpush1.msra.mxu0 %v2652
  %2654 = vmatprep.subr.mxu0 0.0
  %v2655 = vand.u32 %v1441, 4294901760
  %2656 = vmatpush1.msra.mxu0 %v2655
  %2657 = vmatprep.subr.mxu0 0.0
  %v2658 = vand.u32 %v1447, 4294901760
  %2659 = vmatpush1.msra.mxu0 %v2658
  %2660 = vmatprep.subr.mxu0 0.0
  %v2661 = vand.u32 %v1453, 4294901760
  %2662 = vmatpush1.msra.mxu0 %v2661
  %2663 = vmatprep.subr.mxu0 0.0
  %v2664 = vand.u32 %v1459, 4294901760
  %2665 = vmatpush1.msra.mxu0 %v2664
  %2666 = vmatprep.subr.mxu0 0.0
  %v2667 = vand.u32 %v1465, 4294901760
  %2668 = vmatpush1.msra.mxu0 %v2667
  %2669 = vmatprep.subr.mxu0 0.0
  %v2670 = vand.u32 %v1471, 4294901760
  %2671 = vmatpush1.msra.mxu0 %v2670
  %2672 = vmatprep.subr.mxu0 0.0
  %v2673 = vand.u32 %v1477, 4294901760
  %2674 = vmatpush1.msra.mxu0 %v2673
  %2675 = vmatprep.subr.mxu0 0.0
  %v2676 = vand.u32 %v1483, 4294901760
  %2677 = vmatpush1.msra.mxu0 %v2676
  %2678 = vmatprep.subr.mxu0 0.0
  %v2679 = vand.u32 %v1489, 4294901760
  %2680 = vmatpush1.msra.mxu0 %v2679
  %2681 = vmatprep.subr.mxu0 0.0
  %2682 = vmatpush1.msra.mxu0 0.0
  %2683 = vmatprep.subr.mxu0 0.0
  %2684 = vmatpush1.msra.mxu0 0.0
  %2685 = vmatprep.subr.mxu0 0.0
  %2686 = vmatpush1.msra.mxu0 0.0
  %2687 = vmatprep.subr.mxu0 0.0
  %2688 = vmatpush1.msra.mxu0 0.0
  %2689 = vmatprep.subr.mxu0 0.0
  %2690 = vmatpush1.msra.mxu0 0.0
  %2691 = vmatprep.subr.mxu0 0.0
  %2692 = vmatpush1.msra.mxu0 0.0
  %2693 = vmatprep.subr.mxu0 0.0
  %2694 = vmatpush1.msra.mxu0 0.0
  %2695 = vmatprep.subr.mxu0 0.0
  %2696 = vmatpush1.msra.mxu0 0.0
  %2697 = vmatprep.subr.mxu0 0.0
  %2698 = vmatpush1.msra.mxu0 0.0
  %2699 = vmatprep.subr.mxu0 0.0
  %2700 = vmatpush1.msra.mxu0 0.0
  %2701 = vmatprep.subr.mxu0 0.0
  %2702 = vmatpush1.msra.mxu0 0.0
  %2703 = vmatprep.subr.mxu0 0.0
  %2704 = vmatpush1.msra.mxu0 0.0
  %2705 = vmatprep.subr.mxu0 0.0
  %2706 = vmatpush1.msra.mxu0 0.0
  %2707 = vmatprep.subr.mxu0 0.0
  %2708 = vmatpush1.msra.mxu0 0.0
  %2709 = vmatprep.subr.mxu0 0.0
  %2710 = vmatpush1.msra.mxu0 0.0
  %2711 = vmatprep.subr.mxu0 0.0
  %2712 = vmatpush1.msra.mxu0 0.0
  %2713 = vmatprep.mubr.f32.mxu0 0.0
  %v2714 = vand.u32 %v1508, 4294901760
  %2715 = vmatmul.mubr.f32.gmra.mrb[0].mxu0 %v2714
  %v2716 = vpop.f32.mrb[0].mxu0
  %v2717 = vadd.f32 %v2540, %v2716
  %v2718 = vpop.f32.mrb[0].mxu0
  %2719 = vmatprep.mubr.f32.mxu0 0.0
  %v2720 = vand.u32 %v1509, 4294901760
  %2721 = vmatmul.mubr.f32.gmra.mrb[0].mxu0 %v2720
  %v2722 = vpop.f32.mrb[0].mxu0
  %v2723 = vadd.f32 %v2546, %v2722
  %v2724 = vpop.f32.mrb[0].mxu0
  %2725 = vmatprep.mubr.f32.mxu0 0.0
  %v2726 = vand.u32 %v1510, 4294901760
  %2727 = vmatmul.mubr.f32.gmra.mrb[0].mxu0 %v2726
  %v2728 = vpop.f32.mrb[0].mxu0
  %v2729 = vadd.f32 %v2552, %v2728
  %v2730 = vpop.f32.mrb[0].mxu0
  %2731 = vmatprep.mubr.f32.mxu0 0.0
  %v2732 = vand.u32 %v1511, 4294901760
  %2733 = vmatmul.mubr.f32.gmra.mrb[0].mxu0 %v2732
  %v2734 = vpop.f32.mrb[0].mxu0
  %v2735 = vadd.f32 %v2558, %v2734
  %v2736 = vpop.f32.mrb[0].mxu0
  %2737 = vmatprep.mubr.f32.mxu0 0.0
  %v2738 = vand.u32 %v1512, 4294901760
  %2739 = vmatmul.mubr.f32.gmra.mrb[0].mxu0 %v2738
  %v2740 = vpop.f32.mrb[0].mxu0
  %v2741 = vadd.f32 %v2564, %v2740
  %v2742 = vpop.f32.mrb[0].mxu0
  %2743 = vmatprep.mubr.f32.mxu0 0.0
  %v2744 = vand.u32 %v1513, 4294901760
  %2745 = vmatmul.mubr.f32.gmra.mrb[0].mxu0 %v2744
  %v2746 = vpop.f32.mrb[0].mxu0
  %v2747 = vadd.f32 %v2570, %v2746
  %v2748 = vpop.f32.mrb[0].mxu0
  %2749 = vmatprep.mubr.f32.mxu0 0.0
  %v2750 = vand.u32 %v1514, 4294901760
  %2751 = vmatmul.mubr.f32.gmra.mrb[0].mxu0 %v2750
  %v2752 = vpop.f32.mrb[0].mxu0
  %v2753 = vadd.f32 %v2576, %v2752
  %v2754 = vpop.f32.mrb[0].mxu0
  %2755 = vmatprep.mubr.f32.mxu0 0.0
  %v2756 = vand.u32 %v1515, 4294901760
  %2757 = vmatmul.mubr.f32.gmra.mrb[0].mxu0 %v2756
  %v2758 = vpop.f32.mrb[0].mxu0
  %v2759 = vadd.f32 %v2582, %v2758
  %v2760 = vpop.f32.mrb[0].mxu0
  %2761 = vmatprep.mubr.f32.mxu0 0.0
  %v2762 = vand.u32 %v1516, 4294901760
  %2763 = vmatmul.mubr.f32.gmra.mrb[0].mxu0 %v2762
  %v2764 = vpop.f32.mrb[0].mxu0
  %v2765 = vadd.f32 %v2588, %v2764
  %v2766 = vpop.f32.mrb[0].mxu0
  %2767 = vmatprep.mubr.f32.mxu0 0.0
  %v2768 = vand.u32 %v1517, 4294901760
  %2769 = vmatmul.mubr.f32.gmra.mrb[0].mxu0 %v2768
  %v2770 = vpop.f32.mrb[0].mxu0
  %v2771 = vadd.f32 %v2594, %v2770
  %v2772 = vpop.f32.mrb[0].mxu0
  %2773 = vmatprep.mubr.f32.mxu0 0.0
  %v2774 = vand.u32 %v1518, 4294901760
  %2775 = vmatmul.mubr.f32.gmra.mrb[0].mxu0 %v2774
  %v2776 = vpop.f32.mrb[0].mxu0
  %v2777 = vadd.f32 %v2600, %v2776
  %v2778 = vpop.f32.mrb[0].mxu0
  %2779 = vmatprep.mubr.f32.mxu0 0.0
  %v2780 = vand.u32 %v1519, 4294901760
  %2781 = vmatmul.mubr.f32.gmra.mrb[0].mxu0 %v2780
  %v2782 = vpop.f32.mrb[0].mxu0
  %v2783 = vadd.f32 %v2606, %v2782
  %v2784 = vpop.f32.mrb[0].mxu0
  %2785 = vmatprep.mubr.f32.mxu0 0.0
  %v2786 = vand.u32 %v1520, 4294901760
  %2787 = vmatmul.mubr.f32.gmra.mrb[0].mxu0 %v2786
  %v2788 = vpop.f32.mrb[0].mxu0
  %v2789 = vadd.f32 %v2612, %v2788
  %v2790 = vpop.f32.mrb[0].mxu0
  %2791 = vmatprep.mubr.f32.mxu0 0.0
  %v2792 = vand.u32 %v1521, 4294901760
  %2793 = vmatmul.mubr.f32.gmra.mrb[0].mxu0 %v2792
  %v2794 = vpop.f32.mrb[0].mxu0
  %v2795 = vadd.f32 %v2618, %v2794
  %v2796 = vpop.f32.mrb[0].mxu0
  %2797 = vmatprep.mubr.f32.mxu0 0.0
  %v2798 = vand.u32 %v1522, 4294901760
  %2799 = vmatmul.mubr.f32.gmra.mrb[0].mxu0 %v2798
  %v2800 = vpop.f32.mrb[0].mxu0
  %v2801 = vadd.f32 %v2624, %v2800
  %v2802 = vpop.f32.mrb[0].mxu0
  %2803 = vmatprep.mubr.f32.mxu0 0.0
  %v2804 = vand.u32 %v1523, 4294901760
  %2805 = vmatmul.mubr.f32.gmra.mrb[0].mxu0 %v2804
  %v2806 = vpop.f32.mrb[0].mxu0
  %v2807 = vadd.f32 %v2630, %v2806
  %v2808 = vpop.f32.mrb[0].mxu0
  %2809 = vdwg.mxu0
  %v2810 = vadd.f32 %v1492, %v2717
  %v2811 = vadd.f32 %v1493, %v2723
  %v2812 = vadd.f32 %v1494, %v2729
  %v2813 = vadd.f32 %v1495, %v2735
  %v2814 = vadd.f32 %v1496, %v2741
  %v2815 = vadd.f32 %v1497, %v2747
  %v2816 = vadd.f32 %v1498, %v2753
  %v2817 = vadd.f32 %v1499, %v2759
  %v2818 = vadd.f32 %v1500, %v2765
  %v2819 = vadd.f32 %v1501, %v2771
  %v2820 = vadd.f32 %v1502, %v2777
  %v2821 = vadd.f32 %v1503, %v2783
  %v2822 = vadd.f32 %v1504, %v2789
  %v2823 = vadd.f32 %v1505, %v2795
  %v2824 = vadd.f32 %v1506, %v2801
  %v2825 = vadd.f32 %v1507, %v2807
  %2826 = vst [vmem:[#allocation2] sm:$0xff] %v2810
  %2827 = vst [vmem:[#allocation2 + $0x8] sm:$0xff] %v2811
  %2828 = vst [vmem:[#allocation2 + $0x10] sm:$0xff] %v2812
  %2829 = vst [vmem:[#allocation2 + $0x18] sm:$0xff] %v2813
  %2830 = vst [vmem:[#allocation2 + $0x20] sm:$0xff] %v2814
  %2831 = vst [vmem:[#allocation2 + $0x28] sm:$0xff] %v2815
  %2832 = vst [vmem:[#allocation2 + $0x30] sm:$0xff] %v2816
  %2833 = vst [vmem:[#allocation2 + $0x38] sm:$0xff] %v2817
  %2834 = vst [vmem:[#allocation2 + $0x40] sm:$0xff] %v2818
  %2835 = vst [vmem:[#allocation2 + $0x48] sm:$0xff] %v2819
  %2836 = vst [vmem:[#allocation2 + $0x50] sm:$0xff] %v2820
  %2837 = vst [vmem:[#allocation2 + $0x58] sm:$0xff] %v2821
  %2838 = vst [vmem:[#allocation2 + $0x60] sm:$0xff] %v2822
  %2839 = vst [vmem:[#allocation2 + $0x68] sm:$0xff] %v2823
  %2840 = vst [vmem:[#allocation2 + $0x70] sm:$0xff] %v2824
  %2841 = vst [vmem:[#allocation2 + $0x78] sm:$0xff] %v2825
  // Predicated region
  $region30: #{custom_stellar_encoder_forward.5} parent=0 // pred_check
    %p2842 = pneg %p108
  $region31: #{custom_stellar_encoder_forward.5} parent=0 // pred_check_branch
    %2844 = sbr.rel (%p2842) target = $region33
  $region32: #{custom_stellar_encoder_forward.5} parent=0 // pred_region
    %v2845 = vld [vmem:[#allocation2] sm:$0xff]
    %v2846 = vld [vmem:[#allocation2 + $0x8] sm:$0xff]
    %v2847 = vld [vmem:[#allocation2 + $0x10] sm:$0xff]
    %v2848 = vld [vmem:[#allocation2 + $0x18] sm:$0xff]
    %v2849 = vld [vmem:[#allocation2 + $0x20] sm:$0xff]
    %v2850 = vld [vmem:[#allocation2 + $0x28] sm:$0xff]
    %v2851 = vld [vmem:[#allocation2 + $0x30] sm:$0xff]
    %v2852 = vld [vmem:[#allocation2 + $0x38] sm:$0xff]
    %v2853 = vld [vmem:[#allocation2 + $0x40] sm:$0xff]
    %v2854 = vld [vmem:[#allocation2 + $0x48] sm:$0xff]
    %v2855 = vld [vmem:[#allocation2 + $0x50] sm:$0xff]
    %v2856 = vld [vmem:[#allocation2 + $0x58] sm:$0xff]
    %v2857 = vld [vmem:[#allocation2 + $0x60] sm:$0xff]
    %v2858 = vld [vmem:[#allocation2 + $0x68] sm:$0xff]
    %v2859 = vld [vmem:[#allocation2 + $0x70] sm:$0xff]
    %v2860 = vld [vmem:[#allocation2 + $0x78] sm:$0xff]
    %v2861 = vld [vmem:[%s3] sm:$0x1]
    %v2863 = vlaneseq
    %v2864 = vshrl.u32 %v2863, 7
    %v2865 = vsub.s32 0, %v2864
    %v2866 = vrot.slane %v2861, %v2865
    %v2868 = vmul.f32 %v2866, %v92
    %v2869 = vmul.f32 %v2866, %v93
    %v2870 = vmul.f32 %v2866, %v94
    %v2871 = vmul.f32 %v2866, %v95
    %v2872 = vmul.f32 %v2866, %v96
    %v2873 = vmul.f32 %v2866, %v97
    %v2874 = vmul.f32 %v2866, %v98
    %v2875 = vmul.f32 %v2866, %v99
    %v2876 = vmul.f32 %v2866, %v100
    %v2877 = vmul.f32 %v2866, %v101
    %v2878 = vmul.f32 %v2866, %v102
    %v2879 = vmul.f32 %v2866, %v103
    %v2880 = vmul.f32 %v2866, %v104
    %v2881 = vmul.f32 %v2866, %v105
    %v2882 = vmul.f32 %v2866, %v106
    %v2883 = vmul.f32 %v2866, %v107
    %v2884 = vadd.f32 %v2845, %v2868
    %v2885 = vadd.f32 %v2846, %v2869
    %v2886 = vadd.f32 %v2847, %v2870
    %v2887 = vadd.f32 %v2848, %v2871
    %v2888 = vadd.f32 %v2849, %v2872
    %v2889 = vadd.f32 %v2850, %v2873
    %v2890 = vadd.f32 %v2851, %v2874
    %v2891 = vadd.f32 %v2852, %v2875
    %v2892 = vadd.f32 %v2853, %v2876
    %v2893 = vadd.f32 %v2854, %v2877
    %v2894 = vadd.f32 %v2855, %v2878
    %v2895 = vadd.f32 %v2856, %v2879
    %v2896 = vadd.f32 %v2857, %v2880
    %v2897 = vadd.f32 %v2858, %v2881
    %v2898 = vadd.f32 %v2859, %v2882
    %v2899 = vadd.f32 %v2860, %v2883
    %2900 = vst [vmem:[%s6] sm:$0xff] %v2884
    %2901 = vst [vmem:[%s6 + $0x8] sm:$0xff] %v2885
    %2902 = vst [vmem:[%s6 + $0x10] sm:$0xff] %v2886
    %2903 = vst [vmem:[%s6 + $0x18] sm:$0xff] %v2887
    %2904 = vst [vmem:[%s6 + $0x20] sm:$0xff] %v2888
    %2905 = vst [vmem:[%s6 + $0x28] sm:$0xff] %v2889
    %2906 = vst [vmem:[%s6 + $0x30] sm:$0xff] %v2890
    %2907 = vst [vmem:[%s6 + $0x38] sm:$0xff] %v2891
    %2908 = vst [vmem:[%s6 + $0x40] sm:$0xff] %v2892
    %2909 = vst [vmem:[%s6 + $0x48] sm:$0xff] %v2893
    %2910 = vst [vmem:[%s6 + $0x50] sm:$0xff] %v2894
    %2911 = vst [vmem:[%s6 + $0x58] sm:$0xff] %v2895
    %2912 = vst [vmem:[%s6 + $0x60] sm:$0xff] %v2896
    %2913 = vst [vmem:[%s6 + $0x68] sm:$0xff] %v2897
    %2914 = vst [vmem:[%s6 + $0x70] sm:$0xff] %v2898
    %2915 = vst [vmem:[%s6 + $0x78] sm:$0xff] %v2899
    %v2916 = vadd.f32 %v2884, %v2885
    %v2917 = vadd.f32 %v2916, %v2886
    %v2918 = vadd.f32 %v2917, %v2887
    %v2919 = vadd.f32 %v2918, %v2888
    %v2920 = vadd.f32 %v2919, %v2889
    %v2921 = vadd.f32 %v2920, %v2890
    %v2922 = vadd.f32 %v2921, %v2891
    %v2923 = vadd.f32 %v2922, %v2892
    %v2924 = vadd.f32 %v2923, %v2893
    %v2925 = vadd.f32 %v2924, %v2894
    %v2926 = vadd.f32 %v2925, %v2895
    %v2927 = vadd.f32 %v2926, %v2896
    %v2928 = vadd.f32 %v2927, %v2897
    %v2929 = vadd.f32 %v2928, %v2898
    %v2930 = vadd.f32 %v2929, %v2899
    %v2931 = vrot.slane %v2930, 4
    %v2932 = vadd.f32 %v2930, %v2931
    %v2933 = vrot.slane %v2932, 2
    %v2934 = vadd.f32 %v2932, %v2933
    %v2935 = vrot.slane %v2934, 1
    %v2936 = vadd.f32 %v2934, %v2935
    %2937 = vst [vmem:[%s7] sm:$0x1] %v2936
    %v2938 = vmul.f32 %v2884, %v2884
    %v2939 = vmul.f32 %v2885, %v2885
    %v2940 = vmul.f32 %v2886, %v2886
    %v2941 = vmul.f32 %v2887, %v2887
    %v2942 = vmul.f32 %v2888, %v2888
    %v2943 = vmul.f32 %v2889, %v2889
    %v2944 = vmul.f32 %v2890, %v2890
    %v2945 = vmul.f32 %v2891, %v2891
    %v2946 = vmul.f32 %v2892, %v2892
    %v2947 = vmul.f32 %v2893, %v2893
    %v2948 = vmul.f32 %v2894, %v2894
    %v2949 = vmul.f32 %v2895, %v2895
    %v2950 = vmul.f32 %v2896, %v2896
    %v2951 = vmul.f32 %v2897, %v2897
    %v2952 = vmul.f32 %v2898, %v2898
    %v2953 = vmul.f32 %v2899, %v2899
    %v2954 = vadd.f32 %v2938, %v2939
    %v2955 = vadd.f32 %v2954, %v2940
    %v2956 = vadd.f32 %v2955, %v2941
    %v2957 = vadd.f32 %v2956, %v2942
    %v2958 = vadd.f32 %v2957, %v2943
    %v2959 = vadd.f32 %v2958, %v2944
    %v2960 = vadd.f32 %v2959, %v2945
    %v2961 = vadd.f32 %v2960, %v2946
    %v2962 = vadd.f32 %v2961, %v2947
    %v2963 = vadd.f32 %v2962, %v2948
    %v2964 = vadd.f32 %v2963, %v2949
    %v2965 = vadd.f32 %v2964, %v2950
    %v2966 = vadd.f32 %v2965, %v2951
    %v2967 = vadd.f32 %v2966, %v2952
    %v2968 = vadd.f32 %v2967, %v2953
    %v2969 = vrot.slane %v2968, 4
    %v2970 = vadd.f32 %v2968, %v2969
    %v2971 = vrot.slane %v2970, 2
    %v2972 = vadd.f32 %v2970, %v2971
    %v2973 = vrot.slane %v2972, 1
    %v2974 = vadd.f32 %v2972, %v2973
    %2975 = vst [vmem:[%s7 + $0x1] sm:$0x1] %v2974
  $region33: #{custom_stellar_encoder_forward.5} parent=0 // pred_fallthru
    _
  // Predicated region
  $region34: #{custom_stellar_encoder_forward.5} parent=0 // pred_check
    _
  $region35: #{custom_stellar_encoder_forward.5} parent=0 // pred_check_branch
    %2977 = sbr.rel (0) target = $region37
  $region36: #{custom_stellar_encoder_forward.5} parent=0 // pred_region
    _
  $region37: #{custom_stellar_encoder_forward.5} parent=0 // pred_fallthru
    _
  // Predicated region
  $region38: #{custom_stellar_encoder_forward.5} parent=0 // pred_check
    _
  $region39: #{custom_stellar_encoder_forward.5} parent=0 // pred_check_branch
    %2979 = sbr.rel (0) target = $region41
  $region40: #{custom_stellar_encoder_forward.5} parent=0 // pred_region
    _
  $region41: #{custom_stellar_encoder_forward.5} parent=0 // pred_fallthru
    _
  // Predicated region
  $region42: #{custom_stellar_encoder_forward.5} parent=0 // pred_check
    _
  $region43: #{custom_stellar_encoder_forward.5} parent=0 // pred_check_branch
    %2981 = sbr.rel (0) target = $region45
  $region44: #{custom_stellar_encoder_forward.5} parent=0 // pred_region
    _
  $region45: #{custom_stellar_encoder_forward.5} parent=0 // pred_fallthru
    _
  // Predicated region
  $region46: #{custom_stellar_encoder_forward.5} parent=0 // pred_check
    _
  $region47: #{custom_stellar_encoder_forward.5} parent=0 // pred_check_branch
    %2983 = sbr.rel (0) target = $region49
  $region48: #{custom_stellar_encoder_forward.5} parent=0 // pred_region
    _
  $region49: #{custom_stellar_encoder_forward.5} parent=0 // pred_fallthru
    _

</llo_original>
